<compile_context>
chip_gen: v7x
topology: tpu7x:2x2x1
jax: 0.10.0
libtpu: 0.0.40
codegen_flags: <defaults>
</compile_context>

<pallas_src>
import jax
import jax.numpy as jnp
from jax.experimental import pallas as pl
from jax.experimental.pallas import tpu as pltpu

# ---- synthetic model config (small, consistent with a decoder-only LM) ----
VOCAB = 64
HIDDEN = 32
NUM_HEADS = 4
HEAD_DIM = HIDDEN // NUM_HEADS
MLP = 4 * HIDDEN
LAYERS = 2
BATCH = 2
SEQ = 8
EPS = 1e-5

QKV = 3 * HIDDEN
VEC_LANES = 128      # each packed per-layer vector row is padded to 128 lanes
VEC_ROWS = 8         # ln1w, ln1b, bqkv, bo, ln2w, ln2b, b1, b2

assert QKV <= VEC_LANES and MLP <= VEC_LANES, "vector packing assumes <=128 lanes"


def _layernorm(x, w, b):
    mu = jnp.mean(x, axis=-1, keepdims=True)
    var = jnp.mean(jnp.square(x - mu), axis=-1, keepdims=True)
    return (x - mu) * jax.lax.rsqrt(var + EPS) * w + b


def text_encoder_kernel(x_ref, wqkv_ref, wo_ref, w1_ref, w2t_ref, vec_ref,
                        lnf_ref, out_ref):
    # x_ref:    (S, H)   f32   this batch's token+pos embeddings
    # wqkv_ref: (L, H, 3H)          bf16
    # wo_ref:   (L, N, D, H)        bf16   output projection, grouped per head
    # w1_ref:   (L, H, MLP)         bf16
    # w2t_ref:  (L, H, MLP)         bf16   down projection, stored transposed
    # vec_ref:  (L, 8, 128)         f32    LN weights / biases (lane-padded rows)
    # lnf_ref:  (2, H)              f32    final LN weight / bias
    # out_ref:  (S, H)              f32
    scale = HEAD_DIM ** -0.5

    # Causal additive bias for this batch's (S, S) score matrix, hoisted above
    # the layer/head loops.  TODO(synk): at real-checkpoint scale compute this
    # per (q-tile, k-tile) inside a kv loop instead of holding it resident.
    iq = jax.lax.broadcasted_iota(jnp.int32, (SEQ, SEQ), 0)
    ik = jax.lax.broadcasted_iota(jnp.int32, (SEQ, SEQ), 1)
    causal_bias = jnp.where(ik <= iq, 0.0, -1e30).astype(jnp.float32)

    hs = x_ref[...].astype(jnp.float32)                     # (S, H) residual stream

    # TODO(synk): at real-checkpoint scale (large S, H), replace this with
    # per-head flash-attention tiling over sequence and re-derive VMEM tile
    # budgets per generation (64 MiB physical / 32 MiB scoped default on v7x,
    # 128 MiB on v5e/v6e) with explicit vmem_limit_bytes.
    for l in range(LAYERS):                                 # static unrolled layers
        wqkv_l = wqkv_ref[l]                                # (H, 3H)   bf16
        wo_l = wo_ref[l]                                    # (N, D, H) bf16
        w1_l = w1_ref[l]                                    # (H, MLP)  bf16
        w2t_l = w2t_ref[l]                                  # (H, MLP)  bf16
        vl = vec_ref[l]                                     # (8, 128)  f32
        ln1w, ln1b = vl[0, :HIDDEN], vl[1, :HIDDEN]
        bqkv = vl[2, :QKV]
        bo = vl[3, :HIDDEN]
        ln2w, ln2b = vl[4, :HIDDEN], vl[5, :HIDDEN]
        b1 = vl[6, :MLP]
        b2 = vl[7, :HIDDEN]

        # ---------------- causal self-attention (per-head, no relayouts) -----
        x1 = _layernorm(hs, ln1w, ln1b)                     # f32 VPU math
        qkv = jnp.dot(x1.astype(jnp.bfloat16), wqkv_l,
                      preferred_element_type=jnp.float32) + bqkv   # (S, 3H) f32

        attn = jnp.zeros((SEQ, HIDDEN), jnp.float32)
        for hd in range(NUM_HEADS):                         # static 4-iter loop
            lo = hd * HEAD_DIM
            q = qkv[:, lo:lo + HEAD_DIM]                             # (S, D)
            k = qkv[:, HIDDEN + lo:HIDDEN + lo + HEAD_DIM]           # (S, D)
            v = qkv[:, 2 * HIDDEN + lo:2 * HIDDEN + lo + HEAD_DIM]   # (S, D)

            # scores: contract last dims of q and k (no explicit transpose)
            s = jax.lax.dot_general(
                q.astype(jnp.bfloat16), k.astype(jnp.bfloat16),
                (((1,), (1,)), ((), ())),
                preferred_element_type=jnp.float32) * scale + causal_bias
            s = s - jnp.max(s, axis=-1, keepdims=True)      # f32 softmax
            p = jnp.exp(s)
            p = p * pl.reciprocal(jnp.sum(p, axis=-1, keepdims=True), approx=True)

            ctx = jnp.dot(p.astype(jnp.bfloat16), v.astype(jnp.bfloat16),
                          preferred_element_type=jnp.float32)        # (S, D)
            # fold output projection per head (avoids concatenating heads)
            attn = attn + jnp.dot(ctx.astype(jnp.bfloat16), wo_l[hd],
                                  preferred_element_type=jnp.float32)  # (S, H)
        hs = hs + attn + bo

        # ---------------- MLP ----------------
        x2 = _layernorm(hs, ln2w, ln2b)
        m = jnp.dot(x2.astype(jnp.bfloat16), w1_l,
                    preferred_element_type=jnp.float32) + b1          # (S, MLP)
        m = jax.nn.gelu(m, approximate=True)                          # f32 EUP/VPU
        dn = jax.lax.dot_general(
            m.astype(jnp.bfloat16), w2t_l,
            (((1,), (1,)), ((), ())),
            preferred_element_type=jnp.float32) + b2                  # (S, H)
        hs = hs + dn

    hf = _layernorm(hs, lnf_ref[0, :], lnf_ref[1, :])
    out_ref[...] = hf.astype(out_ref.dtype)


def init_params(key):
    ks = jax.random.split(key, 8)
    init = lambda k, shape: (0.02 * jax.random.normal(k, shape)).astype(jnp.float32)
    # TODO(synk): real weights come from AutoModelForCausalLM.from_pretrained;
    # these are deterministic synthetic parameters with the same structure.
    return dict(
        wte=init(ks[0], (VOCAB, HIDDEN)),
        wpe=init(ks[1], (SEQ, HIDDEN)),
        ln1w=jnp.ones((LAYERS, HIDDEN), jnp.float32),
        ln1b=jnp.zeros((LAYERS, HIDDEN), jnp.float32),
        wqkv=init(ks[2], (LAYERS, HIDDEN, QKV)),
        bqkv=jnp.zeros((LAYERS, QKV), jnp.float32),
        wo=init(ks[3], (LAYERS, HIDDEN, HIDDEN)),
        bo=jnp.zeros((LAYERS, HIDDEN), jnp.float32),
        ln2w=jnp.ones((LAYERS, HIDDEN), jnp.float32),
        ln2b=jnp.zeros((LAYERS, HIDDEN), jnp.float32),
        w1=init(ks[4], (LAYERS, HIDDEN, MLP)),
        b1=jnp.zeros((LAYERS, MLP), jnp.float32),
        w2=init(ks[5], (LAYERS, MLP, HIDDEN)),
        b2=jnp.zeros((LAYERS, HIDDEN), jnp.float32),
        lnfw=jnp.ones((HIDDEN,), jnp.float32),
        lnfb=jnp.zeros((HIDDEN,), jnp.float32),
    )


def _pack_params(p):
    """Host-side weight prep: bf16 MXU weights, per-head Wo, transposed W2, vec slab."""
    wqkv = p['wqkv'].astype(jnp.bfloat16)                               # (L, H, 3H)
    wo_h = p['wo'].reshape(LAYERS, NUM_HEADS, HEAD_DIM, HIDDEN).astype(jnp.bfloat16)
    w1 = p['w1'].astype(jnp.bfloat16)                                   # (L, H, MLP)
    w2t = jnp.swapaxes(p['w2'], 1, 2).astype(jnp.bfloat16)              # (L, H, MLP)

    def row(v):  # (L, n) -> (L, 1, 128) zero-padded
        return jnp.pad(v, ((0, 0), (0, VEC_LANES - v.shape[-1])))[:, None, :]

    vecs = jnp.concatenate(
        [row(p['ln1w']), row(p['ln1b']), row(p['bqkv']), row(p['bo']),
         row(p['ln2w']), row(p['ln2b']), row(p['b1']), row(p['b2'])],
        axis=1).astype(jnp.float32)                                     # (L, 8, 128)
    lnf = jnp.stack([p['lnfw'], p['lnfb']], axis=0).astype(jnp.float32)  # (2, H)
    return wqkv, wo_h, w1, w2t, vecs, lnf


def text_encoder_forward(params, token_ids):
    B, S = token_ids.shape
    # Embedding gather (glue, plain JAX): token + position embeddings.
    x = (params['wte'][token_ids] +
         params['wpe'][jnp.arange(S)][None, :, :]).astype(jnp.float32)
    x2d = x.reshape(B * S, HIDDEN)

    wqkv, wo_h, w1, w2t, vecs, lnf = _pack_params(params)

    def const_spec(shape):
        n = len(shape)
        return pl.BlockSpec(shape, lambda b, n=n: (0,) * n)

    flops_layer = (2 * B * S * HIDDEN * QKV
                   + 2 * B * NUM_HEADS * S * S * HEAD_DIM * 2
                   + 2 * B * S * HIDDEN * HIDDEN
                   + 2 * 2 * B * S * HIDDEN * MLP)
    cost = pl.CostEstimate(
        flops=LAYERS * flops_layer,
        transcendentals=LAYERS * (B * NUM_HEADS * S * S + B * S * MLP),
        bytes_accessed=(x2d.size * 4 + wqkv.size * 2 + wo_h.size * 2
                        + w1.size * 2 + w2t.size * 2 + vecs.size * 4
                        + lnf.size * 4 + B * S * HIDDEN * 4),
    )

    out2d = pl.pallas_call(
        text_encoder_kernel,
        out_shape=jax.ShapeDtypeStruct((B * S, HIDDEN), jnp.float32),
        grid_spec=pltpu.PrefetchScalarGridSpec(
            num_scalar_prefetch=0,
            grid=(B,),                                      # per-batch row blocks
            in_specs=[
                pl.BlockSpec((S, HIDDEN), lambda b: (b, 0)),   # activations
                const_spec(wqkv.shape),
                const_spec(wo_h.shape),
                const_spec(w1.shape),
                const_spec(w2t.shape),
                const_spec(vecs.shape),
                const_spec(lnf.shape),
            ],
            out_specs=pl.BlockSpec((S, HIDDEN), lambda b: (b, 0)),
        ),
        compiler_params=pltpu.CompilerParams(
            dimension_semantics=("parallel",)),              # v7x: 2 TCs split batch
        cost_estimate=cost,
    )(x2d, wqkv, wo_h, w1, w2t, vecs, lnf)

    return out2d.reshape(B, S, HIDDEN)


if __name__ == "__main__":
    key = jax.random.PRNGKey(0)
    pkey, dkey = jax.random.split(key)
    params = init_params(pkey)
    input_token_ids = jax.random.randint(dkey, (BATCH, SEQ), 0, VOCAB,
                                         dtype=jnp.int32)
    out = text_encoder_forward(params, input_token_ids)
    out = jax.block_until_ready(out)
    assert out.shape == (BATCH, SEQ, HIDDEN), out.shape
    assert bool(jnp.all(jnp.isfinite(out)))
    print("KERNEL_OK")
</pallas_src>

<mosaic_0001>
module attributes {stable_mosaic.version = 11 : i64} {
  func.func @text_encoder_kernel(%arg0: i32, %arg1: memref<8x32xf32, #tpu.memory_space<vmem>>, %arg2: memref<2x32x96xbf16, #tpu.memory_space<vmem>>, %arg3: memref<2x4x8x32xbf16, #tpu.memory_space<vmem>>, %arg4: memref<2x32x128xbf16, #tpu.memory_space<vmem>>, %arg5: memref<2x32x128xbf16, #tpu.memory_space<vmem>>, %arg6: memref<2x8x128xf32, #tpu.memory_space<vmem>>, %arg7: memref<2x32xf32, #tpu.memory_space<vmem>>, %arg8: memref<8x32xf32, #tpu.memory_space<vmem>>) attributes {dimension_semantics = [#tpu.dimension_semantics<parallel>], iteration_bounds = array<i64: 2>, scalar_prefetch = 0 : i64, scratch_operands = 0 : i64, tpu.core_type = #tpu.core_type<tc>, window_params = [{transform_indices = @transform_0, window_bounds = array<i64: 8, 32>}, {pipeline_mode = #tpu.pipeline_mode<synchronous>, transform_indices = @transform_1, window_bounds = array<i64: 2, 32, 96>}, {pipeline_mode = #tpu.pipeline_mode<synchronous>, transform_indices = @transform_2, window_bounds = array<i64: 2, 4, 8, 32>}, {pipeline_mode = #tpu.pipeline_mode<synchronous>, transform_indices = @transform_3, window_bounds = array<i64: 2, 32, 128>}, {pipeline_mode = #tpu.pipeline_mode<synchronous>, transform_indices = @transform_4, window_bounds = array<i64: 2, 32, 128>}, {pipeline_mode = #tpu.pipeline_mode<synchronous>, transform_indices = @transform_5, window_bounds = array<i64: 2, 8, 128>}, {pipeline_mode = #tpu.pipeline_mode<synchronous>, transform_indices = @transform_6, window_bounds = array<i64: 2, 32>}, {transform_indices = @transform_7, window_bounds = array<i64: 8, 32>}]} {
    %0 = tpu.iota {dimensions = array<i32: 0>} : vector<8x8xi32>
    %1 = tpu.iota {dimensions = array<i32: 1>} : vector<8x8xi32>
    %2 = arith.cmpi sle, %1, %0 : vector<8x8xi32>
    %cst = arith.constant 0.000000e+00 : f32
    %cst_0 = arith.constant -1.000000e+30 : f32
    %3 = vector.broadcast %cst : f32 to vector<8x8xf32>
    %4 = vector.broadcast %cst_0 : f32 to vector<8x8xf32>
    %5 = arith.select %2, %3, %4 : vector<8x8xi1>, vector<8x8xf32>
    %c0 = arith.constant 0 : index
    %c0_1 = arith.constant 0 : index
    %6 = vector.load %arg1[%c0, %c0_1] : memref<8x32xf32, #tpu.memory_space<vmem>>, vector<8x32xf32>
    %c0_2 = arith.constant 0 : index
    %c0_3 = arith.constant 0 : index
    %c0_4 = arith.constant 0 : index
    %7 = vector.load %arg2[%c0_2, %c0_3, %c0_4] : memref<2x32x96xbf16, #tpu.memory_space<vmem>>, vector<1x32x96xbf16>
    %8 = vector.shape_cast %7 : vector<1x32x96xbf16> to vector<32x96xbf16>
    %c0_5 = arith.constant 0 : index
    %c0_6 = arith.constant 0 : index
    %c0_7 = arith.constant 0 : index
    %c0_8 = arith.constant 0 : index
    %9 = vector.load %arg3[%c0_5, %c0_6, %c0_7, %c0_8] : memref<2x4x8x32xbf16, #tpu.memory_space<vmem>>, vector<1x4x8x32xbf16>
    %10 = vector.shape_cast %9 : vector<1x4x8x32xbf16> to vector<4x8x32xbf16>
    %c0_9 = arith.constant 0 : index
    %c0_10 = arith.constant 0 : index
    %c0_11 = arith.constant 0 : index
    %11 = vector.load %arg4[%c0_9, %c0_10, %c0_11] : memref<2x32x128xbf16, #tpu.memory_space<vmem>>, vector<1x32x128xbf16>
    %12 = vector.shape_cast %11 : vector<1x32x128xbf16> to vector<32x128xbf16>
    %c0_12 = arith.constant 0 : index
    %c0_13 = arith.constant 0 : index
    %c0_14 = arith.constant 0 : index
    %13 = vector.load %arg5[%c0_12, %c0_13, %c0_14] : memref<2x32x128xbf16, #tpu.memory_space<vmem>>, vector<1x32x128xbf16>
    %14 = vector.shape_cast %13 : vector<1x32x128xbf16> to vector<32x128xbf16>
    %c0_15 = arith.constant 0 : index
    %c0_16 = arith.constant 0 : index
    %c0_17 = arith.constant 0 : index
    %15 = vector.load %arg6[%c0_15, %c0_16, %c0_17] : memref<2x8x128xf32, #tpu.memory_space<vmem>>, vector<1x8x128xf32>
    %16 = vector.shape_cast %15 : vector<1x8x128xf32> to vector<8x128xf32>
    %17 = vector.extract_strided_slice %16 {offsets = [0, 0], sizes = [1, 32], strides = [1, 1]} : vector<8x128xf32> to vector<1x32xf32>
    %18 = vector.shape_cast %17 : vector<1x32xf32> to vector<32xf32>
    %19 = vector.extract_strided_slice %16 {offsets = [1, 0], sizes = [1, 32], strides = [1, 1]} : vector<8x128xf32> to vector<1x32xf32>
    %20 = vector.shape_cast %19 : vector<1x32xf32> to vector<32xf32>
    %21 = vector.extract_strided_slice %16 {offsets = [2, 0], sizes = [1, 96], strides = [1, 1]} : vector<8x128xf32> to vector<1x96xf32>
    %22 = vector.shape_cast %21 : vector<1x96xf32> to vector<96xf32>
    %23 = vector.extract_strided_slice %16 {offsets = [3, 0], sizes = [1, 32], strides = [1, 1]} : vector<8x128xf32> to vector<1x32xf32>
    %24 = vector.shape_cast %23 : vector<1x32xf32> to vector<32xf32>
    %25 = vector.extract_strided_slice %16 {offsets = [4, 0], sizes = [1, 32], strides = [1, 1]} : vector<8x128xf32> to vector<1x32xf32>
    %26 = vector.shape_cast %25 : vector<1x32xf32> to vector<32xf32>
    %27 = vector.extract_strided_slice %16 {offsets = [5, 0], sizes = [1, 32], strides = [1, 1]} : vector<8x128xf32> to vector<1x32xf32>
    %28 = vector.shape_cast %27 : vector<1x32xf32> to vector<32xf32>
    %29 = vector.extract_strided_slice %16 {offsets = [6, 0], sizes = [1, 128], strides = [1, 1]} : vector<8x128xf32> to vector<1x128xf32>
    %30 = vector.shape_cast %29 : vector<1x128xf32> to vector<128xf32>
    %31 = vector.extract_strided_slice %16 {offsets = [7, 0], sizes = [1, 32], strides = [1, 1]} : vector<8x128xf32> to vector<1x32xf32>
    %32 = vector.shape_cast %31 : vector<1x32xf32> to vector<32xf32>
    %cst_18 = arith.constant dense<0.000000e+00> : vector<8xf32>
    %33 = vector.multi_reduction <add>, %6, %cst_18 [1] : vector<8x32xf32> to vector<8xf32>
    %34 = vector.shape_cast %33 : vector<8xf32> to vector<8x1xf32>
    %cst_19 = arith.constant 3.200000e+01 : f32
    %35 = vector.broadcast %cst_19 : f32 to vector<8x1xf32>
    %36 = arith.divf %34, %35 : vector<8x1xf32>
    %37 = vector.broadcast %36 : vector<8x1xf32> to vector<8x32xf32>
    %38 = arith.subf %6, %37 : vector<8x32xf32>
    %39 = arith.mulf %38, %38 : vector<8x32xf32>
    %cst_20 = arith.constant dense<0.000000e+00> : vector<8xf32>
    %40 = vector.multi_reduction <add>, %39, %cst_20 [1] : vector<8x32xf32> to vector<8xf32>
    %41 = vector.shape_cast %40 : vector<8xf32> to vector<8x1xf32>
    %cst_21 = arith.constant 3.200000e+01 : f32
    %42 = vector.broadcast %cst_21 : f32 to vector<8x1xf32>
    %43 = arith.divf %41, %42 : vector<8x1xf32>
    %44 = vector.broadcast %36 : vector<8x1xf32> to vector<8x32xf32>
    %45 = arith.subf %6, %44 : vector<8x32xf32>
    %cst_22 = arith.constant 9.99999974E-6 : f32
    %46 = vector.broadcast %cst_22 : f32 to vector<8x1xf32>
    %47 = arith.addf %43, %46 : vector<8x1xf32>
    %48 = math.rsqrt %47 : vector<8x1xf32>
    %49 = vector.broadcast %48 : vector<8x1xf32> to vector<8x32xf32>
    %50 = arith.mulf %45, %49 : vector<8x32xf32>
    %51 = vector.shape_cast %18 : vector<32xf32> to vector<1x32xf32>
    %52 = vector.broadcast %51 : vector<1x32xf32> to vector<8x32xf32>
    %53 = arith.mulf %50, %52 : vector<8x32xf32>
    %54 = vector.shape_cast %20 : vector<32xf32> to vector<1x32xf32>
    %55 = vector.broadcast %54 : vector<1x32xf32> to vector<8x32xf32>
    %56 = arith.addf %53, %55 : vector<8x32xf32>
    %57 = arith.truncf %56 : vector<8x32xf32> to vector<8x32xbf16>
    %cst_23 = arith.constant dense<0.000000e+00> : vector<8x96xf32>
    %58 = tpu.matmul %57, %8, %cst_23 {dimension_numbers = #tpu.dot_dimension_numbers<[1], [0], [0], [1], [0, 0, 1, 1], [], []>} : vector<8x32xbf16>, vector<32x96xbf16>, vector<8x96xf32> -> vector<8x96xf32>
    %59 = vector.shape_cast %22 : vector<96xf32> to vector<1x96xf32>
    %60 = vector.broadcast %59 : vector<1x96xf32> to vector<8x96xf32>
    %61 = arith.addf %58, %60 : vector<8x96xf32>
    %cst_24 = arith.constant 0.000000e+00 : f32
    %62 = vector.broadcast %cst_24 : f32 to vector<8x32xf32>
    %63 = vector.extract_strided_slice %61 {offsets = [0, 0], sizes = [8, 8], strides = [1, 1]} : vector<8x96xf32> to vector<8x8xf32>
    %64 = vector.extract_strided_slice %61 {offsets = [0, 32], sizes = [8, 8], strides = [1, 1]} : vector<8x96xf32> to vector<8x8xf32>
    %65 = vector.extract_strided_slice %61 {offsets = [0, 64], sizes = [8, 8], strides = [1, 1]} : vector<8x96xf32> to vector<8x8xf32>
    %66 = arith.truncf %63 : vector<8x8xf32> to vector<8x8xbf16>
    %67 = arith.truncf %64 : vector<8x8xf32> to vector<8x8xbf16>
    %cst_25 = arith.constant dense<0.000000e+00> : vector<8x8xf32>
    %68 = tpu.matmul %66, %67, %cst_25 {dimension_numbers = #tpu.dot_dimension_numbers<[1], [1], [0], [0], [0, 0, 1, 0], [], []>} : vector<8x8xbf16>, vector<8x8xbf16>, vector<8x8xf32> -> vector<8x8xf32>
    %cst_26 = arith.constant 0.353553385 : f32
    %69 = vector.broadcast %cst_26 : f32 to vector<8x8xf32>
    %70 = arith.mulf %68, %69 : vector<8x8xf32>
    %71 = arith.addf %70, %5 : vector<8x8xf32>
    %cst_27 = arith.constant dense<0xFF800000> : vector<8xf32>
    %72 = vector.multi_reduction <maximumf>, %71, %cst_27 [1] : vector<8x8xf32> to vector<8xf32>
    %73 = vector.shape_cast %72 : vector<8xf32> to vector<8x1xf32>
    %74 = vector.broadcast %73 : vector<8x1xf32> to vector<8x8xf32>
    %75 = arith.subf %71, %74 : vector<8x8xf32>
    %76 = math.exp %75 : vector<8x8xf32>
    %cst_28 = arith.constant dense<0.000000e+00> : vector<8xf32>
    %77 = vector.multi_reduction <add>, %76, %cst_28 [1] : vector<8x8xf32> to vector<8xf32>
    %78 = vector.shape_cast %77 : vector<8xf32> to vector<8x1xf32>
    %79 = tpu.reciprocal %78 {approx = true} : vector<8x1xf32> -> vector<8x1xf32>
    %80 = vector.broadcast %79 : vector<8x1xf32> to vector<8x8xf32>
    %81 = arith.mulf %76, %80 : vector<8x8xf32>
    %82 = arith.truncf %81 : vector<8x8xf32> to vector<8x8xbf16>
    %83 = arith.truncf %65 : vector<8x8xf32> to vector<8x8xbf16>
    %cst_29 = arith.constant dense<0.000000e+00> : vector<8x8xf32>
    %84 = tpu.matmul %82, %83, %cst_29 {dimension_numbers = #tpu.dot_dimension_numbers<[1], [0], [0], [1], [0, 0, 1, 1], [], []>} : vector<8x8xbf16>, vector<8x8xbf16>, vector<8x8xf32> -> vector<8x8xf32>
    %85 = arith.truncf %84 : vector<8x8xf32> to vector<8x8xbf16>
    %86 = vector.extract_strided_slice %10 {offsets = [0, 0, 0], sizes = [1, 8, 32], strides = [1, 1, 1]} : vector<4x8x32xbf16> to vector<1x8x32xbf16>
    %87 = vector.shape_cast %86 : vector<1x8x32xbf16> to vector<8x32xbf16>
    %cst_30 = arith.constant dense<0.000000e+00> : vector<8x32xf32>
    %88 = tpu.matmul %85, %87, %cst_30 {dimension_numbers = #tpu.dot_dimension_numbers<[1], [0], [0], [1], [0, 0, 1, 1], [], []>} : vector<8x8xbf16>, vector<8x32xbf16>, vector<8x32xf32> -> vector<8x32xf32>
    %89 = arith.addf %62, %88 : vector<8x32xf32>
    %90 = vector.extract_strided_slice %61 {offsets = [0, 8], sizes = [8, 8], strides = [1, 1]} : vector<8x96xf32> to vector<8x8xf32>
    %91 = vector.extract_strided_slice %61 {offsets = [0, 40], sizes = [8, 8], strides = [1, 1]} : vector<8x96xf32> to vector<8x8xf32>
    %92 = vector.extract_strided_slice %61 {offsets = [0, 72], sizes = [8, 8], strides = [1, 1]} : vector<8x96xf32> to vector<8x8xf32>
    %93 = arith.truncf %90 : vector<8x8xf32> to vector<8x8xbf16>
    %94 = arith.truncf %91 : vector<8x8xf32> to vector<8x8xbf16>
    %cst_31 = arith.constant dense<0.000000e+00> : vector<8x8xf32>
    %95 = tpu.matmul %93, %94, %cst_31 {dimension_numbers = #tpu.dot_dimension_numbers<[1], [1], [0], [0], [0, 0, 1, 0], [], []>} : vector<8x8xbf16>, vector<8x8xbf16>, vector<8x8xf32> -> vector<8x8xf32>
    %cst_32 = arith.constant 0.353553385 : f32
    %96 = vector.broadcast %cst_32 : f32 to vector<8x8xf32>
    %97 = arith.mulf %95, %96 : vector<8x8xf32>
    %98 = arith.addf %97, %5 : vector<8x8xf32>
    %cst_33 = arith.constant dense<0xFF800000> : vector<8xf32>
    %99 = vector.multi_reduction <maximumf>, %98, %cst_33 [1] : vector<8x8xf32> to vector<8xf32>
    %100 = vector.shape_cast %99 : vector<8xf32> to vector<8x1xf32>
    %101 = vector.broadcast %100 : vector<8x1xf32> to vector<8x8xf32>
    %102 = arith.subf %98, %101 : vector<8x8xf32>
    %103 = math.exp %102 : vector<8x8xf32>
    %cst_34 = arith.constant dense<0.000000e+00> : vector<8xf32>
    %104 = vector.multi_reduction <add>, %103, %cst_34 [1] : vector<8x8xf32> to vector<8xf32>
    %105 = vector.shape_cast %104 : vector<8xf32> to vector<8x1xf32>
    %106 = tpu.reciprocal %105 {approx = true} : vector<8x1xf32> -> vector<8x1xf32>
    %107 = vector.broadcast %106 : vector<8x1xf32> to vector<8x8xf32>
    %108 = arith.mulf %103, %107 : vector<8x8xf32>
    %109 = arith.truncf %108 : vector<8x8xf32> to vector<8x8xbf16>
    %110 = arith.truncf %92 : vector<8x8xf32> to vector<8x8xbf16>
    %cst_35 = arith.constant dense<0.000000e+00> : vector<8x8xf32>
    %111 = tpu.matmul %109, %110, %cst_35 {dimension_numbers = #tpu.dot_dimension_numbers<[1], [0], [0], [1], [0, 0, 1, 1], [], []>} : vector<8x8xbf16>, vector<8x8xbf16>, vector<8x8xf32> -> vector<8x8xf32>
    %112 = arith.truncf %111 : vector<8x8xf32> to vector<8x8xbf16>
    %113 = vector.extract_strided_slice %10 {offsets = [1, 0, 0], sizes = [1, 8, 32], strides = [1, 1, 1]} : vector<4x8x32xbf16> to vector<1x8x32xbf16>
    %114 = vector.shape_cast %113 : vector<1x8x32xbf16> to vector<8x32xbf16>
    %cst_36 = arith.constant dense<0.000000e+00> : vector<8x32xf32>
    %115 = tpu.matmul %112, %114, %cst_36 {dimension_numbers = #tpu.dot_dimension_numbers<[1], [0], [0], [1], [0, 0, 1, 1], [], []>} : vector<8x8xbf16>, vector<8x32xbf16>, vector<8x32xf32> -> vector<8x32xf32>
    %116 = arith.addf %89, %115 : vector<8x32xf32>
    %117 = vector.extract_strided_slice %61 {offsets = [0, 16], sizes = [8, 8], strides = [1, 1]} : vector<8x96xf32> to vector<8x8xf32>
    %118 = vector.extract_strided_slice %61 {offsets = [0, 48], sizes = [8, 8], strides = [1, 1]} : vector<8x96xf32> to vector<8x8xf32>
    %119 = vector.extract_strided_slice %61 {offsets = [0, 80], sizes = [8, 8], strides = [1, 1]} : vector<8x96xf32> to vector<8x8xf32>
    %120 = arith.truncf %117 : vector<8x8xf32> to vector<8x8xbf16>
    %121 = arith.truncf %118 : vector<8x8xf32> to vector<8x8xbf16>
    %cst_37 = arith.constant dense<0.000000e+00> : vector<8x8xf32>
    %122 = tpu.matmul %120, %121, %cst_37 {dimension_numbers = #tpu.dot_dimension_numbers<[1], [1], [0], [0], [0, 0, 1, 0], [], []>} : vector<8x8xbf16>, vector<8x8xbf16>, vector<8x8xf32> -> vector<8x8xf32>
    %cst_38 = arith.constant 0.353553385 : f32
    %123 = vector.broadcast %cst_38 : f32 to vector<8x8xf32>
    %124 = arith.mulf %122, %123 : vector<8x8xf32>
    %125 = arith.addf %124, %5 : vector<8x8xf32>
    %cst_39 = arith.constant dense<0xFF800000> : vector<8xf32>
    %126 = vector.multi_reduction <maximumf>, %125, %cst_39 [1] : vector<8x8xf32> to vector<8xf32>
    %127 = vector.shape_cast %126 : vector<8xf32> to vector<8x1xf32>
    %128 = vector.broadcast %127 : vector<8x1xf32> to vector<8x8xf32>
    %129 = arith.subf %125, %128 : vector<8x8xf32>
    %130 = math.exp %129 : vector<8x8xf32>
    %cst_40 = arith.constant dense<0.000000e+00> : vector<8xf32>
    %131 = vector.multi_reduction <add>, %130, %cst_40 [1] : vector<8x8xf32> to vector<8xf32>
    %132 = vector.shape_cast %131 : vector<8xf32> to vector<8x1xf32>
    %133 = tpu.reciprocal %132 {approx = true} : vector<8x1xf32> -> vector<8x1xf32>
    %134 = vector.broadcast %133 : vector<8x1xf32> to vector<8x8xf32>
    %135 = arith.mulf %130, %134 : vector<8x8xf32>
    %136 = arith.truncf %135 : vector<8x8xf32> to vector<8x8xbf16>
    %137 = arith.truncf %119 : vector<8x8xf32> to vector<8x8xbf16>
    %cst_41 = arith.constant dense<0.000000e+00> : vector<8x8xf32>
    %138 = tpu.matmul %136, %137, %cst_41 {dimension_numbers = #tpu.dot_dimension_numbers<[1], [0], [0], [1], [0, 0, 1, 1], [], []>} : vector<8x8xbf16>, vector<8x8xbf16>, vector<8x8xf32> -> vector<8x8xf32>
    %139 = arith.truncf %138 : vector<8x8xf32> to vector<8x8xbf16>
    %140 = vector.extract_strided_slice %10 {offsets = [2, 0, 0], sizes = [1, 8, 32], strides = [1, 1, 1]} : vector<4x8x32xbf16> to vector<1x8x32xbf16>
    %141 = vector.shape_cast %140 : vector<1x8x32xbf16> to vector<8x32xbf16>
    %cst_42 = arith.constant dense<0.000000e+00> : vector<8x32xf32>
    %142 = tpu.matmul %139, %141, %cst_42 {dimension_numbers = #tpu.dot_dimension_numbers<[1], [0], [0], [1], [0, 0, 1, 1], [], []>} : vector<8x8xbf16>, vector<8x32xbf16>, vector<8x32xf32> -> vector<8x32xf32>
    %143 = arith.addf %116, %142 : vector<8x32xf32>
    %144 = vector.extract_strided_slice %61 {offsets = [0, 24], sizes = [8, 8], strides = [1, 1]} : vector<8x96xf32> to vector<8x8xf32>
    %145 = vector.extract_strided_slice %61 {offsets = [0, 56], sizes = [8, 8], strides = [1, 1]} : vector<8x96xf32> to vector<8x8xf32>
    %146 = vector.extract_strided_slice %61 {offsets = [0, 88], sizes = [8, 8], strides = [1, 1]} : vector<8x96xf32> to vector<8x8xf32>
    %147 = arith.truncf %144 : vector<8x8xf32> to vector<8x8xbf16>
    %148 = arith.truncf %145 : vector<8x8xf32> to vector<8x8xbf16>
    %cst_43 = arith.constant dense<0.000000e+00> : vector<8x8xf32>
    %149 = tpu.matmul %147, %148, %cst_43 {dimension_numbers = #tpu.dot_dimension_numbers<[1], [1], [0], [0], [0, 0, 1, 0], [], []>} : vector<8x8xbf16>, vector<8x8xbf16>, vector<8x8xf32> -> vector<8x8xf32>
    %cst_44 = arith.constant 0.353553385 : f32
    %150 = vector.broadcast %cst_44 : f32 to vector<8x8xf32>
    %151 = arith.mulf %149, %150 : vector<8x8xf32>
    %152 = arith.addf %151, %5 : vector<8x8xf32>
    %cst_45 = arith.constant dense<0xFF800000> : vector<8xf32>
    %153 = vector.multi_reduction <maximumf>, %152, %cst_45 [1] : vector<8x8xf32> to vector<8xf32>
    %154 = vector.shape_cast %153 : vector<8xf32> to vector<8x1xf32>
    %155 = vector.broadcast %154 : vector<8x1xf32> to vector<8x8xf32>
    %156 = arith.subf %152, %155 : vector<8x8xf32>
    %157 = math.exp %156 : vector<8x8xf32>
    %cst_46 = arith.constant dense<0.000000e+00> : vector<8xf32>
    %158 = vector.multi_reduction <add>, %157, %cst_46 [1] : vector<8x8xf32> to vector<8xf32>
    %159 = vector.shape_cast %158 : vector<8xf32> to vector<8x1xf32>
    %160 = tpu.reciprocal %159 {approx = true} : vector<8x1xf32> -> vector<8x1xf32>
    %161 = vector.broadcast %160 : vector<8x1xf32> to vector<8x8xf32>
    %162 = arith.mulf %157, %161 : vector<8x8xf32>
    %163 = arith.truncf %162 : vector<8x8xf32> to vector<8x8xbf16>
    %164 = arith.truncf %146 : vector<8x8xf32> to vector<8x8xbf16>
    %cst_47 = arith.constant dense<0.000000e+00> : vector<8x8xf32>
    %165 = tpu.matmul %163, %164, %cst_47 {dimension_numbers = #tpu.dot_dimension_numbers<[1], [0], [0], [1], [0, 0, 1, 1], [], []>} : vector<8x8xbf16>, vector<8x8xbf16>, vector<8x8xf32> -> vector<8x8xf32>
    %166 = arith.truncf %165 : vector<8x8xf32> to vector<8x8xbf16>
    %167 = vector.extract_strided_slice %10 {offsets = [3, 0, 0], sizes = [1, 8, 32], strides = [1, 1, 1]} : vector<4x8x32xbf16> to vector<1x8x32xbf16>
    %168 = vector.shape_cast %167 : vector<1x8x32xbf16> to vector<8x32xbf16>
    %cst_48 = arith.constant dense<0.000000e+00> : vector<8x32xf32>
    %169 = tpu.matmul %166, %168, %cst_48 {dimension_numbers = #tpu.dot_dimension_numbers<[1], [0], [0], [1], [0, 0, 1, 1], [], []>} : vector<8x8xbf16>, vector<8x32xbf16>, vector<8x32xf32> -> vector<8x32xf32>
    %170 = arith.addf %143, %169 : vector<8x32xf32>
    %171 = arith.addf %6, %170 : vector<8x32xf32>
    %172 = vector.shape_cast %24 : vector<32xf32> to vector<1x32xf32>
    %173 = vector.broadcast %172 : vector<1x32xf32> to vector<8x32xf32>
    %174 = arith.addf %171, %173 : vector<8x32xf32>
    %cst_49 = arith.constant dense<0.000000e+00> : vector<8xf32>
    %175 = vector.multi_reduction <add>, %174, %cst_49 [1] : vector<8x32xf32> to vector<8xf32>
    %176 = vector.shape_cast %175 : vector<8xf32> to vector<8x1xf32>
    %cst_50 = arith.constant 3.200000e+01 : f32
    %177 = vector.broadcast %cst_50 : f32 to vector<8x1xf32>
    %178 = arith.divf %176, %177 : vector<8x1xf32>
    %179 = vector.broadcast %178 : vector<8x1xf32> to vector<8x32xf32>
    %180 = arith.subf %174, %179 : vector<8x32xf32>
    %181 = arith.mulf %180, %180 : vector<8x32xf32>
    %cst_51 = arith.constant dense<0.000000e+00> : vector<8xf32>
    %182 = vector.multi_reduction <add>, %181, %cst_51 [1] : vector<8x32xf32> to vector<8xf32>
    %183 = vector.shape_cast %182 : vector<8xf32> to vector<8x1xf32>
    %cst_52 = arith.constant 3.200000e+01 : f32
    %184 = vector.broadcast %cst_52 : f32 to vector<8x1xf32>
    %185 = arith.divf %183, %184 : vector<8x1xf32>
    %186 = vector.broadcast %178 : vector<8x1xf32> to vector<8x32xf32>
    %187 = arith.subf %174, %186 : vector<8x32xf32>
    %cst_53 = arith.constant 9.99999974E-6 : f32
    %188 = vector.broadcast %cst_53 : f32 to vector<8x1xf32>
    %189 = arith.addf %185, %188 : vector<8x1xf32>
    %190 = math.rsqrt %189 : vector<8x1xf32>
    %191 = vector.broadcast %190 : vector<8x1xf32> to vector<8x32xf32>
    %192 = arith.mulf %187, %191 : vector<8x32xf32>
    %193 = vector.shape_cast %26 : vector<32xf32> to vector<1x32xf32>
    %194 = vector.broadcast %193 : vector<1x32xf32> to vector<8x32xf32>
    %195 = arith.mulf %192, %194 : vector<8x32xf32>
    %196 = vector.shape_cast %28 : vector<32xf32> to vector<1x32xf32>
    %197 = vector.broadcast %196 : vector<1x32xf32> to vector<8x32xf32>
    %198 = arith.addf %195, %197 : vector<8x32xf32>
    %199 = arith.truncf %198 : vector<8x32xf32> to vector<8x32xbf16>
    %cst_54 = arith.constant dense<0.000000e+00> : vector<8x128xf32>
    %200 = tpu.matmul %199, %12, %cst_54 {dimension_numbers = #tpu.dot_dimension_numbers<[1], [0], [0], [1], [0, 0, 1, 1], [], []>} : vector<8x32xbf16>, vector<32x128xbf16>, vector<8x128xf32> -> vector<8x128xf32>
    %201 = vector.shape_cast %30 : vector<128xf32> to vector<1x128xf32>
    %202 = vector.broadcast %201 : vector<1x128xf32> to vector<8x128xf32>
    %203 = arith.addf %200, %202 : vector<8x128xf32>
    %204 = arith.mulf %203, %203 : vector<8x128xf32>
    %205 = arith.mulf %203, %204 : vector<8x128xf32>
    %cst_55 = arith.constant 4.471500e-02 : f32
    %206 = vector.broadcast %cst_55 : f32 to vector<8x128xf32>
    %207 = arith.mulf %206, %205 : vector<8x128xf32>
    %208 = arith.addf %203, %207 : vector<8x128xf32>
    %cst_56 = arith.constant 0.797884583 : f32
    %209 = vector.broadcast %cst_56 : f32 to vector<8x128xf32>
    %210 = arith.mulf %209, %208 : vector<8x128xf32>
    %211 = math.tanh %210 : vector<8x128xf32>
    %cst_57 = arith.constant 1.000000e+00 : f32
    %212 = vector.broadcast %cst_57 : f32 to vector<8x128xf32>
    %213 = arith.addf %212, %211 : vector<8x128xf32>
    %cst_58 = arith.constant 5.000000e-01 : f32
    %214 = vector.broadcast %cst_58 : f32 to vector<8x128xf32>
    %215 = arith.mulf %214, %213 : vector<8x128xf32>
    %216 = arith.mulf %203, %215 : vector<8x128xf32>
    %217 = arith.truncf %216 : vector<8x128xf32> to vector<8x128xbf16>
    %cst_59 = arith.constant dense<0.000000e+00> : vector<8x32xf32>
    %218 = tpu.matmul %217, %14, %cst_59 {dimension_numbers = #tpu.dot_dimension_numbers<[1], [1], [0], [0], [0, 0, 1, 0], [], []>} : vector<8x128xbf16>, vector<32x128xbf16>, vector<8x32xf32> -> vector<8x32xf32>
    %219 = vector.shape_cast %32 : vector<32xf32> to vector<1x32xf32>
    %220 = vector.broadcast %219 : vector<1x32xf32> to vector<8x32xf32>
    %221 = arith.addf %218, %220 : vector<8x32xf32>
    %222 = arith.addf %174, %221 : vector<8x32xf32>
    %c1 = arith.constant 1 : index
    %c0_60 = arith.constant 0 : index
    %c0_61 = arith.constant 0 : index
    %223 = vector.load %arg2[%c1, %c0_60, %c0_61] : memref<2x32x96xbf16, #tpu.memory_space<vmem>>, vector<1x32x96xbf16>
    %224 = vector.shape_cast %223 : vector<1x32x96xbf16> to vector<32x96xbf16>
    %c1_62 = arith.constant 1 : index
    %c0_63 = arith.constant 0 : index
    %c0_64 = arith.constant 0 : index
    %c0_65 = arith.constant 0 : index
    %225 = vector.load %arg3[%c1_62, %c0_63, %c0_64, %c0_65] : memref<2x4x8x32xbf16, #tpu.memory_space<vmem>>, vector<1x4x8x32xbf16>
    %226 = vector.shape_cast %225 : vector<1x4x8x32xbf16> to vector<4x8x32xbf16>
    %c1_66 = arith.constant 1 : index
    %c0_67 = arith.constant 0 : index
    %c0_68 = arith.constant 0 : index
    %227 = vector.load %arg4[%c1_66, %c0_67, %c0_68] : memref<2x32x128xbf16, #tpu.memory_space<vmem>>, vector<1x32x128xbf16>
    %228 = vector.shape_cast %227 : vector<1x32x128xbf16> to vector<32x128xbf16>
    %c1_69 = arith.constant 1 : index
    %c0_70 = arith.constant 0 : index
    %c0_71 = arith.constant 0 : index
    %229 = vector.load %arg5[%c1_69, %c0_70, %c0_71] : memref<2x32x128xbf16, #tpu.memory_space<vmem>>, vector<1x32x128xbf16>
    %230 = vector.shape_cast %229 : vector<1x32x128xbf16> to vector<32x128xbf16>
    %c1_72 = arith.constant 1 : index
    %c0_73 = arith.constant 0 : index
    %c0_74 = arith.constant 0 : index
    %231 = vector.load %arg6[%c1_72, %c0_73, %c0_74] : memref<2x8x128xf32, #tpu.memory_space<vmem>>, vector<1x8x128xf32>
    %232 = vector.shape_cast %231 : vector<1x8x128xf32> to vector<8x128xf32>
    %233 = vector.extract_strided_slice %232 {offsets = [0, 0], sizes = [1, 32], strides = [1, 1]} : vector<8x128xf32> to vector<1x32xf32>
    %234 = vector.shape_cast %233 : vector<1x32xf32> to vector<32xf32>
    %235 = vector.extract_strided_slice %232 {offsets = [1, 0], sizes = [1, 32], strides = [1, 1]} : vector<8x128xf32> to vector<1x32xf32>
    %236 = vector.shape_cast %235 : vector<1x32xf32> to vector<32xf32>
    %237 = vector.extract_strided_slice %232 {offsets = [2, 0], sizes = [1, 96], strides = [1, 1]} : vector<8x128xf32> to vector<1x96xf32>
    %238 = vector.shape_cast %237 : vector<1x96xf32> to vector<96xf32>
    %239 = vector.extract_strided_slice %232 {offsets = [3, 0], sizes = [1, 32], strides = [1, 1]} : vector<8x128xf32> to vector<1x32xf32>
    %240 = vector.shape_cast %239 : vector<1x32xf32> to vector<32xf32>
    %241 = vector.extract_strided_slice %232 {offsets = [4, 0], sizes = [1, 32], strides = [1, 1]} : vector<8x128xf32> to vector<1x32xf32>
    %242 = vector.shape_cast %241 : vector<1x32xf32> to vector<32xf32>
    %243 = vector.extract_strided_slice %232 {offsets = [5, 0], sizes = [1, 32], strides = [1, 1]} : vector<8x128xf32> to vector<1x32xf32>
    %244 = vector.shape_cast %243 : vector<1x32xf32> to vector<32xf32>
    %245 = vector.extract_strided_slice %232 {offsets = [6, 0], sizes = [1, 128], strides = [1, 1]} : vector<8x128xf32> to vector<1x128xf32>
    %246 = vector.shape_cast %245 : vector<1x128xf32> to vector<128xf32>
    %247 = vector.extract_strided_slice %232 {offsets = [7, 0], sizes = [1, 32], strides = [1, 1]} : vector<8x128xf32> to vector<1x32xf32>
    %248 = vector.shape_cast %247 : vector<1x32xf32> to vector<32xf32>
    %cst_75 = arith.constant dense<0.000000e+00> : vector<8xf32>
    %249 = vector.multi_reduction <add>, %222, %cst_75 [1] : vector<8x32xf32> to vector<8xf32>
    %250 = vector.shape_cast %249 : vector<8xf32> to vector<8x1xf32>
    %cst_76 = arith.constant 3.200000e+01 : f32
    %251 = vector.broadcast %cst_76 : f32 to vector<8x1xf32>
    %252 = arith.divf %250, %251 : vector<8x1xf32>
    %253 = vector.broadcast %252 : vector<8x1xf32> to vector<8x32xf32>
    %254 = arith.subf %222, %253 : vector<8x32xf32>
    %255 = arith.mulf %254, %254 : vector<8x32xf32>
    %cst_77 = arith.constant dense<0.000000e+00> : vector<8xf32>
    %256 = vector.multi_reduction <add>, %255, %cst_77 [1] : vector<8x32xf32> to vector<8xf32>
    %257 = vector.shape_cast %256 : vector<8xf32> to vector<8x1xf32>
    %cst_78 = arith.constant 3.200000e+01 : f32
    %258 = vector.broadcast %cst_78 : f32 to vector<8x1xf32>
    %259 = arith.divf %257, %258 : vector<8x1xf32>
    %260 = vector.broadcast %252 : vector<8x1xf32> to vector<8x32xf32>
    %261 = arith.subf %222, %260 : vector<8x32xf32>
    %cst_79 = arith.constant 9.99999974E-6 : f32
    %262 = vector.broadcast %cst_79 : f32 to vector<8x1xf32>
    %263 = arith.addf %259, %262 : vector<8x1xf32>
    %264 = math.rsqrt %263 : vector<8x1xf32>
    %265 = vector.broadcast %264 : vector<8x1xf32> to vector<8x32xf32>
    %266 = arith.mulf %261, %265 : vector<8x32xf32>
    %267 = vector.shape_cast %234 : vector<32xf32> to vector<1x32xf32>
    %268 = vector.broadcast %267 : vector<1x32xf32> to vector<8x32xf32>
    %269 = arith.mulf %266, %268 : vector<8x32xf32>
    %270 = vector.shape_cast %236 : vector<32xf32> to vector<1x32xf32>
    %271 = vector.broadcast %270 : vector<1x32xf32> to vector<8x32xf32>
    %272 = arith.addf %269, %271 : vector<8x32xf32>
    %273 = arith.truncf %272 : vector<8x32xf32> to vector<8x32xbf16>
    %cst_80 = arith.constant dense<0.000000e+00> : vector<8x96xf32>
    %274 = tpu.matmul %273, %224, %cst_80 {dimension_numbers = #tpu.dot_dimension_numbers<[1], [0], [0], [1], [0, 0, 1, 1], [], []>} : vector<8x32xbf16>, vector<32x96xbf16>, vector<8x96xf32> -> vector<8x96xf32>
    %275 = vector.shape_cast %238 : vector<96xf32> to vector<1x96xf32>
    %276 = vector.broadcast %275 : vector<1x96xf32> to vector<8x96xf32>
    %277 = arith.addf %274, %276 : vector<8x96xf32>
    %cst_81 = arith.constant 0.000000e+00 : f32
    %278 = vector.broadcast %cst_81 : f32 to vector<8x32xf32>
    %279 = vector.extract_strided_slice %277 {offsets = [0, 0], sizes = [8, 8], strides = [1, 1]} : vector<8x96xf32> to vector<8x8xf32>
    %280 = vector.extract_strided_slice %277 {offsets = [0, 32], sizes = [8, 8], strides = [1, 1]} : vector<8x96xf32> to vector<8x8xf32>
    %281 = vector.extract_strided_slice %277 {offsets = [0, 64], sizes = [8, 8], strides = [1, 1]} : vector<8x96xf32> to vector<8x8xf32>
    %282 = arith.truncf %279 : vector<8x8xf32> to vector<8x8xbf16>
    %283 = arith.truncf %280 : vector<8x8xf32> to vector<8x8xbf16>
    %cst_82 = arith.constant dense<0.000000e+00> : vector<8x8xf32>
    %284 = tpu.matmul %282, %283, %cst_82 {dimension_numbers = #tpu.dot_dimension_numbers<[1], [1], [0], [0], [0, 0, 1, 0], [], []>} : vector<8x8xbf16>, vector<8x8xbf16>, vector<8x8xf32> -> vector<8x8xf32>
    %cst_83 = arith.constant 0.353553385 : f32
    %285 = vector.broadcast %cst_83 : f32 to vector<8x8xf32>
    %286 = arith.mulf %284, %285 : vector<8x8xf32>
    %287 = arith.addf %286, %5 : vector<8x8xf32>
    %cst_84 = arith.constant dense<0xFF800000> : vector<8xf32>
    %288 = vector.multi_reduction <maximumf>, %287, %cst_84 [1] : vector<8x8xf32> to vector<8xf32>
    %289 = vector.shape_cast %288 : vector<8xf32> to vector<8x1xf32>
    %290 = vector.broadcast %289 : vector<8x1xf32> to vector<8x8xf32>
    %291 = arith.subf %287, %290 : vector<8x8xf32>
    %292 = math.exp %291 : vector<8x8xf32>
    %cst_85 = arith.constant dense<0.000000e+00> : vector<8xf32>
    %293 = vector.multi_reduction <add>, %292, %cst_85 [1] : vector<8x8xf32> to vector<8xf32>
    %294 = vector.shape_cast %293 : vector<8xf32> to vector<8x1xf32>
    %295 = tpu.reciprocal %294 {approx = true} : vector<8x1xf32> -> vector<8x1xf32>
    %296 = vector.broadcast %295 : vector<8x1xf32> to vector<8x8xf32>
    %297 = arith.mulf %292, %296 : vector<8x8xf32>
    %298 = arith.truncf %297 : vector<8x8xf32> to vector<8x8xbf16>
    %299 = arith.truncf %281 : vector<8x8xf32> to vector<8x8xbf16>
    %cst_86 = arith.constant dense<0.000000e+00> : vector<8x8xf32>
    %300 = tpu.matmul %298, %299, %cst_86 {dimension_numbers = #tpu.dot_dimension_numbers<[1], [0], [0], [1], [0, 0, 1, 1], [], []>} : vector<8x8xbf16>, vector<8x8xbf16>, vector<8x8xf32> -> vector<8x8xf32>
    %301 = arith.truncf %300 : vector<8x8xf32> to vector<8x8xbf16>
    %302 = vector.extract_strided_slice %226 {offsets = [0, 0, 0], sizes = [1, 8, 32], strides = [1, 1, 1]} : vector<4x8x32xbf16> to vector<1x8x32xbf16>
    %303 = vector.shape_cast %302 : vector<1x8x32xbf16> to vector<8x32xbf16>
    %cst_87 = arith.constant dense<0.000000e+00> : vector<8x32xf32>
    %304 = tpu.matmul %301, %303, %cst_87 {dimension_numbers = #tpu.dot_dimension_numbers<[1], [0], [0], [1], [0, 0, 1, 1], [], []>} : vector<8x8xbf16>, vector<8x32xbf16>, vector<8x32xf32> -> vector<8x32xf32>
    %305 = arith.addf %278, %304 : vector<8x32xf32>
    %306 = vector.extract_strided_slice %277 {offsets = [0, 8], sizes = [8, 8], strides = [1, 1]} : vector<8x96xf32> to vector<8x8xf32>
    %307 = vector.extract_strided_slice %277 {offsets = [0, 40], sizes = [8, 8], strides = [1, 1]} : vector<8x96xf32> to vector<8x8xf32>
    %308 = vector.extract_strided_slice %277 {offsets = [0, 72], sizes = [8, 8], strides = [1, 1]} : vector<8x96xf32> to vector<8x8xf32>
    %309 = arith.truncf %306 : vector<8x8xf32> to vector<8x8xbf16>
    %310 = arith.truncf %307 : vector<8x8xf32> to vector<8x8xbf16>
    %cst_88 = arith.constant dense<0.000000e+00> : vector<8x8xf32>
    %311 = tpu.matmul %309, %310, %cst_88 {dimension_numbers = #tpu.dot_dimension_numbers<[1], [1], [0], [0], [0, 0, 1, 0], [], []>} : vector<8x8xbf16>, vector<8x8xbf16>, vector<8x8xf32> -> vector<8x8xf32>
    %cst_89 = arith.constant 0.353553385 : f32
    %312 = vector.broadcast %cst_89 : f32 to vector<8x8xf32>
    %313 = arith.mulf %311, %312 : vector<8x8xf32>
    %314 = arith.addf %313, %5 : vector<8x8xf32>
    %cst_90 = arith.constant dense<0xFF800000> : vector<8xf32>
    %315 = vector.multi_reduction <maximumf>, %314, %cst_90 [1] : vector<8x8xf32> to vector<8xf32>
    %316 = vector.shape_cast %315 : vector<8xf32> to vector<8x1xf32>
    %317 = vector.broadcast %316 : vector<8x1xf32> to vector<8x8xf32>
    %318 = arith.subf %314, %317 : vector<8x8xf32>
    %319 = math.exp %318 : vector<8x8xf32>
    %cst_91 = arith.constant dense<0.000000e+00> : vector<8xf32>
    %320 = vector.multi_reduction <add>, %319, %cst_91 [1] : vector<8x8xf32> to vector<8xf32>
    %321 = vector.shape_cast %320 : vector<8xf32> to vector<8x1xf32>
    %322 = tpu.reciprocal %321 {approx = true} : vector<8x1xf32> -> vector<8x1xf32>
    %323 = vector.broadcast %322 : vector<8x1xf32> to vector<8x8xf32>
    %324 = arith.mulf %319, %323 : vector<8x8xf32>
    %325 = arith.truncf %324 : vector<8x8xf32> to vector<8x8xbf16>
    %326 = arith.truncf %308 : vector<8x8xf32> to vector<8x8xbf16>
    %cst_92 = arith.constant dense<0.000000e+00> : vector<8x8xf32>
    %327 = tpu.matmul %325, %326, %cst_92 {dimension_numbers = #tpu.dot_dimension_numbers<[1], [0], [0], [1], [0, 0, 1, 1], [], []>} : vector<8x8xbf16>, vector<8x8xbf16>, vector<8x8xf32> -> vector<8x8xf32>
    %328 = arith.truncf %327 : vector<8x8xf32> to vector<8x8xbf16>
    %329 = vector.extract_strided_slice %226 {offsets = [1, 0, 0], sizes = [1, 8, 32], strides = [1, 1, 1]} : vector<4x8x32xbf16> to vector<1x8x32xbf16>
    %330 = vector.shape_cast %329 : vector<1x8x32xbf16> to vector<8x32xbf16>
    %cst_93 = arith.constant dense<0.000000e+00> : vector<8x32xf32>
    %331 = tpu.matmul %328, %330, %cst_93 {dimension_numbers = #tpu.dot_dimension_numbers<[1], [0], [0], [1], [0, 0, 1, 1], [], []>} : vector<8x8xbf16>, vector<8x32xbf16>, vector<8x32xf32> -> vector<8x32xf32>
    %332 = arith.addf %305, %331 : vector<8x32xf32>
    %333 = vector.extract_strided_slice %277 {offsets = [0, 16], sizes = [8, 8], strides = [1, 1]} : vector<8x96xf32> to vector<8x8xf32>
    %334 = vector.extract_strided_slice %277 {offsets = [0, 48], sizes = [8, 8], strides = [1, 1]} : vector<8x96xf32> to vector<8x8xf32>
    %335 = vector.extract_strided_slice %277 {offsets = [0, 80], sizes = [8, 8], strides = [1, 1]} : vector<8x96xf32> to vector<8x8xf32>
    %336 = arith.truncf %333 : vector<8x8xf32> to vector<8x8xbf16>
    %337 = arith.truncf %334 : vector<8x8xf32> to vector<8x8xbf16>
    %cst_94 = arith.constant dense<0.000000e+00> : vector<8x8xf32>
    %338 = tpu.matmul %336, %337, %cst_94 {dimension_numbers = #tpu.dot_dimension_numbers<[1], [1], [0], [0], [0, 0, 1, 0], [], []>} : vector<8x8xbf16>, vector<8x8xbf16>, vector<8x8xf32> -> vector<8x8xf32>
    %cst_95 = arith.constant 0.353553385 : f32
    %339 = vector.broadcast %cst_95 : f32 to vector<8x8xf32>
    %340 = arith.mulf %338, %339 : vector<8x8xf32>
    %341 = arith.addf %340, %5 : vector<8x8xf32>
    %cst_96 = arith.constant dense<0xFF800000> : vector<8xf32>
    %342 = vector.multi_reduction <maximumf>, %341, %cst_96 [1] : vector<8x8xf32> to vector<8xf32>
    %343 = vector.shape_cast %342 : vector<8xf32> to vector<8x1xf32>
    %344 = vector.broadcast %343 : vector<8x1xf32> to vector<8x8xf32>
    %345 = arith.subf %341, %344 : vector<8x8xf32>
    %346 = math.exp %345 : vector<8x8xf32>
    %cst_97 = arith.constant dense<0.000000e+00> : vector<8xf32>
    %347 = vector.multi_reduction <add>, %346, %cst_97 [1] : vector<8x8xf32> to vector<8xf32>
    %348 = vector.shape_cast %347 : vector<8xf32> to vector<8x1xf32>
    %349 = tpu.reciprocal %348 {approx = true} : vector<8x1xf32> -> vector<8x1xf32>
    %350 = vector.broadcast %349 : vector<8x1xf32> to vector<8x8xf32>
    %351 = arith.mulf %346, %350 : vector<8x8xf32>
    %352 = arith.truncf %351 : vector<8x8xf32> to vector<8x8xbf16>
    %353 = arith.truncf %335 : vector<8x8xf32> to vector<8x8xbf16>
    %cst_98 = arith.constant dense<0.000000e+00> : vector<8x8xf32>
    %354 = tpu.matmul %352, %353, %cst_98 {dimension_numbers = #tpu.dot_dimension_numbers<[1], [0], [0], [1], [0, 0, 1, 1], [], []>} : vector<8x8xbf16>, vector<8x8xbf16>, vector<8x8xf32> -> vector<8x8xf32>
    %355 = arith.truncf %354 : vector<8x8xf32> to vector<8x8xbf16>
    %356 = vector.extract_strided_slice %226 {offsets = [2, 0, 0], sizes = [1, 8, 32], strides = [1, 1, 1]} : vector<4x8x32xbf16> to vector<1x8x32xbf16>
    %357 = vector.shape_cast %356 : vector<1x8x32xbf16> to vector<8x32xbf16>
    %cst_99 = arith.constant dense<0.000000e+00> : vector<8x32xf32>
    %358 = tpu.matmul %355, %357, %cst_99 {dimension_numbers = #tpu.dot_dimension_numbers<[1], [0], [0], [1], [0, 0, 1, 1], [], []>} : vector<8x8xbf16>, vector<8x32xbf16>, vector<8x32xf32> -> vector<8x32xf32>
    %359 = arith.addf %332, %358 : vector<8x32xf32>
    %360 = vector.extract_strided_slice %277 {offsets = [0, 24], sizes = [8, 8], strides = [1, 1]} : vector<8x96xf32> to vector<8x8xf32>
    %361 = vector.extract_strided_slice %277 {offsets = [0, 56], sizes = [8, 8], strides = [1, 1]} : vector<8x96xf32> to vector<8x8xf32>
    %362 = vector.extract_strided_slice %277 {offsets = [0, 88], sizes = [8, 8], strides = [1, 1]} : vector<8x96xf32> to vector<8x8xf32>
    %363 = arith.truncf %360 : vector<8x8xf32> to vector<8x8xbf16>
    %364 = arith.truncf %361 : vector<8x8xf32> to vector<8x8xbf16>
    %cst_100 = arith.constant dense<0.000000e+00> : vector<8x8xf32>
    %365 = tpu.matmul %363, %364, %cst_100 {dimension_numbers = #tpu.dot_dimension_numbers<[1], [1], [0], [0], [0, 0, 1, 0], [], []>} : vector<8x8xbf16>, vector<8x8xbf16>, vector<8x8xf32> -> vector<8x8xf32>
    %cst_101 = arith.constant 0.353553385 : f32
    %366 = vector.broadcast %cst_101 : f32 to vector<8x8xf32>
    %367 = arith.mulf %365, %366 : vector<8x8xf32>
    %368 = arith.addf %367, %5 : vector<8x8xf32>
    %cst_102 = arith.constant dense<0xFF800000> : vector<8xf32>
    %369 = vector.multi_reduction <maximumf>, %368, %cst_102 [1] : vector<8x8xf32> to vector<8xf32>
    %370 = vector.shape_cast %369 : vector<8xf32> to vector<8x1xf32>
    %371 = vector.broadcast %370 : vector<8x1xf32> to vector<8x8xf32>
    %372 = arith.subf %368, %371 : vector<8x8xf32>
    %373 = math.exp %372 : vector<8x8xf32>
    %cst_103 = arith.constant dense<0.000000e+00> : vector<8xf32>
    %374 = vector.multi_reduction <add>, %373, %cst_103 [1] : vector<8x8xf32> to vector<8xf32>
    %375 = vector.shape_cast %374 : vector<8xf32> to vector<8x1xf32>
    %376 = tpu.reciprocal %375 {approx = true} : vector<8x1xf32> -> vector<8x1xf32>
    %377 = vector.broadcast %376 : vector<8x1xf32> to vector<8x8xf32>
    %378 = arith.mulf %373, %377 : vector<8x8xf32>
    %379 = arith.truncf %378 : vector<8x8xf32> to vector<8x8xbf16>
    %380 = arith.truncf %362 : vector<8x8xf32> to vector<8x8xbf16>
    %cst_104 = arith.constant dense<0.000000e+00> : vector<8x8xf32>
    %381 = tpu.matmul %379, %380, %cst_104 {dimension_numbers = #tpu.dot_dimension_numbers<[1], [0], [0], [1], [0, 0, 1, 1], [], []>} : vector<8x8xbf16>, vector<8x8xbf16>, vector<8x8xf32> -> vector<8x8xf32>
    %382 = arith.truncf %381 : vector<8x8xf32> to vector<8x8xbf16>
    %383 = vector.extract_strided_slice %226 {offsets = [3, 0, 0], sizes = [1, 8, 32], strides = [1, 1, 1]} : vector<4x8x32xbf16> to vector<1x8x32xbf16>
    %384 = vector.shape_cast %383 : vector<1x8x32xbf16> to vector<8x32xbf16>
    %cst_105 = arith.constant dense<0.000000e+00> : vector<8x32xf32>
    %385 = tpu.matmul %382, %384, %cst_105 {dimension_numbers = #tpu.dot_dimension_numbers<[1], [0], [0], [1], [0, 0, 1, 1], [], []>} : vector<8x8xbf16>, vector<8x32xbf16>, vector<8x32xf32> -> vector<8x32xf32>
    %386 = arith.addf %359, %385 : vector<8x32xf32>
    %387 = arith.addf %222, %386 : vector<8x32xf32>
    %388 = vector.shape_cast %240 : vector<32xf32> to vector<1x32xf32>
    %389 = vector.broadcast %388 : vector<1x32xf32> to vector<8x32xf32>
    %390 = arith.addf %387, %389 : vector<8x32xf32>
    %cst_106 = arith.constant dense<0.000000e+00> : vector<8xf32>
    %391 = vector.multi_reduction <add>, %390, %cst_106 [1] : vector<8x32xf32> to vector<8xf32>
    %392 = vector.shape_cast %391 : vector<8xf32> to vector<8x1xf32>
    %cst_107 = arith.constant 3.200000e+01 : f32
    %393 = vector.broadcast %cst_107 : f32 to vector<8x1xf32>
    %394 = arith.divf %392, %393 : vector<8x1xf32>
    %395 = vector.broadcast %394 : vector<8x1xf32> to vector<8x32xf32>
    %396 = arith.subf %390, %395 : vector<8x32xf32>
    %397 = arith.mulf %396, %396 : vector<8x32xf32>
    %cst_108 = arith.constant dense<0.000000e+00> : vector<8xf32>
    %398 = vector.multi_reduction <add>, %397, %cst_108 [1] : vector<8x32xf32> to vector<8xf32>
    %399 = vector.shape_cast %398 : vector<8xf32> to vector<8x1xf32>
    %cst_109 = arith.constant 3.200000e+01 : f32
    %400 = vector.broadcast %cst_109 : f32 to vector<8x1xf32>
    %401 = arith.divf %399, %400 : vector<8x1xf32>
    %402 = vector.broadcast %394 : vector<8x1xf32> to vector<8x32xf32>
    %403 = arith.subf %390, %402 : vector<8x32xf32>
    %cst_110 = arith.constant 9.99999974E-6 : f32
    %404 = vector.broadcast %cst_110 : f32 to vector<8x1xf32>
    %405 = arith.addf %401, %404 : vector<8x1xf32>
    %406 = math.rsqrt %405 : vector<8x1xf32>
    %407 = vector.broadcast %406 : vector<8x1xf32> to vector<8x32xf32>
    %408 = arith.mulf %403, %407 : vector<8x32xf32>
    %409 = vector.shape_cast %242 : vector<32xf32> to vector<1x32xf32>
    %410 = vector.broadcast %409 : vector<1x32xf32> to vector<8x32xf32>
    %411 = arith.mulf %408, %410 : vector<8x32xf32>
    %412 = vector.shape_cast %244 : vector<32xf32> to vector<1x32xf32>
    %413 = vector.broadcast %412 : vector<1x32xf32> to vector<8x32xf32>
    %414 = arith.addf %411, %413 : vector<8x32xf32>
    %415 = arith.truncf %414 : vector<8x32xf32> to vector<8x32xbf16>
    %cst_111 = arith.constant dense<0.000000e+00> : vector<8x128xf32>
    %416 = tpu.matmul %415, %228, %cst_111 {dimension_numbers = #tpu.dot_dimension_numbers<[1], [0], [0], [1], [0, 0, 1, 1], [], []>} : vector<8x32xbf16>, vector<32x128xbf16>, vector<8x128xf32> -> vector<8x128xf32>
    %417 = vector.shape_cast %246 : vector<128xf32> to vector<1x128xf32>
    %418 = vector.broadcast %417 : vector<1x128xf32> to vector<8x128xf32>
    %419 = arith.addf %416, %418 : vector<8x128xf32>
    %420 = arith.mulf %419, %419 : vector<8x128xf32>
    %421 = arith.mulf %419, %420 : vector<8x128xf32>
    %cst_112 = arith.constant 4.471500e-02 : f32
    %422 = vector.broadcast %cst_112 : f32 to vector<8x128xf32>
    %423 = arith.mulf %422, %421 : vector<8x128xf32>
    %424 = arith.addf %419, %423 : vector<8x128xf32>
    %cst_113 = arith.constant 0.797884583 : f32
    %425 = vector.broadcast %cst_113 : f32 to vector<8x128xf32>
    %426 = arith.mulf %425, %424 : vector<8x128xf32>
    %427 = math.tanh %426 : vector<8x128xf32>
    %cst_114 = arith.constant 1.000000e+00 : f32
    %428 = vector.broadcast %cst_114 : f32 to vector<8x128xf32>
    %429 = arith.addf %428, %427 : vector<8x128xf32>
    %cst_115 = arith.constant 5.000000e-01 : f32
    %430 = vector.broadcast %cst_115 : f32 to vector<8x128xf32>
    %431 = arith.mulf %430, %429 : vector<8x128xf32>
    %432 = arith.mulf %419, %431 : vector<8x128xf32>
    %433 = arith.truncf %432 : vector<8x128xf32> to vector<8x128xbf16>
    %cst_116 = arith.constant dense<0.000000e+00> : vector<8x32xf32>
    %434 = tpu.matmul %433, %230, %cst_116 {dimension_numbers = #tpu.dot_dimension_numbers<[1], [1], [0], [0], [0, 0, 1, 0], [], []>} : vector<8x128xbf16>, vector<32x128xbf16>, vector<8x32xf32> -> vector<8x32xf32>
    %435 = vector.shape_cast %248 : vector<32xf32> to vector<1x32xf32>
    %436 = vector.broadcast %435 : vector<1x32xf32> to vector<8x32xf32>
    %437 = arith.addf %434, %436 : vector<8x32xf32>
    %438 = arith.addf %390, %437 : vector<8x32xf32>
    %c0_117 = arith.constant 0 : index
    %c0_118 = arith.constant 0 : index
    %439 = vector.load %arg7[%c0_117, %c0_118] : memref<2x32xf32, #tpu.memory_space<vmem>>, vector<1x32xf32>
    %440 = vector.shape_cast %439 : vector<1x32xf32> to vector<32xf32>
    %c1_119 = arith.constant 1 : index
    %c0_120 = arith.constant 0 : index
    %441 = vector.load %arg7[%c1_119, %c0_120] : memref<2x32xf32, #tpu.memory_space<vmem>>, vector<1x32xf32>
    %442 = vector.shape_cast %441 : vector<1x32xf32> to vector<32xf32>
    %cst_121 = arith.constant dense<0.000000e+00> : vector<8xf32>
    %443 = vector.multi_reduction <add>, %438, %cst_121 [1] : vector<8x32xf32> to vector<8xf32>
    %444 = vector.shape_cast %443 : vector<8xf32> to vector<8x1xf32>
    %cst_122 = arith.constant 3.200000e+01 : f32
    %445 = vector.broadcast %cst_122 : f32 to vector<8x1xf32>
    %446 = arith.divf %444, %445 : vector<8x1xf32>
    %447 = vector.broadcast %446 : vector<8x1xf32> to vector<8x32xf32>
    %448 = arith.subf %438, %447 : vector<8x32xf32>
    %449 = arith.mulf %448, %448 : vector<8x32xf32>
    %cst_123 = arith.constant dense<0.000000e+00> : vector<8xf32>
    %450 = vector.multi_reduction <add>, %449, %cst_123 [1] : vector<8x32xf32> to vector<8xf32>
    %451 = vector.shape_cast %450 : vector<8xf32> to vector<8x1xf32>
    %cst_124 = arith.constant 3.200000e+01 : f32
    %452 = vector.broadcast %cst_124 : f32 to vector<8x1xf32>
    %453 = arith.divf %451, %452 : vector<8x1xf32>
    %454 = vector.broadcast %446 : vector<8x1xf32> to vector<8x32xf32>
    %455 = arith.subf %438, %454 : vector<8x32xf32>
    %cst_125 = arith.constant 9.99999974E-6 : f32
    %456 = vector.broadcast %cst_125 : f32 to vector<8x1xf32>
    %457 = arith.addf %453, %456 : vector<8x1xf32>
    %458 = math.rsqrt %457 : vector<8x1xf32>
    %459 = vector.broadcast %458 : vector<8x1xf32> to vector<8x32xf32>
    %460 = arith.mulf %455, %459 : vector<8x32xf32>
    %461 = vector.shape_cast %440 : vector<32xf32> to vector<1x32xf32>
    %462 = vector.broadcast %461 : vector<1x32xf32> to vector<8x32xf32>
    %463 = arith.mulf %460, %462 : vector<8x32xf32>
    %464 = vector.shape_cast %442 : vector<32xf32> to vector<1x32xf32>
    %465 = vector.broadcast %464 : vector<1x32xf32> to vector<8x32xf32>
    %466 = arith.addf %463, %465 : vector<8x32xf32>
    %c0_126 = arith.constant 0 : index
    %c0_127 = arith.constant 0 : index
    %467 = vector.load %arg8[%c0_126, %c0_127] : memref<8x32xf32, #tpu.memory_space<vmem>>, vector<8x32xf32>
    tpu.vector_store %arg8[%c0_126, %c0_127], %466 {strides = array<i32>} : memref<8x32xf32, #tpu.memory_space<vmem>>, vector<8x32xf32>,
    return
  }
  func.func @transform_0(%arg0: i32) -> (i32, i32) {
    %c0_i32 = arith.constant 0 : i32
    %c0_i32_0 = arith.constant 0 : i32
    return %arg0, %c0_i32 : i32, i32
  }
  func.func @transform_1(%arg0: i32) -> (i32, i32, i32) {
    %c0_i32 = arith.constant 0 : i32
    %c0_i32_0 = arith.constant 0 : i32
    %c0_i32_1 = arith.constant 0 : i32
    %c0_i32_2 = arith.constant 0 : i32
    return %c0_i32, %c0_i32_0, %c0_i32_1 : i32, i32, i32
  }
  func.func @transform_2(%arg0: i32) -> (i32, i32, i32, i32) {
    %c0_i32 = arith.constant 0 : i32
    %c0_i32_0 = arith.constant 0 : i32
    %c0_i32_1 = arith.constant 0 : i32
    %c0_i32_2 = arith.constant 0 : i32
    %c0_i32_3 = arith.constant 0 : i32
    return %c0_i32, %c0_i32_0, %c0_i32_1, %c0_i32_2 : i32, i32, i32, i32
  }
  func.func @transform_3(%arg0: i32) -> (i32, i32, i32) {
    %c0_i32 = arith.constant 0 : i32
    %c0_i32_0 = arith.constant 0 : i32
    %c0_i32_1 = arith.constant 0 : i32
    %c0_i32_2 = arith.constant 0 : i32
    return %c0_i32, %c0_i32_0, %c0_i32_1 : i32, i32, i32
  }
  func.func @transform_4(%arg0: i32) -> (i32, i32, i32) {
    %c0_i32 = arith.constant 0 : i32
    %c0_i32_0 = arith.constant 0 : i32
    %c0_i32_1 = arith.constant 0 : i32
    %c0_i32_2 = arith.constant 0 : i32
    return %c0_i32, %c0_i32_0, %c0_i32_1 : i32, i32, i32
  }
  func.func @transform_5(%arg0: i32) -> (i32, i32, i32) {
    %c0_i32 = arith.constant 0 : i32
    %c0_i32_0 = arith.constant 0 : i32
    %c0_i32_1 = arith.constant 0 : i32
    %c0_i32_2 = arith.constant 0 : i32
    return %c0_i32, %c0_i32_0, %c0_i32_1 : i32, i32, i32
  }
  func.func @transform_6(%arg0: i32) -> (i32, i32) {
    %c0_i32 = arith.constant 0 : i32
    %c0_i32_0 = arith.constant 0 : i32
    %c0_i32_1 = arith.constant 0 : i32
    return %c0_i32, %c0_i32_0 : i32, i32
  }
  func.func @transform_7(%arg0: i32) -> (i32, i32) {
    %c0_i32 = arith.constant 0 : i32
    %c0_i32_0 = arith.constant 0 : i32
    return %arg0, %c0_i32 : i32, i32
  }
}

</mosaic_0001>

<llo_original>
// kernel: tpu_custom_call.1
$region0: #{tpu_custom_call.1}
  #allocation0 [shape = 'u32[]', space=smem, size = 0x4, offset = 0x4, fixed_abs, tag = 'smem constant byte address 0x4 - core index']
  #allocation1 [shape = 'u32[144,128]{1,0:T(1,128)}', space=vmem, size = 0x12000, scoped, tag = 'internal scratch']
  %s0 = inlined_call_operand.hbm [shape: f32[16,32], index: 0, kind: input, shape index: {}]
  %s1 = inlined_call_operand.hbm [shape: bf16[2,32,96], index: 1, kind: input, shape index: {}]
  %s2 = inlined_call_operand.hbm [shape: bf16[2,4,8,32], index: 2, kind: input, shape index: {}]
  %s3 = inlined_call_operand.hbm [shape: bf16[2,32,128], index: 3, kind: input, shape index: {}]
  %s4 = inlined_call_operand.hbm [shape: bf16[2,32,128], index: 4, kind: input, shape index: {}]
  %s5 = inlined_call_operand.vmem [shape: f32[2,8,128], index: 5, kind: input, shape index: {}]
  %s6 = inlined_call_operand.vmem [shape: f32[2,32], index: 6, kind: input, shape index: {}]
  %s7 = inlined_call_operand.hbm [shape: f32[16,32], index: 7, kind: output, shape index: {}]
  %s8 = sld [smem:[#allocation0]]
  $region81: #{tpu_custom_call.1} parent=0
    _
  %s10 = ssub.s32 1, %s8
  %s11 = scalar_select 0, %s10, %s8
  $region1: #{tpu_custom_call.1} parent=0
    #allocation2 [shape = 'u8[8192]{0}', space=vmem, size = 0x2000, scoped, tag = 'input window, operand 0']
    #allocation3 [shape = 's32[2]{0}', space=sflag, size = 0x8, scoped, tag = 'scoped memory for tpu_custom_call.1']
    #allocation4 [shape = 's32[2]{0}', space=sflag, size = 0x8, scoped, tag = 'scoped memory for tpu_custom_call.1']
    #allocation5 [shape = 'u8[16384]{0}', space=vmem, size = 0x4000, scoped, tag = 'input window, operand 1, single buffered']
    #allocation6 [shape = 's32[1]{0}', space=sflag, size = 0x4, scoped, tag = 'scoped memory for tpu_custom_call.1']
    #allocation7 [shape = 'u8[16384]{0}', space=vmem, size = 0x4000, scoped, tag = 'input window, operand 2, single buffered']
    #allocation8 [shape = 'u8[16384]{0}', space=vmem, size = 0x4000, scoped, tag = 'input window, operand 3, single buffered']
    #allocation9 [shape = 's32[1]{0}', space=sflag, size = 0x4, scoped, tag = 'scoped memory for tpu_custom_call.1']
    #allocation10 [shape = 'u8[16384]{0}', space=vmem, size = 0x4000, scoped, tag = 'input window, operand 4, single buffered']
    #allocation11 [shape = 'u8[8192]{0}', space=vmem, size = 0x2000, scoped, tag = 'output window, operand 0']
    %12 = vsyncpa [#allocation3], 0
    %s13 = scalar_lea.sflag [#allocation3], 1
    %14 = vsyncpa %s13, 0
    %15 = vsyncpa [#allocation6], 0
    %16 = vsyncpa [#allocation9], 0
    %17 = vsyncpa [#allocation4], 0
    %s18 = scalar_lea.sflag [#allocation4], 1
    %19 = vsyncpa %s18, 0
    loop: start=0, step=1, limit=4
    $region2: #{tpu_custom_call.1} parent=1 // loop_pre_header
      _
    $region3: #{tpu_custom_call.1} parent=1 // loop_header
      %s21 = sphi 0, %s25
      %p22 = scmp.ge.s32.totalorder %s21, 4
      %s31 = sphi 0, %s33
      %s34 = sphi 0, %s31
      %s35 = sphi 0, %s34
      %s51 = sphi 0, %s35
      %s55 = sphi 0, %s55
      %s57 = sphi 0, %s55
      %s58 = sphi 0, %s57
      %s72 = sphi 0, %s58
      %s76 = sphi 0, %s76
      %s78 = sphi 0, %s76
      %s79 = sphi 0, %s78
      %s93 = sphi 0, %s79
      %s97 = sphi 0, %s97
      %s99 = sphi 0, %s97
      %s100 = sphi 0, %s99
      %s114 = sphi 0, %s100
      %s118 = sphi 0, %s118
      %s120 = sphi 0, %s118
      %s121 = sphi 0, %s120
      %s135 = sphi 0, %s121
      %s139 = sphi 0, %s139
      %s141 = sphi 0, %s139
      %s142 = sphi 0, %s141
      %s156 = sphi 0, %s142
      %s160 = sphi 0, %s160
      %s162 = sphi 0, %s160
      %s163 = sphi 0, %s162
      %s177 = sphi 0, %s163
      %s183 = sphi 0, %s185
      %s186 = sphi 0, %s183
      %s187 = sphi 0, %s186
      %s203 = sphi 0, %s187
    $region4: #{tpu_custom_call.1} parent=1 // loop_header_branch
      %24 = sbr.rel (%p22) target = $region8
    $region5: #{tpu_custom_call.1} parent=1 // loop_body
      %s26 = ssub.s32 %s21, 1
      %s27 = ssub.s32 %s21, 2
      %s28 = sadd.s32 %s21, 1
      %s29 = ssub.s32 %s21, %s28
      %p30 = scmp.eq.s32.totalorder %s29, 0
      %s32 = sadd.s32 %s31, 1
      %s33 = scalar_select %p30, %s31, %s32
      %p36 = pneg %p30
      %p37 = scmp.eq.s32.totalorder %s21, 1
      %p38 = por %p36, %p37
      %p39 = scmp.ne.s32.totalorder %s31, %s34
      %p40 = scmp.eq.s32.totalorder %s21, 0
      %p41 = por %p39, %p40
      %p42 = scmp.ne.s32.totalorder %s31, %s34
      %p43 = scmp.eq.s32.totalorder %s26, 1
      %p44 = por %p42, %p43
      %p45 = scmp.ne.s32.totalorder %s34, %s35
      %p46 = scmp.eq.s32.totalorder %s26, 0
      %p47 = por %p45, %p46
      %p48 = scmp.ne.s32.totalorder %s34, %s35
      %p49 = scmp.eq.s32.totalorder %s27, 1
      %p50 = por %p48, %p49
      %p52 = scmp.ne.s32.totalorder %s35, %s51
      %p53 = scmp.eq.s32.totalorder %s27, 0
      %p54 = por %p52, %p53
      %s56 = sadd.s32 %s55, 1
      %p59 = scmp.eq.s32.totalorder %s21, 1
      %p60 = scmp.ne.s32.totalorder %s55, %s57
      %p61 = scmp.eq.s32.totalorder %s21, 0
      %p62 = por %p60, %p61
      %p63 = scmp.ne.s32.totalorder %s55, %s57
      %p64 = scmp.eq.s32.totalorder %s26, 1
      %p65 = por %p63, %p64
      %p66 = scmp.ne.s32.totalorder %s57, %s58
      %p67 = scmp.eq.s32.totalorder %s26, 0
      %p68 = por %p66, %p67
      %p69 = scmp.ne.s32.totalorder %s57, %s58
      %p70 = scmp.eq.s32.totalorder %s27, 1
      %p71 = por %p69, %p70
      %p73 = scmp.ne.s32.totalorder %s58, %s72
      %p74 = scmp.eq.s32.totalorder %s27, 0
      %p75 = por %p73, %p74
      %s77 = sadd.s32 %s76, 1
      %p80 = scmp.eq.s32.totalorder %s21, 1
      %p81 = scmp.ne.s32.totalorder %s76, %s78
      %p82 = scmp.eq.s32.totalorder %s21, 0
      %p83 = por %p81, %p82
      %p84 = scmp.ne.s32.totalorder %s76, %s78
      %p85 = scmp.eq.s32.totalorder %s26, 1
      %p86 = por %p84, %p85
      %p87 = scmp.ne.s32.totalorder %s78, %s79
      %p88 = scmp.eq.s32.totalorder %s26, 0
      %p89 = por %p87, %p88
      %p90 = scmp.ne.s32.totalorder %s78, %s79
      %p91 = scmp.eq.s32.totalorder %s27, 1
      %p92 = por %p90, %p91
      %p94 = scmp.ne.s32.totalorder %s79, %s93
      %p95 = scmp.eq.s32.totalorder %s27, 0
      %p96 = por %p94, %p95
      %s98 = sadd.s32 %s97, 1
      %p101 = scmp.eq.s32.totalorder %s21, 1
      %p102 = scmp.ne.s32.totalorder %s97, %s99
      %p103 = scmp.eq.s32.totalorder %s21, 0
      %p104 = por %p102, %p103
      %p105 = scmp.ne.s32.totalorder %s97, %s99
      %p106 = scmp.eq.s32.totalorder %s26, 1
      %p107 = por %p105, %p106
      %p108 = scmp.ne.s32.totalorder %s99, %s100
      %p109 = scmp.eq.s32.totalorder %s26, 0
      %p110 = por %p108, %p109
      %p111 = scmp.ne.s32.totalorder %s99, %s100
      %p112 = scmp.eq.s32.totalorder %s27, 1
      %p113 = por %p111, %p112
      %p115 = scmp.ne.s32.totalorder %s100, %s114
      %p116 = scmp.eq.s32.totalorder %s27, 0
      %p117 = por %p115, %p116
      %s119 = sadd.s32 %s118, 1
      %p122 = scmp.eq.s32.totalorder %s21, 1
      %p123 = scmp.ne.s32.totalorder %s118, %s120
      %p124 = scmp.eq.s32.totalorder %s21, 0
      %p125 = por %p123, %p124
      %p126 = scmp.ne.s32.totalorder %s118, %s120
      %p127 = scmp.eq.s32.totalorder %s26, 1
      %p128 = por %p126, %p127
      %p129 = scmp.ne.s32.totalorder %s120, %s121
      %p130 = scmp.eq.s32.totalorder %s26, 0
      %p131 = por %p129, %p130
      %p132 = scmp.ne.s32.totalorder %s120, %s121
      %p133 = scmp.eq.s32.totalorder %s27, 1
      %p134 = por %p132, %p133
      %p136 = scmp.ne.s32.totalorder %s121, %s135
      %p137 = scmp.eq.s32.totalorder %s27, 0
      %p138 = por %p136, %p137
      %s140 = sadd.s32 %s139, 1
      %p143 = scmp.eq.s32.totalorder %s21, 1
      %p144 = scmp.ne.s32.totalorder %s139, %s141
      %p145 = scmp.eq.s32.totalorder %s21, 0
      %p146 = por %p144, %p145
      %p147 = scmp.ne.s32.totalorder %s139, %s141
      %p148 = scmp.eq.s32.totalorder %s26, 1
      %p149 = por %p147, %p148
      %p150 = scmp.ne.s32.totalorder %s141, %s142
      %p151 = scmp.eq.s32.totalorder %s26, 0
      %p152 = por %p150, %p151
      %p153 = scmp.ne.s32.totalorder %s141, %s142
      %p154 = scmp.eq.s32.totalorder %s27, 1
      %p155 = por %p153, %p154
      %p157 = scmp.ne.s32.totalorder %s142, %s156
      %p158 = scmp.eq.s32.totalorder %s27, 0
      %p159 = por %p157, %p158
      %s161 = sadd.s32 %s160, 1
      %p164 = scmp.eq.s32.totalorder %s21, 1
      %p165 = scmp.ne.s32.totalorder %s160, %s162
      %p166 = scmp.eq.s32.totalorder %s21, 0
      %p167 = por %p165, %p166
      %p168 = scmp.ne.s32.totalorder %s160, %s162
      %p169 = scmp.eq.s32.totalorder %s26, 1
      %p170 = por %p168, %p169
      %p171 = scmp.ne.s32.totalorder %s162, %s163
      %p172 = scmp.eq.s32.totalorder %s26, 0
      %p173 = por %p171, %p172
      %p174 = scmp.ne.s32.totalorder %s162, %s163
      %p175 = scmp.eq.s32.totalorder %s27, 1
      %p176 = por %p174, %p175
      %p178 = scmp.ne.s32.totalorder %s163, %s177
      %p179 = scmp.eq.s32.totalorder %s27, 0
      %p180 = por %p178, %p179
      %s181 = ssub.s32 %s21, %s28
      %p182 = scmp.eq.s32.totalorder %s181, 0
      %s184 = sadd.s32 %s183, 1
      %s185 = scalar_select %p182, %s183, %s184
      %p188 = pneg %p182
      %p189 = scmp.eq.s32.totalorder %s21, 1
      %p190 = por %p188, %p189
      %p191 = scmp.ne.s32.totalorder %s183, %s186
      %p192 = scmp.eq.s32.totalorder %s21, 0
      %p193 = por %p191, %p192
      %p194 = scmp.ne.s32.totalorder %s183, %s186
      %p195 = scmp.eq.s32.totalorder %s26, 1
      %p196 = por %p194, %p195
      %p197 = scmp.ne.s32.totalorder %s186, %s187
      %p198 = scmp.eq.s32.totalorder %s26, 0
      %p199 = por %p197, %p198
      %p200 = scmp.ne.s32.totalorder %s186, %s187
      %p201 = scmp.eq.s32.totalorder %s27, 1
      %p202 = por %p200, %p201
      %p204 = scmp.ne.s32.totalorder %s187, %s203
      %p205 = scmp.eq.s32.totalorder %s27, 0
      %p206 = por %p204, %p205
      %p207 = scmp.le.s32.totalorder 1, %s21
      %p208 = scmp.lt.s32.totalorder %s21, 3
      %p209 = pnand %p207, %p208
      %p210 = pneg %p209
      // Predicated region
      $region9: #{tpu_custom_call.1} parent=5 // pred_check
        _
      $region10: #{tpu_custom_call.1} parent=5 // pred_check_branch
        %212 = sbr.rel (%p209) target = $region12
      $region11: #{tpu_custom_call.1} parent=5 // pred_region
        %s213 = ssub.s32 %s21, 1
        // Predicated region
        $region13: #{tpu_custom_call.1} parent=11 // pred_check
          %p214 = pneg %p68
        $region14: #{tpu_custom_call.1} parent=11 // pred_check_branch
          %216 = sbr.rel (%p214) target = $region16
        $region15: #{tpu_custom_call.1} parent=11 // pred_region
          %s218 = ssub.s32 512, 512
          %219 = vsyncadd [#allocation6], %s218
          %s220 = sshll.u32 [#allocation5], 4
          %s221 = int_to_ptr.vmem [resolvable:$true] %s220
          %226 = dma.hbm_to_vmem [thread:$0]  %s1, 512, %s221, [#allocation6], 64, 64, 4
        $region16: #{tpu_custom_call.1} parent=11 // pred_fallthru
          _
        // Predicated region
        $region17: #{tpu_custom_call.1} parent=11 // pred_check
          %p227 = pneg %p89
        $region18: #{tpu_custom_call.1} parent=11 // pred_check_branch
          %229 = sbr.rel (%p227) target = $region20
        $region19: #{tpu_custom_call.1} parent=11 // pred_region
          %s231 = ssub.s32 512, 512
          %232 = vsyncadd [#allocation6], %s231
          %s233 = sshll.u32 [#allocation7], 4
          %s234 = int_to_ptr.vmem [resolvable:$true] %s233
          %239 = dma.hbm_to_vmem [thread:$0]  %s2, 512, %s234, [#allocation6], 64, 64, 4
        $region20: #{tpu_custom_call.1} parent=11 // pred_fallthru
          _
        // Predicated region
        $region21: #{tpu_custom_call.1} parent=11 // pred_check
          %p240 = pneg %p110
        $region22: #{tpu_custom_call.1} parent=11 // pred_check_branch
          %242 = sbr.rel (%p240) target = $region24
        $region23: #{tpu_custom_call.1} parent=11 // pred_region
          %s244 = ssub.s32 512, 512
          %245 = vsyncadd [#allocation9], %s244
          %s246 = sshll.u32 [#allocation8], 4
          %s247 = int_to_ptr.vmem [resolvable:$true] %s246
          %252 = dma.hbm_to_vmem [thread:$0]  %s3, 512, %s247, [#allocation9], 64, 64, 4
        $region24: #{tpu_custom_call.1} parent=11 // pred_fallthru
          _
        // Predicated region
        $region25: #{tpu_custom_call.1} parent=11 // pred_check
          %p253 = pneg %p131
        $region26: #{tpu_custom_call.1} parent=11 // pred_check_branch
          %255 = sbr.rel (%p253) target = $region28
        $region27: #{tpu_custom_call.1} parent=11 // pred_region
          %s257 = ssub.s32 512, 512
          %258 = vsyncadd [#allocation9], %s257
          %s259 = sshll.u32 [#allocation10], 4
          %s260 = int_to_ptr.vmem [resolvable:$true] %s259
          %265 = dma.hbm_to_vmem [thread:$0]  %s4, 512, %s260, [#allocation9], 64, 64, 4
        $region28: #{tpu_custom_call.1} parent=11 // pred_fallthru
          _
        // Predicated region
        $region29: #{tpu_custom_call.1} parent=11 // pred_check
          %p266 = pneg %p152
        $region30: #{tpu_custom_call.1} parent=11 // pred_check_branch
          %268 = sbr.rel (%p266) target = $region32
        $region31: #{tpu_custom_call.1} parent=11 // pred_region
          _
        $region32: #{tpu_custom_call.1} parent=11 // pred_fallthru
          _
        // Predicated region
        $region33: #{tpu_custom_call.1} parent=11 // pred_check
          %p269 = pneg %p173
        $region34: #{tpu_custom_call.1} parent=11 // pred_check_branch
          %271 = sbr.rel (%p269) target = $region36
        $region35: #{tpu_custom_call.1} parent=11 // pred_region
          _
        $region36: #{tpu_custom_call.1} parent=11 // pred_fallthru
          _
      $region12: #{tpu_custom_call.1} parent=5 // pred_fallthru
        _
      %p272 = scmp.lt.s32.totalorder %s21, 2
      // Predicated region
      $region37: #{tpu_custom_call.1} parent=5 // pred_check
        %p273 = pneg %p272
      $region38: #{tpu_custom_call.1} parent=5 // pred_check_branch
        %275 = sbr.rel (%p273) target = $region40
      $region39: #{tpu_custom_call.1} parent=5 // pred_region
        // Predicated region
        $region41: #{tpu_custom_call.1} parent=39 // pred_check
          %p276 = pneg %p41
        $region42: #{tpu_custom_call.1} parent=39 // pred_check_branch
          %278 = sbr.rel (%p276) target = $region44
        $region43: #{tpu_custom_call.1} parent=39 // pred_region
          %s279 = sand.u32 %s31, 1
          %s280 = scalar_lea.sflag [#allocation3], %s279
          %s281 = sand.u32 %s31, 1
          %s282 = smul.addr %s281, 8
          %s283 = scalar_lea.vmem [#allocation2], %s282
          %s285 = ssub.s32 128, 128
          %286 = vsyncadd %s280, %s285
          %s287 = smul.addr %s21, 128
          %s288 = scalar_lea.hbm %s0, %s287
          %s290 = sshll.u32 %s283, 4
          %s291 = int_to_ptr.vmem [resolvable:$true] %s290
          %293 = dma.hbm_to_vmem [thread:$0]  %s288, 128, %s291, %s280
        $region44: #{tpu_custom_call.1} parent=39 // pred_fallthru
          _
      $region40: #{tpu_custom_call.1} parent=5 // pred_fallthru
        _
      %p294 = scmp.le.s32.totalorder 1, %s21
      %p295 = scmp.lt.s32.totalorder %s21, 3
      %p296 = pnand %p294, %p295
      %p297 = pneg %p296
      // Predicated region
      $region45: #{tpu_custom_call.1} parent=5 // pred_check
        _
      $region46: #{tpu_custom_call.1} parent=5 // pred_check_branch
        %299 = sbr.rel (%p296) target = $region48
      $region47: #{tpu_custom_call.1} parent=5 // pred_region
        %s300 = ssub.s32 %s21, 1
        %s301 = sand.u32 %s34, 1
        %s302 = scalar_lea.sflag [#allocation3], %s301
        %s303 = sand.u32 %s34, 1
        %s304 = smul.addr %s303, 8
        %s305 = scalar_lea.vmem [#allocation2], %s304
        // Predicated region
        $region49: #{tpu_custom_call.1} parent=47 // pred_check
          %p306 = pneg %p47
        $region50: #{tpu_custom_call.1} parent=47 // pred_check_branch
          %308 = sbr.rel (%p306) target = $region52
        $region51: #{tpu_custom_call.1} parent=47 // pred_region
          %309 = dma.done %s302, 128
        $region52: #{tpu_custom_call.1} parent=47 // pred_fallthru
          _
        // Predicated region
        $region53: #{tpu_custom_call.1} parent=47 // pred_check
          %p310 = pneg %p68
        $region54: #{tpu_custom_call.1} parent=47 // pred_check_branch
          %312 = sbr.rel (%p310) target = $region56
        $region55: #{tpu_custom_call.1} parent=47 // pred_region
          %313 = dma.done [#allocation6], 512
        $region56: #{tpu_custom_call.1} parent=47 // pred_fallthru
          _
        // Predicated region
        $region57: #{tpu_custom_call.1} parent=47 // pred_check
          %p314 = pneg %p89
        $region58: #{tpu_custom_call.1} parent=47 // pred_check_branch
          %316 = sbr.rel (%p314) target = $region60
        $region59: #{tpu_custom_call.1} parent=47 // pred_region
          %317 = dma.done [#allocation6], 512
        $region60: #{tpu_custom_call.1} parent=47 // pred_fallthru
          _
        // Predicated region
        $region61: #{tpu_custom_call.1} parent=47 // pred_check
          %p318 = pneg %p110
        $region62: #{tpu_custom_call.1} parent=47 // pred_check_branch
          %320 = sbr.rel (%p318) target = $region64
        $region63: #{tpu_custom_call.1} parent=47 // pred_region
          %321 = dma.done [#allocation9], 512
        $region64: #{tpu_custom_call.1} parent=47 // pred_fallthru
          _
        // Predicated region
        $region65: #{tpu_custom_call.1} parent=47 // pred_check
          %p322 = pneg %p131
        $region66: #{tpu_custom_call.1} parent=47 // pred_check_branch
          %324 = sbr.rel (%p322) target = $region68
        $region67: #{tpu_custom_call.1} parent=47 // pred_region
          %325 = dma.done [#allocation9], 512
        $region68: #{tpu_custom_call.1} parent=47 // pred_fallthru
          _
        %s326 = sand.u32 %s34, 1
        %s327 = scalar_lea.sflag [#allocation3], %s326
        %s328 = sand.u32 %s34, 1
        %s329 = smul.addr %s328, 8
        %s330 = scalar_lea.vmem [#allocation2], %s329
        %p331 = pneg %p47
        %p332 = pneg %p44
        %p333 = pneg %p68
        %p334 = pneg %p65
        %p335 = pneg %p89
        %p336 = pneg %p86
        %p337 = pneg %p110
        %p338 = pneg %p107
        %p339 = pneg %p131
        %p340 = pneg %p128
        %p341 = pneg %p152
        %p342 = pneg %p149
        %p343 = pneg %p173
        %p344 = pneg %p170
        %p345 = pneg %p199
        %p346 = pneg %p196
        %s347 = sand.u32 %s186, 1
        %s348 = scalar_lea.sflag [#allocation4], %s347
        %s349 = sand.u32 %s186, 1
        %s350 = smul.addr %s349, 8
        %s351 = scalar_lea.vmem [#allocation11], %s350
        %v353 = vlaneseq
        %v354 = vshrl.u32 %v353, 7
        %v355 = vlaneseq
        %v356 = vand.u32 %v355, 127
        %vm357 = vcmp.le.s32.totalorder %v356, %v354
        %v358 = vsel %vm357, 0.0, -1e+30
        %v359 = vld [vmem:[%s305] sm:$0xff]
        %v360 = vld [vmem:[#allocation5] sm:$0xf]
        %v361 = vld [vmem:[#allocation5 + $0x4] sm:$0xf]
        %v362 = vld [vmem:[#allocation5 + $0x8] sm:$0xf]
        %v363 = vld [vmem:[#allocation5 + $0xc] sm:$0xf]
        %v364 = vld [vmem:[#allocation7] sm:$0xf]
        %v365 = vld [vmem:[#allocation7 + $0x4] sm:$0xf]
        %v366 = vld [vmem:[#allocation7 + $0x8] sm:$0xf]
        %v367 = vld [vmem:[#allocation7 + $0xc] sm:$0xf]
        %v368 = vld [vmem:[#allocation8] sm:$0xf]
        %v369 = vld [vmem:[#allocation8 + $0x4] sm:$0xf]
        %v370 = vld [vmem:[#allocation8 + $0x8] sm:$0xf]
        %v371 = vld [vmem:[#allocation8 + $0xc] sm:$0xf]
        %v372 = vld [vmem:[#allocation10] sm:$0xf]
        %v373 = vld [vmem:[#allocation10 + $0x4] sm:$0xf]
        %v374 = vld [vmem:[#allocation10 + $0x8] sm:$0xf]
        %v375 = vld [vmem:[#allocation10 + $0xc] sm:$0xf]
        %v376 = vld [vmem:[%s5] sm:$0xff]
        %vm377 = vcmask 261120
        %v378 = vsel %vm377, %v359, 0.0
        %379 = vadd.xlane.f32.xlu0 %v378
        %v380 = vpop.xlane.xlu0 %379
        %v381 = vrcp.pop 32.0
        %v382 = vmul.f32 %v380, %v381
        %v383 = vsub.f32 %v359, %v382
        %v384 = vmul.f32 %v383, %v383
        %v385 = vsel %vm377, %v384, 0.0
        %386 = vadd.xlane.f32.xlu0 %v385
        %v387 = vpop.xlane.xlu0 %386
        %v388 = vmul.f32 %v387, %v381
        %v389 = vadd.f32 %v388, 1e-05
        %v390 = vrsqrt.pop %v389
        %v391 = vmul.f32 %v383, %v390
        %v392 = vlaneseq
        %v393 = vshrl.u32 %v392, 7
        %v394 = vsub.s32 0, %v393
        %v395 = vrot.slane %v376, %v394
        %v396 = vmul.f32 %v391, %v395
        %v397 = vlaneseq
        %v398 = vshrl.u32 %v397, 7
        %v399 = vsub.s32 1, %v398
        %v400 = vrot.slane %v376, %v399
        %v401 = vadd.f32 %v396, %v400
        %v402 = vpack.c.bf16 %v401, %v401
        %v403 = vlaneseq
        %v404 = vshrl.u32 %v403, 7
        %v405 = vsub.s32 2, %v404
        %v406 = vrot.slane %v376, %v405
        %v411 = vunpack.c.l.b16 %v360
        %v412 = vunpack.c.l.b16 %v361
        %v413 = vunpack.c.l.b16 %v362
        %v414 = vunpack.c.l.b16 %v363
        %v415 = vpack.c.b16 %v412, %v411
        %v416 = vpack.c.b16 %v414, %v413
        %v420 = vsel %vm377, %v402, 0
        %422 = vmatprep.subr.bf16.mxu0 0
        %423 = vmatpush1.bf16.msra.mxu0 %v415
        %424 = vmatprep.subr.bf16.mxu0 0
        %425 = vmatpush1.bf16.msra.mxu0 %v416
        %426 = vmatprep.subr.bf16.mxu0 0
        %427 = vmatpush1.bf16.msra.mxu0 0
        %428 = vmatprep.subr.bf16.mxu0 0
        %429 = vmatpush1.bf16.msra.mxu0 0
        %430 = vmatprep.subr.bf16.mxu0 0
        %431 = vmatpush1.bf16.msra.mxu0 0
        %432 = vmatprep.subr.bf16.mxu0 0
        %433 = vmatpush1.bf16.msra.mxu0 0
        %434 = vmatprep.subr.bf16.mxu0 0
        %435 = vmatpush1.bf16.msra.mxu0 0
        %436 = vmatprep.subr.bf16.mxu0 0
        %437 = vmatpush1.bf16.msra.mxu0 0
        %438 = vmatprep.subr.bf16.mxu0 0
        %439 = vmatpush1.bf16.msra.mxu0 0
        %440 = vmatprep.subr.bf16.mxu0 0
        %441 = vmatpush1.bf16.msra.mxu0 0
        %442 = vmatprep.subr.bf16.mxu0 0
        %443 = vmatpush1.bf16.msra.mxu0 0
        %444 = vmatprep.subr.bf16.mxu0 0
        %445 = vmatpush1.bf16.msra.mxu0 0
        %446 = vmatprep.subr.bf16.mxu0 0
        %447 = vmatpush1.bf16.msra.mxu0 0
        %448 = vmatprep.subr.bf16.mxu0 0
        %449 = vmatpush1.bf16.msra.mxu0 0
        %450 = vmatprep.subr.bf16.mxu0 0
        %451 = vmatpush1.bf16.msra.mxu0 0
        %452 = vmatprep.subr.bf16.mxu0 0
        %453 = vmatpush1.bf16.msra.mxu0 0
        %454 = vmatprep.mubr.bf16.mxu0 0
        %455 = vmatmul.mubr.bf16.gmra.mrb[0].mxu0 %v420
        %v456 = vpop.f32.mrb[0].mxu0
        %v457 = vadd.f32 %v406, %v456
        %v458 = vpop.f32.mrb[0].mxu0
        %v459 = vpop.f32.mrb[0].mxu0
        %v460 = vpop.f32.mrb[0].mxu0
        %461 = vdwg.mxu0
        %v462 = vpack.c.bf16 %v457, %v457
        %464 = vrot.lane.b32.xlu0 %v462, 96
        %v465 = vpop.permute.xlu0 %464
        %vm466 = vcmask 64512
        %v468 = vsel %vm466, %v462, 0
        %v471 = vsel %vm466, %v465, 0
        %473 = vmatprep.subr.bf16.mxu0 0
        %474 = vmatpush1.bf16.xpose.msra.mxu0 %v471
        %475 = vmatprep.subr.bf16.mxu0 0
        %476 = vmatpush1.bf16.xpose.msra.mxu0 0
        %477 = vmatprep.subr.bf16.mxu0 0
        %478 = vmatpush1.bf16.xpose.msra.mxu0 0
        %479 = vmatprep.subr.bf16.mxu0 0
        %480 = vmatpush1.bf16.xpose.msra.mxu0 0
        %481 = vmatprep.subr.bf16.mxu0 0
        %482 = vmatpush1.bf16.xpose.msra.mxu0 0
        %483 = vmatprep.subr.bf16.mxu0 0
        %484 = vmatpush1.bf16.xpose.msra.mxu0 0
        %485 = vmatprep.subr.bf16.mxu0 0
        %486 = vmatpush1.bf16.xpose.msra.mxu0 0
        %487 = vmatprep.subr.bf16.mxu0 0
        %488 = vmatpush1.bf16.xpose.msra.mxu0 0
        %489 = vmatprep.subr.bf16.mxu0 0
        %490 = vmatpush1.bf16.xpose.msra.mxu0 0
        %491 = vmatprep.subr.bf16.mxu0 0
        %492 = vmatpush1.bf16.xpose.msra.mxu0 0
        %493 = vmatprep.subr.bf16.mxu0 0
        %494 = vmatpush1.bf16.xpose.msra.mxu0 0
        %495 = vmatprep.subr.bf16.mxu0 0
        %496 = vmatpush1.bf16.xpose.msra.mxu0 0
        %497 = vmatprep.subr.bf16.mxu0 0
        %498 = vmatpush1.bf16.xpose.msra.mxu0 0
        %499 = vmatprep.subr.bf16.mxu0 0
        %500 = vmatpush1.bf16.xpose.msra.mxu0 0
        %501 = vmatprep.subr.bf16.mxu0 0
        %502 = vmatpush1.bf16.xpose.msra.mxu0 0
        %503 = vmatprep.subr.bf16.mxu0 0
        %504 = vmatpush1.bf16.xpose.msra.mxu0 0
        %505 = vmatprep.mubr.bf16.mxu0 0
        %506 = vmatmul.mubr.bf16.gmra.mrb[0].mxu0 %v468
        %v507 = vpop.f32.mrb[0].mxu0
        %v508 = vadd.f32 0.0, %v507
        %v509 = vpop.f32.mrb[0].mxu0
        %v510 = vpop.f32.mrb[0].mxu0
        %v511 = vpop.f32.mrb[0].mxu0
        %512 = vdwg.mxu0
        %v513 = vmul.f32 %v508, 0.35355338
        %v514 = vadd.f32 %v513, %v358
        %v515 = vsel %vm466, %v514, -inf
        %516 = vmax.xlane.f32.xlu0 %v515
        %v517 = vpop.xlane.xlu0 %516
        %v518 = vsub.f32 %v514, %v517
        %v519 = vmul.f32 %v518, 1.442695
        %v520 = vpow.pop %v519
        %v521 = vsel %vm466, %v520, 0.0
        %522 = vadd.xlane.f32.xlu0 %v521
        %v523 = vpop.xlane.xlu0 %522
        %v524 = vrcp.pop %v523
        %v525 = vmul.f32 %v520, %v524
        %v526 = vpack.c.bf16 %v525, %v525
        %527 = vrot.lane.b32.xlu0 %v462, 64
        %v528 = vpop.permute.xlu0 %527
        %v530 = vsel %vm466, %v526, 0
        %vm532 = vcmask 1043456
        %v534 = vsel %vm532, %v528, 0
        %536 = vmatprep.subr.bf16.mxu0 0
        %537 = vmatpush1.bf16.msra.mxu0 %v534
        %538 = vmatprep.subr.bf16.mxu0 0
        %539 = vmatpush1.bf16.msra.mxu0 0
        %540 = vmatprep.subr.bf16.mxu0 0
        %541 = vmatpush1.bf16.msra.mxu0 0
        %542 = vmatprep.subr.bf16.mxu0 0
        %543 = vmatpush1.bf16.msra.mxu0 0
        %544 = vmatprep.subr.bf16.mxu0 0
        %545 = vmatpush1.bf16.msra.mxu0 0
        %546 = vmatprep.subr.bf16.mxu0 0
        %547 = vmatpush1.bf16.msra.mxu0 0
        %548 = vmatprep.subr.bf16.mxu0 0
        %549 = vmatpush1.bf16.msra.mxu0 0
        %550 = vmatprep.subr.bf16.mxu0 0
        %551 = vmatpush1.bf16.msra.mxu0 0
        %552 = vmatprep.subr.bf16.mxu0 0
        %553 = vmatpush1.bf16.msra.mxu0 0
        %554 = vmatprep.subr.bf16.mxu0 0
        %555 = vmatpush1.bf16.msra.mxu0 0
        %556 = vmatprep.subr.bf16.mxu0 0
        %557 = vmatpush1.bf16.msra.mxu0 0
        %558 = vmatprep.subr.bf16.mxu0 0
        %559 = vmatpush1.bf16.msra.mxu0 0
        %560 = vmatprep.subr.bf16.mxu0 0
        %561 = vmatpush1.bf16.msra.mxu0 0
        %562 = vmatprep.subr.bf16.mxu0 0
        %563 = vmatpush1.bf16.msra.mxu0 0
        %564 = vmatprep.subr.bf16.mxu0 0
        %565 = vmatpush1.bf16.msra.mxu0 0
        %566 = vmatprep.subr.bf16.mxu0 0
        %567 = vmatpush1.bf16.msra.mxu0 0
        %568 = vmatprep.mubr.bf16.mxu0 0
        %569 = vmatmul.mubr.bf16.gmra.mrb[0].mxu0 %v530
        %v570 = vpop.f32.mrb[0].mxu0
        %v571 = vadd.f32 0.0, %v570
        %v572 = vpop.f32.mrb[0].mxu0
        %v573 = vpop.f32.mrb[0].mxu0
        %v574 = vpop.f32.mrb[0].mxu0
        %575 = vdwg.mxu0
        %v576 = vpack.c.bf16 %v571, %v571
        %577 = vrot.lane.b32.xlu0 %v462, 120
        %v578 = vpop.permute.xlu0 %577
        %579 = vrot.lane.b32.xlu0 %v462, 88
        %v580 = vpop.permute.xlu0 %579
        %v582 = vsel %vm466, %v578, 0
        %v585 = vsel %vm466, %v580, 0
        %587 = vmatprep.subr.bf16.mxu0 0
        %588 = vmatpush1.bf16.xpose.msra.mxu0 %v585
        %589 = vmatprep.subr.bf16.mxu0 0
        %590 = vmatpush1.bf16.xpose.msra.mxu0 0
        %591 = vmatprep.subr.bf16.mxu0 0
        %592 = vmatpush1.bf16.xpose.msra.mxu0 0
        %593 = vmatprep.subr.bf16.mxu0 0
        %594 = vmatpush1.bf16.xpose.msra.mxu0 0
        %595 = vmatprep.subr.bf16.mxu0 0
        %596 = vmatpush1.bf16.xpose.msra.mxu0 0
        %597 = vmatprep.subr.bf16.mxu0 0
        %598 = vmatpush1.bf16.xpose.msra.mxu0 0
        %599 = vmatprep.subr.bf16.mxu0 0
        %600 = vmatpush1.bf16.xpose.msra.mxu0 0
        %601 = vmatprep.subr.bf16.mxu0 0
        %602 = vmatpush1.bf16.xpose.msra.mxu0 0
        %603 = vmatprep.subr.bf16.mxu0 0
        %604 = vmatpush1.bf16.xpose.msra.mxu0 0
        %605 = vmatprep.subr.bf16.mxu0 0
        %606 = vmatpush1.bf16.xpose.msra.mxu0 0
        %607 = vmatprep.subr.bf16.mxu0 0
        %608 = vmatpush1.bf16.xpose.msra.mxu0 0
        %609 = vmatprep.subr.bf16.mxu0 0
        %610 = vmatpush1.bf16.xpose.msra.mxu0 0
        %611 = vmatprep.subr.bf16.mxu0 0
        %612 = vmatpush1.bf16.xpose.msra.mxu0 0
        %613 = vmatprep.subr.bf16.mxu0 0
        %614 = vmatpush1.bf16.xpose.msra.mxu0 0
        %615 = vmatprep.subr.bf16.mxu0 0
        %616 = vmatpush1.bf16.xpose.msra.mxu0 0
        %617 = vmatprep.subr.bf16.mxu0 0
        %618 = vmatpush1.bf16.xpose.msra.mxu0 0
        %619 = vmatprep.mubr.bf16.mxu0 0
        %620 = vmatmul.mubr.bf16.gmra.mrb[0].mxu0 %v582
        %v621 = vpop.f32.mrb[0].mxu0
        %v622 = vadd.f32 0.0, %v621
        %v623 = vpop.f32.mrb[0].mxu0
        %v624 = vpop.f32.mrb[0].mxu0
        %v625 = vpop.f32.mrb[0].mxu0
        %626 = vdwg.mxu0
        %v627 = vmul.f32 %v622, 0.35355338
        %v628 = vadd.f32 %v627, %v358
        %v629 = vsel %vm466, %v628, -inf
        %630 = vmax.xlane.f32.xlu0 %v629
        %v631 = vpop.xlane.xlu0 %630
        %v632 = vsub.f32 %v628, %v631
        %v633 = vmul.f32 %v632, 1.442695
        %v634 = vpow.pop %v633
        %v635 = vsel %vm466, %v634, 0.0
        %636 = vadd.xlane.f32.xlu0 %v635
        %v637 = vpop.xlane.xlu0 %636
        %v638 = vrcp.pop %v637
        %v639 = vmul.f32 %v634, %v638
        %v640 = vpack.c.bf16 %v639, %v639
        %641 = vrot.lane.b32.xlu0 %v462, 56
        %v642 = vpop.permute.xlu0 %641
        %v644 = vsel %vm466, %v640, 0
        %v647 = vsel %vm532, %v642, 0
        %649 = vmatprep.subr.bf16.mxu0 0
        %650 = vmatpush1.bf16.msra.mxu0 %v647
        %651 = vmatprep.subr.bf16.mxu0 0
        %652 = vmatpush1.bf16.msra.mxu0 0
        %653 = vmatprep.subr.bf16.mxu0 0
        %654 = vmatpush1.bf16.msra.mxu0 0
        %655 = vmatprep.subr.bf16.mxu0 0
        %656 = vmatpush1.bf16.msra.mxu0 0
        %657 = vmatprep.subr.bf16.mxu0 0
        %658 = vmatpush1.bf16.msra.mxu0 0
        %659 = vmatprep.subr.bf16.mxu0 0
        %660 = vmatpush1.bf16.msra.mxu0 0
        %661 = vmatprep.subr.bf16.mxu0 0
        %662 = vmatpush1.bf16.msra.mxu0 0
        %663 = vmatprep.subr.bf16.mxu0 0
        %664 = vmatpush1.bf16.msra.mxu0 0
        %665 = vmatprep.subr.bf16.mxu0 0
        %666 = vmatpush1.bf16.msra.mxu0 0
        %667 = vmatprep.subr.bf16.mxu0 0
        %668 = vmatpush1.bf16.msra.mxu0 0
        %669 = vmatprep.subr.bf16.mxu0 0
        %670 = vmatpush1.bf16.msra.mxu0 0
        %671 = vmatprep.subr.bf16.mxu0 0
        %672 = vmatpush1.bf16.msra.mxu0 0
        %673 = vmatprep.subr.bf16.mxu0 0
        %674 = vmatpush1.bf16.msra.mxu0 0
        %675 = vmatprep.subr.bf16.mxu0 0
        %676 = vmatpush1.bf16.msra.mxu0 0
        %677 = vmatprep.subr.bf16.mxu0 0
        %678 = vmatpush1.bf16.msra.mxu0 0
        %679 = vmatprep.subr.bf16.mxu0 0
        %680 = vmatpush1.bf16.msra.mxu0 0
        %681 = vmatprep.mubr.bf16.mxu0 0
        %682 = vmatmul.mubr.bf16.gmra.mrb[0].mxu0 %v644
        %v683 = vpop.f32.mrb[0].mxu0
        %v684 = vadd.f32 0.0, %v683
        %v685 = vpop.f32.mrb[0].mxu0
        %v686 = vpop.f32.mrb[0].mxu0
        %v687 = vpop.f32.mrb[0].mxu0
        %688 = vdwg.mxu0
        %v689 = vpack.c.bf16 %v684, %v684
        %v691 = vsel %vm466, %v689, 0
        %v694 = vsel %vm532, %v365, 0
        %696 = vmatprep.subr.bf16.mxu0 0
        %697 = vmatpush1.bf16.msra.mxu0 %v694
        %698 = vmatprep.subr.bf16.mxu0 0
        %699 = vmatpush1.bf16.msra.mxu0 0
        %700 = vmatprep.subr.bf16.mxu0 0
        %701 = vmatpush1.bf16.msra.mxu0 0
        %702 = vmatprep.subr.bf16.mxu0 0
        %703 = vmatpush1.bf16.msra.mxu0 0
        %704 = vmatprep.subr.bf16.mxu0 0
        %705 = vmatpush1.bf16.msra.mxu0 0
        %706 = vmatprep.subr.bf16.mxu0 0
        %707 = vmatpush1.bf16.msra.mxu0 0
        %708 = vmatprep.subr.bf16.mxu0 0
        %709 = vmatpush1.bf16.msra.mxu0 0
        %710 = vmatprep.subr.bf16.mxu0 0
        %711 = vmatpush1.bf16.msra.mxu0 0
        %712 = vmatprep.subr.bf16.mxu0 0
        %713 = vmatpush1.bf16.msra.mxu0 0
        %714 = vmatprep.subr.bf16.mxu0 0
        %715 = vmatpush1.bf16.msra.mxu0 0
        %716 = vmatprep.subr.bf16.mxu0 0
        %717 = vmatpush1.bf16.msra.mxu0 0
        %718 = vmatprep.subr.bf16.mxu0 0
        %719 = vmatpush1.bf16.msra.mxu0 0
        %720 = vmatprep.subr.bf16.mxu0 0
        %721 = vmatpush1.bf16.msra.mxu0 0
        %722 = vmatprep.subr.bf16.mxu0 0
        %723 = vmatpush1.bf16.msra.mxu0 0
        %724 = vmatprep.subr.bf16.mxu0 0
        %725 = vmatpush1.bf16.msra.mxu0 0
        %726 = vmatprep.subr.bf16.mxu0 0
        %727 = vmatpush1.bf16.msra.mxu0 0
        %728 = vmatprep.mubr.bf16.mxu0 0
        %729 = vmatmul.mubr.bf16.gmra.mrb[0].mxu0 %v691
        %v730 = vpop.f32.mrb[0].mxu0
        %v731 = vadd.f32 0.0, %v730
        %v732 = vpop.f32.mrb[0].mxu0
        %v733 = vpop.f32.mrb[0].mxu0
        %v734 = vpop.f32.mrb[0].mxu0
        %735 = vdwg.mxu0
        %v737 = vsel %vm466, %v576, 0
        %v740 = vsel %vm532, %v364, 0
        %742 = vmatprep.subr.bf16.mxu0 0
        %743 = vmatpush1.bf16.msra.mxu0 %v740
        %744 = vmatprep.subr.bf16.mxu0 0
        %745 = vmatpush1.bf16.msra.mxu0 0
        %746 = vmatprep.subr.bf16.mxu0 0
        %747 = vmatpush1.bf16.msra.mxu0 0
        %748 = vmatprep.subr.bf16.mxu0 0
        %749 = vmatpush1.bf16.msra.mxu0 0
        %750 = vmatprep.subr.bf16.mxu0 0
        %751 = vmatpush1.bf16.msra.mxu0 0
        %752 = vmatprep.subr.bf16.mxu0 0
        %753 = vmatpush1.bf16.msra.mxu0 0
        %754 = vmatprep.subr.bf16.mxu0 0
        %755 = vmatpush1.bf16.msra.mxu0 0
        %756 = vmatprep.subr.bf16.mxu0 0
        %757 = vmatpush1.bf16.msra.mxu0 0
        %758 = vmatprep.subr.bf16.mxu0 0
        %759 = vmatpush1.bf16.msra.mxu0 0
        %760 = vmatprep.subr.bf16.mxu0 0
        %761 = vmatpush1.bf16.msra.mxu0 0
        %762 = vmatprep.subr.bf16.mxu0 0
        %763 = vmatpush1.bf16.msra.mxu0 0
        %764 = vmatprep.subr.bf16.mxu0 0
        %765 = vmatpush1.bf16.msra.mxu0 0
        %766 = vmatprep.subr.bf16.mxu0 0
        %767 = vmatpush1.bf16.msra.mxu0 0
        %768 = vmatprep.subr.bf16.mxu0 0
        %769 = vmatpush1.bf16.msra.mxu0 0
        %770 = vmatprep.subr.bf16.mxu0 0
        %771 = vmatpush1.bf16.msra.mxu0 0
        %772 = vmatprep.subr.bf16.mxu0 0
        %773 = vmatpush1.bf16.msra.mxu0 0
        %774 = vmatprep.mubr.bf16.mxu0 0
        %775 = vmatmul.mubr.bf16.gmra.mrb[0].mxu0 %v737
        %v776 = vpop.f32.mrb[0].mxu0
        %v777 = vadd.f32 %v731, %v776
        %v778 = vpop.f32.mrb[0].mxu0
        %v779 = vpop.f32.mrb[0].mxu0
        %v780 = vpop.f32.mrb[0].mxu0
        %781 = vdwg.mxu0
        %782 = vrot.lane.b32.xlu0 %v462, 112
        %v783 = vpop.permute.xlu0 %782
        %784 = vrot.lane.b32.xlu0 %v462, 80
        %v785 = vpop.permute.xlu0 %784
        %v787 = vsel %vm466, %v783, 0
        %v790 = vsel %vm466, %v785, 0
        %792 = vmatprep.subr.bf16.mxu0 0
        %793 = vmatpush1.bf16.xpose.msra.mxu0 %v790
        %794 = vmatprep.subr.bf16.mxu0 0
        %795 = vmatpush1.bf16.xpose.msra.mxu0 0
        %796 = vmatprep.subr.bf16.mxu0 0
        %797 = vmatpush1.bf16.xpose.msra.mxu0 0
        %798 = vmatprep.subr.bf16.mxu0 0
        %799 = vmatpush1.bf16.xpose.msra.mxu0 0
        %800 = vmatprep.subr.bf16.mxu0 0
        %801 = vmatpush1.bf16.xpose.msra.mxu0 0
        %802 = vmatprep.subr.bf16.mxu0 0
        %803 = vmatpush1.bf16.xpose.msra.mxu0 0
        %804 = vmatprep.subr.bf16.mxu0 0
        %805 = vmatpush1.bf16.xpose.msra.mxu0 0
        %806 = vmatprep.subr.bf16.mxu0 0
        %807 = vmatpush1.bf16.xpose.msra.mxu0 0
        %808 = vmatprep.subr.bf16.mxu0 0
        %809 = vmatpush1.bf16.xpose.msra.mxu0 0
        %810 = vmatprep.subr.bf16.mxu0 0
        %811 = vmatpush1.bf16.xpose.msra.mxu0 0
        %812 = vmatprep.subr.bf16.mxu0 0
        %813 = vmatpush1.bf16.xpose.msra.mxu0 0
        %814 = vmatprep.subr.bf16.mxu0 0
        %815 = vmatpush1.bf16.xpose.msra.mxu0 0
        %816 = vmatprep.subr.bf16.mxu0 0
        %817 = vmatpush1.bf16.xpose.msra.mxu0 0
        %818 = vmatprep.subr.bf16.mxu0 0
        %819 = vmatpush1.bf16.xpose.msra.mxu0 0
        %820 = vmatprep.subr.bf16.mxu0 0
        %821 = vmatpush1.bf16.xpose.msra.mxu0 0
        %822 = vmatprep.subr.bf16.mxu0 0
        %823 = vmatpush1.bf16.xpose.msra.mxu0 0
        %824 = vmatprep.mubr.bf16.mxu0 0
        %825 = vmatmul.mubr.bf16.gmra.mrb[0].mxu0 %v787
        %v826 = vpop.f32.mrb[0].mxu0
        %v827 = vadd.f32 0.0, %v826
        %v828 = vpop.f32.mrb[0].mxu0
        %v829 = vpop.f32.mrb[0].mxu0
        %v830 = vpop.f32.mrb[0].mxu0
        %831 = vdwg.mxu0
        %v832 = vmul.f32 %v827, 0.35355338
        %v833 = vadd.f32 %v832, %v358
        %v834 = vsel %vm466, %v833, -inf
        %835 = vmax.xlane.f32.xlu0 %v834
        %v836 = vpop.xlane.xlu0 %835
        %v837 = vsub.f32 %v833, %v836
        %v838 = vmul.f32 %v837, 1.442695
        %v839 = vpow.pop %v838
        %v840 = vsel %vm466, %v839, 0.0
        %841 = vadd.xlane.f32.xlu0 %v840
        %v842 = vpop.xlane.xlu0 %841
        %v843 = vrcp.pop %v842
        %v844 = vmul.f32 %v839, %v843
        %v845 = vpack.c.bf16 %v844, %v844
        %846 = vrot.lane.b32.xlu0 %v462, 48
        %v847 = vpop.permute.xlu0 %846
        %v849 = vsel %vm466, %v845, 0
        %v852 = vsel %vm532, %v847, 0
        %854 = vmatprep.subr.bf16.mxu0 0
        %855 = vmatpush1.bf16.msra.mxu0 %v852
        %856 = vmatprep.subr.bf16.mxu0 0
        %857 = vmatpush1.bf16.msra.mxu0 0
        %858 = vmatprep.subr.bf16.mxu0 0
        %859 = vmatpush1.bf16.msra.mxu0 0
        %860 = vmatprep.subr.bf16.mxu0 0
        %861 = vmatpush1.bf16.msra.mxu0 0
        %862 = vmatprep.subr.bf16.mxu0 0
        %863 = vmatpush1.bf16.msra.mxu0 0
        %864 = vmatprep.subr.bf16.mxu0 0
        %865 = vmatpush1.bf16.msra.mxu0 0
        %866 = vmatprep.subr.bf16.mxu0 0
        %867 = vmatpush1.bf16.msra.mxu0 0
        %868 = vmatprep.subr.bf16.mxu0 0
        %869 = vmatpush1.bf16.msra.mxu0 0
        %870 = vmatprep.subr.bf16.mxu0 0
        %871 = vmatpush1.bf16.msra.mxu0 0
        %872 = vmatprep.subr.bf16.mxu0 0
        %873 = vmatpush1.bf16.msra.mxu0 0
        %874 = vmatprep.subr.bf16.mxu0 0
        %875 = vmatpush1.bf16.msra.mxu0 0
        %876 = vmatprep.subr.bf16.mxu0 0
        %877 = vmatpush1.bf16.msra.mxu0 0
        %878 = vmatprep.subr.bf16.mxu0 0
        %879 = vmatpush1.bf16.msra.mxu0 0
        %880 = vmatprep.subr.bf16.mxu0 0
        %881 = vmatpush1.bf16.msra.mxu0 0
        %882 = vmatprep.subr.bf16.mxu0 0
        %883 = vmatpush1.bf16.msra.mxu0 0
        %884 = vmatprep.subr.bf16.mxu0 0
        %885 = vmatpush1.bf16.msra.mxu0 0
        %886 = vmatprep.mubr.bf16.mxu0 0
        %887 = vmatmul.mubr.bf16.gmra.mrb[0].mxu0 %v849
        %v888 = vpop.f32.mrb[0].mxu0
        %v889 = vadd.f32 0.0, %v888
        %v890 = vpop.f32.mrb[0].mxu0
        %v891 = vpop.f32.mrb[0].mxu0
        %v892 = vpop.f32.mrb[0].mxu0
        %893 = vdwg.mxu0
        %v894 = vpack.c.bf16 %v889, %v889
        %v896 = vsel %vm466, %v894, 0
        %v899 = vsel %vm532, %v366, 0
        %901 = vmatprep.subr.bf16.mxu0 0
        %902 = vmatpush1.bf16.msra.mxu0 %v899
        %903 = vmatprep.subr.bf16.mxu0 0
        %904 = vmatpush1.bf16.msra.mxu0 0
        %905 = vmatprep.subr.bf16.mxu0 0
        %906 = vmatpush1.bf16.msra.mxu0 0
        %907 = vmatprep.subr.bf16.mxu0 0
        %908 = vmatpush1.bf16.msra.mxu0 0
        %909 = vmatprep.subr.bf16.mxu0 0
        %910 = vmatpush1.bf16.msra.mxu0 0
        %911 = vmatprep.subr.bf16.mxu0 0
        %912 = vmatpush1.bf16.msra.mxu0 0
        %913 = vmatprep.subr.bf16.mxu0 0
        %914 = vmatpush1.bf16.msra.mxu0 0
        %915 = vmatprep.subr.bf16.mxu0 0
        %916 = vmatpush1.bf16.msra.mxu0 0
        %917 = vmatprep.subr.bf16.mxu0 0
        %918 = vmatpush1.bf16.msra.mxu0 0
        %919 = vmatprep.subr.bf16.mxu0 0
        %920 = vmatpush1.bf16.msra.mxu0 0
        %921 = vmatprep.subr.bf16.mxu0 0
        %922 = vmatpush1.bf16.msra.mxu0 0
        %923 = vmatprep.subr.bf16.mxu0 0
        %924 = vmatpush1.bf16.msra.mxu0 0
        %925 = vmatprep.subr.bf16.mxu0 0
        %926 = vmatpush1.bf16.msra.mxu0 0
        %927 = vmatprep.subr.bf16.mxu0 0
        %928 = vmatpush1.bf16.msra.mxu0 0
        %929 = vmatprep.subr.bf16.mxu0 0
        %930 = vmatpush1.bf16.msra.mxu0 0
        %931 = vmatprep.subr.bf16.mxu0 0
        %932 = vmatpush1.bf16.msra.mxu0 0
        %933 = vmatprep.mubr.bf16.mxu0 0
        %934 = vmatmul.mubr.bf16.gmra.mrb[0].mxu0 %v896
        %v935 = vpop.f32.mrb[0].mxu0
        %v936 = vadd.f32 0.0, %v935
        %v937 = vpop.f32.mrb[0].mxu0
        %v938 = vpop.f32.mrb[0].mxu0
        %v939 = vpop.f32.mrb[0].mxu0
        %940 = vdwg.mxu0
        %v941 = vadd.f32 %v777, %v936
        %942 = vrot.lane.b32.xlu0 %v462, 104
        %v943 = vpop.permute.xlu0 %942
        %944 = vrot.lane.b32.xlu0 %v462, 72
        %v945 = vpop.permute.xlu0 %944
        %v947 = vsel %vm466, %v943, 0
        %v950 = vsel %vm466, %v945, 0
        %952 = vmatprep.subr.bf16.mxu0 0
        %953 = vmatpush1.bf16.xpose.msra.mxu0 %v950
        %954 = vmatprep.subr.bf16.mxu0 0
        %955 = vmatpush1.bf16.xpose.msra.mxu0 0
        %956 = vmatprep.subr.bf16.mxu0 0
        %957 = vmatpush1.bf16.xpose.msra.mxu0 0
        %958 = vmatprep.subr.bf16.mxu0 0
        %959 = vmatpush1.bf16.xpose.msra.mxu0 0
        %960 = vmatprep.subr.bf16.mxu0 0
        %961 = vmatpush1.bf16.xpose.msra.mxu0 0
        %962 = vmatprep.subr.bf16.mxu0 0
        %963 = vmatpush1.bf16.xpose.msra.mxu0 0
        %964 = vmatprep.subr.bf16.mxu0 0
        %965 = vmatpush1.bf16.xpose.msra.mxu0 0
        %966 = vmatprep.subr.bf16.mxu0 0
        %967 = vmatpush1.bf16.xpose.msra.mxu0 0
        %968 = vmatprep.subr.bf16.mxu0 0
        %969 = vmatpush1.bf16.xpose.msra.mxu0 0
        %970 = vmatprep.subr.bf16.mxu0 0
        %971 = vmatpush1.bf16.xpose.msra.mxu0 0
        %972 = vmatprep.subr.bf16.mxu0 0
        %973 = vmatpush1.bf16.xpose.msra.mxu0 0
        %974 = vmatprep.subr.bf16.mxu0 0
        %975 = vmatpush1.bf16.xpose.msra.mxu0 0
        %976 = vmatprep.subr.bf16.mxu0 0
        %977 = vmatpush1.bf16.xpose.msra.mxu0 0
        %978 = vmatprep.subr.bf16.mxu0 0
        %979 = vmatpush1.bf16.xpose.msra.mxu0 0
        %980 = vmatprep.subr.bf16.mxu0 0
        %981 = vmatpush1.bf16.xpose.msra.mxu0 0
        %982 = vmatprep.subr.bf16.mxu0 0
        %983 = vmatpush1.bf16.xpose.msra.mxu0 0
        %984 = vmatprep.mubr.bf16.mxu0 0
        %985 = vmatmul.mubr.bf16.gmra.mrb[0].mxu0 %v947
        %v986 = vpop.f32.mrb[0].mxu0
        %v987 = vadd.f32 0.0, %v986
        %v988 = vpop.f32.mrb[0].mxu0
        %v989 = vpop.f32.mrb[0].mxu0
        %v990 = vpop.f32.mrb[0].mxu0
        %991 = vdwg.mxu0
        %v992 = vmul.f32 %v987, 0.35355338
        %v993 = vadd.f32 %v992, %v358
        %v994 = vsel %vm466, %v993, -inf
        %995 = vmax.xlane.f32.xlu0 %v994
        %v996 = vpop.xlane.xlu0 %995
        %v997 = vsub.f32 %v993, %v996
        %v998 = vmul.f32 %v997, 1.442695
        %v999 = vpow.pop %v998
        %v1000 = vsel %vm466, %v999, 0.0
        %1001 = vadd.xlane.f32.xlu0 %v1000
        %v1002 = vpop.xlane.xlu0 %1001
        %v1003 = vrcp.pop %v1002
        %v1004 = vmul.f32 %v999, %v1003
        %v1005 = vpack.c.bf16 %v1004, %v1004
        %1006 = vrot.lane.b32.xlu0 %v462, 40
        %v1007 = vpop.permute.xlu0 %1006
        %v1009 = vsel %vm466, %v1005, 0
        %v1012 = vsel %vm532, %v1007, 0
        %1014 = vmatprep.subr.bf16.mxu0 0
        %1015 = vmatpush1.bf16.msra.mxu0 %v1012
        %1016 = vmatprep.subr.bf16.mxu0 0
        %1017 = vmatpush1.bf16.msra.mxu0 0
        %1018 = vmatprep.subr.bf16.mxu0 0
        %1019 = vmatpush1.bf16.msra.mxu0 0
        %1020 = vmatprep.subr.bf16.mxu0 0
        %1021 = vmatpush1.bf16.msra.mxu0 0
        %1022 = vmatprep.subr.bf16.mxu0 0
        %1023 = vmatpush1.bf16.msra.mxu0 0
        %1024 = vmatprep.subr.bf16.mxu0 0
        %1025 = vmatpush1.bf16.msra.mxu0 0
        %1026 = vmatprep.subr.bf16.mxu0 0
        %1027 = vmatpush1.bf16.msra.mxu0 0
        %1028 = vmatprep.subr.bf16.mxu0 0
        %1029 = vmatpush1.bf16.msra.mxu0 0
        %1030 = vmatprep.subr.bf16.mxu0 0
        %1031 = vmatpush1.bf16.msra.mxu0 0
        %1032 = vmatprep.subr.bf16.mxu0 0
        %1033 = vmatpush1.bf16.msra.mxu0 0
        %1034 = vmatprep.subr.bf16.mxu0 0
        %1035 = vmatpush1.bf16.msra.mxu0 0
        %1036 = vmatprep.subr.bf16.mxu0 0
        %1037 = vmatpush1.bf16.msra.mxu0 0
        %1038 = vmatprep.subr.bf16.mxu0 0
        %1039 = vmatpush1.bf16.msra.mxu0 0
        %1040 = vmatprep.subr.bf16.mxu0 0
        %1041 = vmatpush1.bf16.msra.mxu0 0
        %1042 = vmatprep.subr.bf16.mxu0 0
        %1043 = vmatpush1.bf16.msra.mxu0 0
        %1044 = vmatprep.subr.bf16.mxu0 0
        %1045 = vmatpush1.bf16.msra.mxu0 0
        %1046 = vmatprep.mubr.bf16.mxu0 0
        %1047 = vmatmul.mubr.bf16.gmra.mrb[0].mxu0 %v1009
        %v1048 = vpop.f32.mrb[0].mxu0
        %v1049 = vadd.f32 0.0, %v1048
        %v1050 = vpop.f32.mrb[0].mxu0
        %v1051 = vpop.f32.mrb[0].mxu0
        %v1052 = vpop.f32.mrb[0].mxu0
        %1053 = vdwg.mxu0
        %v1054 = vpack.c.bf16 %v1049, %v1049
        %v1056 = vsel %vm466, %v1054, 0
        %v1059 = vsel %vm532, %v367, 0
        %1061 = vmatprep.subr.bf16.mxu0 0
        %1062 = vmatpush1.bf16.msra.mxu0 %v1059
        %1063 = vmatprep.subr.bf16.mxu0 0
        %1064 = vmatpush1.bf16.msra.mxu0 0
        %1065 = vmatprep.subr.bf16.mxu0 0
        %1066 = vmatpush1.bf16.msra.mxu0 0
        %1067 = vmatprep.subr.bf16.mxu0 0
        %1068 = vmatpush1.bf16.msra.mxu0 0
        %1069 = vmatprep.subr.bf16.mxu0 0
        %1070 = vmatpush1.bf16.msra.mxu0 0
        %1071 = vmatprep.subr.bf16.mxu0 0
        %1072 = vmatpush1.bf16.msra.mxu0 0
        %1073 = vmatprep.subr.bf16.mxu0 0
        %1074 = vmatpush1.bf16.msra.mxu0 0
        %1075 = vmatprep.subr.bf16.mxu0 0
        %1076 = vmatpush1.bf16.msra.mxu0 0
        %1077 = vmatprep.subr.bf16.mxu0 0
        %1078 = vmatpush1.bf16.msra.mxu0 0
        %1079 = vmatprep.subr.bf16.mxu0 0
        %1080 = vmatpush1.bf16.msra.mxu0 0
        %1081 = vmatprep.subr.bf16.mxu0 0
        %1082 = vmatpush1.bf16.msra.mxu0 0
        %1083 = vmatprep.subr.bf16.mxu0 0
        %1084 = vmatpush1.bf16.msra.mxu0 0
        %1085 = vmatprep.subr.bf16.mxu0 0
        %1086 = vmatpush1.bf16.msra.mxu0 0
        %1087 = vmatprep.subr.bf16.mxu0 0
        %1088 = vmatpush1.bf16.msra.mxu0 0
        %1089 = vmatprep.subr.bf16.mxu0 0
        %1090 = vmatpush1.bf16.msra.mxu0 0
        %1091 = vmatprep.subr.bf16.mxu0 0
        %1092 = vmatpush1.bf16.msra.mxu0 0
        %1093 = vmatprep.mubr.bf16.mxu0 0
        %1094 = vmatmul.mubr.bf16.gmra.mrb[0].mxu0 %v1056
        %v1095 = vpop.f32.mrb[0].mxu0
        %v1096 = vadd.f32 0.0, %v1095
        %v1097 = vpop.f32.mrb[0].mxu0
        %v1098 = vpop.f32.mrb[0].mxu0
        %v1099 = vpop.f32.mrb[0].mxu0
        %1100 = vdwg.mxu0
        %v1101 = vadd.f32 %v941, %v1096
        %v1102 = vadd.f32 %v359, %v1101
        %v1103 = vlaneseq
        %v1104 = vshrl.u32 %v1103, 7
        %v1105 = vsub.s32 3, %v1104
        %v1106 = vrot.slane %v376, %v1105
        %v1107 = vadd.f32 %v1102, %v1106
        %v1108 = vsel %vm377, %v1107, 0.0
        %1109 = vadd.xlane.f32.xlu0 %v1108
        %v1110 = vpop.xlane.xlu0 %1109
        %v1111 = vmul.f32 %v1110, %v381
        %v1112 = vsub.f32 %v1107, %v1111
        %v1113 = vmul.f32 %v1112, %v1112
        %v1114 = vsel %vm377, %v1113, 0.0
        %1115 = vadd.xlane.f32.xlu0 %v1114
        %v1116 = vpop.xlane.xlu0 %1115
        %v1117 = vmul.f32 %v1116, %v381
        %v1118 = vadd.f32 %v1117, 1e-05
        %v1119 = vrsqrt.pop %v1118
        %v1120 = vmul.f32 %v1112, %v1119
        %v1121 = vlaneseq
        %v1122 = vshrl.u32 %v1121, 7
        %v1123 = vsub.s32 4, %v1122
        %v1124 = vrot.slane %v376, %v1123
        %v1125 = vmul.f32 %v1120, %v1124
        %v1126 = vlaneseq
        %v1127 = vshrl.u32 %v1126, 7
        %v1128 = vsub.s32 5, %v1127
        %v1129 = vrot.slane %v376, %v1128
        %v1130 = vadd.f32 %v1125, %v1129
        %v1131 = vpack.c.bf16 %v1130, %v1130
        %v1132 = vlaneseq
        %v1133 = vshrl.u32 %v1132, 7
        %v1134 = vsub.s32 6, %v1133
        %v1135 = vrot.slane %v376, %v1134
        %v1140 = vunpack.c.l.b16 %v368
        %v1141 = vunpack.c.l.b16 %v369
        %v1142 = vunpack.c.l.b16 %v370
        %v1143 = vunpack.c.l.b16 %v371
        %v1144 = vpack.c.b16 %v1141, %v1140
        %v1145 = vpack.c.b16 %v1143, %v1142
        %v1149 = vsel %vm377, %v1131, 0
        %1151 = vmatprep.subr.bf16.mxu0 0
        %1152 = vmatpush1.bf16.msra.mxu0 %v1144
        %1153 = vmatprep.subr.bf16.mxu0 0
        %1154 = vmatpush1.bf16.msra.mxu0 %v1145
        %1155 = vmatprep.subr.bf16.mxu0 0
        %1156 = vmatpush1.bf16.msra.mxu0 0
        %1157 = vmatprep.subr.bf16.mxu0 0
        %1158 = vmatpush1.bf16.msra.mxu0 0
        %1159 = vmatprep.subr.bf16.mxu0 0
        %1160 = vmatpush1.bf16.msra.mxu0 0
        %1161 = vmatprep.subr.bf16.mxu0 0
        %1162 = vmatpush1.bf16.msra.mxu0 0
        %1163 = vmatprep.subr.bf16.mxu0 0
        %1164 = vmatpush1.bf16.msra.mxu0 0
        %1165 = vmatprep.subr.bf16.mxu0 0
        %1166 = vmatpush1.bf16.msra.mxu0 0
        %1167 = vmatprep.subr.bf16.mxu0 0
        %1168 = vmatpush1.bf16.msra.mxu0 0
        %1169 = vmatprep.subr.bf16.mxu0 0
        %1170 = vmatpush1.bf16.msra.mxu0 0
        %1171 = vmatprep.subr.bf16.mxu0 0
        %1172 = vmatpush1.bf16.msra.mxu0 0
        %1173 = vmatprep.subr.bf16.mxu0 0
        %1174 = vmatpush1.bf16.msra.mxu0 0
        %1175 = vmatprep.subr.bf16.mxu0 0
        %1176 = vmatpush1.bf16.msra.mxu0 0
        %1177 = vmatprep.subr.bf16.mxu0 0
        %1178 = vmatpush1.bf16.msra.mxu0 0
        %1179 = vmatprep.subr.bf16.mxu0 0
        %1180 = vmatpush1.bf16.msra.mxu0 0
        %1181 = vmatprep.subr.bf16.mxu0 0
        %1182 = vmatpush1.bf16.msra.mxu0 0
        %1183 = vmatprep.mubr.bf16.mxu0 0
        %1184 = vmatmul.mubr.bf16.gmra.mrb[0].mxu0 %v1149
        %v1185 = vpop.f32.mrb[0].mxu0
        %v1186 = vadd.f32 %v1135, %v1185
        %v1187 = vpop.f32.mrb[0].mxu0
        %v1188 = vpop.f32.mrb[0].mxu0
        %v1189 = vpop.f32.mrb[0].mxu0
        %1190 = vdwg.mxu0
        %v1191 = vmul.f32 %v1186, %v1186
        %v1192 = vmul.f32 %v1186, %v1191
        %v1193 = vmul.f32 %v1192, 0.044715
        %v1194 = vadd.f32 %v1186, %v1193
        %v1195 = vmul.f32 %v1194, 0.7978846
        %v1196 = vtanh.pop %v1195
        %v1197 = vadd.f32 %v1196, 1.0
        %v1198 = vmul.f32 %v1197, 0.5
        %v1199 = vmul.f32 %v1186, %v1198
        %v1200 = vpack.c.bf16 %v1199, %v1199
        %v1201 = vlaneseq
        %v1202 = vshrl.u32 %v1201, 7
        %v1203 = vsub.s32 7, %v1202
        %v1204 = vrot.slane %v376, %v1203
        %v1209 = vunpack.c.l.b16 %v372
        %v1210 = vunpack.c.l.b16 %v373
        %v1211 = vunpack.c.l.b16 %v374
        %v1212 = vunpack.c.l.b16 %v375
        %v1213 = vpack.c.b16 %v1210, %v1209
        %v1214 = vpack.c.b16 %v1212, %v1211
        %1217 = vmatprep.subr.bf16.mxu0 0
        %1218 = vmatpush1.bf16.xpose.msra.mxu0 %v1213
        %1219 = vmatprep.subr.bf16.mxu0 0
        %1220 = vmatpush1.bf16.xpose.msra.mxu0 %v1214
        %1221 = vmatprep.subr.bf16.mxu0 0
        %1222 = vmatpush1.bf16.xpose.msra.mxu0 0
        %1223 = vmatprep.subr.bf16.mxu0 0
        %1224 = vmatpush1.bf16.xpose.msra.mxu0 0
        %1225 = vmatprep.subr.bf16.mxu0 0
        %1226 = vmatpush1.bf16.xpose.msra.mxu0 0
        %1227 = vmatprep.subr.bf16.mxu0 0
        %1228 = vmatpush1.bf16.xpose.msra.mxu0 0
        %1229 = vmatprep.subr.bf16.mxu0 0
        %1230 = vmatpush1.bf16.xpose.msra.mxu0 0
        %1231 = vmatprep.subr.bf16.mxu0 0
        %1232 = vmatpush1.bf16.xpose.msra.mxu0 0
        %1233 = vmatprep.subr.bf16.mxu0 0
        %1234 = vmatpush1.bf16.xpose.msra.mxu0 0
        %1235 = vmatprep.subr.bf16.mxu0 0
        %1236 = vmatpush1.bf16.xpose.msra.mxu0 0
        %1237 = vmatprep.subr.bf16.mxu0 0
        %1238 = vmatpush1.bf16.xpose.msra.mxu0 0
        %1239 = vmatprep.subr.bf16.mxu0 0
        %1240 = vmatpush1.bf16.xpose.msra.mxu0 0
        %1241 = vmatprep.subr.bf16.mxu0 0
        %1242 = vmatpush1.bf16.xpose.msra.mxu0 0
        %1243 = vmatprep.subr.bf16.mxu0 0
        %1244 = vmatpush1.bf16.xpose.msra.mxu0 0
        %1245 = vmatprep.subr.bf16.mxu0 0
        %1246 = vmatpush1.bf16.xpose.msra.mxu0 0
        %1247 = vmatprep.subr.bf16.mxu0 0
        %1248 = vmatpush1.bf16.xpose.msra.mxu0 0
        %1249 = vmatprep.mubr.bf16.mxu0 0
        %1250 = vmatmul.mubr.bf16.gmra.mrb[0].mxu0 %v1200
        %v1251 = vpop.f32.mrb[0].mxu0
        %v1252 = vadd.f32 %v1204, %v1251
        %v1253 = vpop.f32.mrb[0].mxu0
        %v1254 = vpop.f32.mrb[0].mxu0
        %v1255 = vpop.f32.mrb[0].mxu0
        %1256 = vdwg.mxu0
        %v1257 = vadd.f32 %v1107, %v1252
        %s1258 = scalar_lea.vmem [#allocation5], 16
        %v1259 = vld [vmem:[%s1258] sm:$0xf]
        %v1260 = vld [vmem:[%s1258 + $0x4] sm:$0xf]
        %v1261 = vld [vmem:[%s1258 + $0x8] sm:$0xf]
        %v1262 = vld [vmem:[%s1258 + $0xc] sm:$0xf]
        %s1263 = scalar_lea.vmem [#allocation7], 16
        %v1264 = vld [vmem:[%s1263] sm:$0xf]
        %v1265 = vld [vmem:[%s1263 + $0x4] sm:$0xf]
        %v1266 = vld [vmem:[%s1263 + $0x8] sm:$0xf]
        %v1267 = vld [vmem:[%s1263 + $0xc] sm:$0xf]
        %s1268 = scalar_lea.vmem [#allocation8], 16
        %v1269 = vld [vmem:[%s1268] sm:$0xf]
        %v1270 = vld [vmem:[%s1268 + $0x4] sm:$0xf]
        %v1271 = vld [vmem:[%s1268 + $0x8] sm:$0xf]
        %v1272 = vld [vmem:[%s1268 + $0xc] sm:$0xf]
        %s1273 = scalar_lea.vmem [#allocation10], 16
        %v1274 = vld [vmem:[%s1273] sm:$0xf]
        %v1275 = vld [vmem:[%s1273 + $0x4] sm:$0xf]
        %v1276 = vld [vmem:[%s1273 + $0x8] sm:$0xf]
        %v1277 = vld [vmem:[%s1273 + $0xc] sm:$0xf]
        %s1278 = scalar_lea.vmem %s5, 8
        %v1279 = vld [vmem:[%s1278] sm:$0xff]
        %v1280 = vsel %vm377, %v1257, 0.0
        %1281 = vadd.xlane.f32.xlu0 %v1280
        %v1282 = vpop.xlane.xlu0 %1281
        %v1283 = vmul.f32 %v1282, %v381
        %v1284 = vsub.f32 %v1257, %v1283
        %v1285 = vmul.f32 %v1284, %v1284
        %v1286 = vsel %vm377, %v1285, 0.0
        %1287 = vadd.xlane.f32.xlu0 %v1286
        %v1288 = vpop.xlane.xlu0 %1287
        %v1289 = vmul.f32 %v1288, %v381
        %v1290 = vadd.f32 %v1289, 1e-05
        %v1291 = vrsqrt.pop %v1290
        %v1292 = vmul.f32 %v1284, %v1291
        %v1293 = vlaneseq
        %v1294 = vshrl.u32 %v1293, 7
        %v1295 = vsub.s32 0, %v1294
        %v1296 = vrot.slane %v1279, %v1295
        %v1297 = vmul.f32 %v1292, %v1296
        %v1298 = vlaneseq
        %v1299 = vshrl.u32 %v1298, 7
        %v1300 = vsub.s32 1, %v1299
        %v1301 = vrot.slane %v1279, %v1300
        %v1302 = vadd.f32 %v1297, %v1301
        %v1303 = vpack.c.bf16 %v1302, %v1302
        %v1304 = vlaneseq
        %v1305 = vshrl.u32 %v1304, 7
        %v1306 = vsub.s32 2, %v1305
        %v1307 = vrot.slane %v1279, %v1306
        %v1312 = vunpack.c.l.b16 %v1259
        %v1313 = vunpack.c.l.b16 %v1260
        %v1314 = vunpack.c.l.b16 %v1261
        %v1315 = vunpack.c.l.b16 %v1262
        %v1316 = vpack.c.b16 %v1313, %v1312
        %v1317 = vpack.c.b16 %v1315, %v1314
        %v1321 = vsel %vm377, %v1303, 0
        %1323 = vmatprep.subr.bf16.mxu0 0
        %1324 = vmatpush1.bf16.msra.mxu0 %v1316
        %1325 = vmatprep.subr.bf16.mxu0 0
        %1326 = vmatpush1.bf16.msra.mxu0 %v1317
        %1327 = vmatprep.subr.bf16.mxu0 0
        %1328 = vmatpush1.bf16.msra.mxu0 0
        %1329 = vmatprep.subr.bf16.mxu0 0
        %1330 = vmatpush1.bf16.msra.mxu0 0
        %1331 = vmatprep.subr.bf16.mxu0 0
        %1332 = vmatpush1.bf16.msra.mxu0 0
        %1333 = vmatprep.subr.bf16.mxu0 0
        %1334 = vmatpush1.bf16.msra.mxu0 0
        %1335 = vmatprep.subr.bf16.mxu0 0
        %1336 = vmatpush1.bf16.msra.mxu0 0
        %1337 = vmatprep.subr.bf16.mxu0 0
        %1338 = vmatpush1.bf16.msra.mxu0 0
        %1339 = vmatprep.subr.bf16.mxu0 0
        %1340 = vmatpush1.bf16.msra.mxu0 0
        %1341 = vmatprep.subr.bf16.mxu0 0
        %1342 = vmatpush1.bf16.msra.mxu0 0
        %1343 = vmatprep.subr.bf16.mxu0 0
        %1344 = vmatpush1.bf16.msra.mxu0 0
        %1345 = vmatprep.subr.bf16.mxu0 0
        %1346 = vmatpush1.bf16.msra.mxu0 0
        %1347 = vmatprep.subr.bf16.mxu0 0
        %1348 = vmatpush1.bf16.msra.mxu0 0
        %1349 = vmatprep.subr.bf16.mxu0 0
        %1350 = vmatpush1.bf16.msra.mxu0 0
        %1351 = vmatprep.subr.bf16.mxu0 0
        %1352 = vmatpush1.bf16.msra.mxu0 0
        %1353 = vmatprep.subr.bf16.mxu0 0
        %1354 = vmatpush1.bf16.msra.mxu0 0
        %1355 = vmatprep.mubr.bf16.mxu0 0
        %1356 = vmatmul.mubr.bf16.gmra.mrb[0].mxu0 %v1321
        %v1357 = vpop.f32.mrb[0].mxu0
        %v1358 = vadd.f32 %v1307, %v1357
        %v1359 = vpop.f32.mrb[0].mxu0
        %v1360 = vpop.f32.mrb[0].mxu0
        %v1361 = vpop.f32.mrb[0].mxu0
        %1362 = vdwg.mxu0
        %v1363 = vpack.c.bf16 %v1358, %v1358
        %1365 = vrot.lane.b32.xlu0 %v1363, 96
        %v1366 = vpop.permute.xlu0 %1365
        %v1368 = vsel %vm466, %v1363, 0
        %v1371 = vsel %vm466, %v1366, 0
        %1373 = vmatprep.subr.bf16.mxu0 0
        %1374 = vmatpush1.bf16.xpose.msra.mxu0 %v1371
        %1375 = vmatprep.subr.bf16.mxu0 0
        %1376 = vmatpush1.bf16.xpose.msra.mxu0 0
        %1377 = vmatprep.subr.bf16.mxu0 0
        %1378 = vmatpush1.bf16.xpose.msra.mxu0 0
        %1379 = vmatprep.subr.bf16.mxu0 0
        %1380 = vmatpush1.bf16.xpose.msra.mxu0 0
        %1381 = vmatprep.subr.bf16.mxu0 0
        %1382 = vmatpush1.bf16.xpose.msra.mxu0 0
        %1383 = vmatprep.subr.bf16.mxu0 0
        %1384 = vmatpush1.bf16.xpose.msra.mxu0 0
        %1385 = vmatprep.subr.bf16.mxu0 0
        %1386 = vmatpush1.bf16.xpose.msra.mxu0 0
        %1387 = vmatprep.subr.bf16.mxu0 0
        %1388 = vmatpush1.bf16.xpose.msra.mxu0 0
        %1389 = vmatprep.subr.bf16.mxu0 0
        %1390 = vmatpush1.bf16.xpose.msra.mxu0 0
        %1391 = vmatprep.subr.bf16.mxu0 0
        %1392 = vmatpush1.bf16.xpose.msra.mxu0 0
        %1393 = vmatprep.subr.bf16.mxu0 0
        %1394 = vmatpush1.bf16.xpose.msra.mxu0 0
        %1395 = vmatprep.subr.bf16.mxu0 0
        %1396 = vmatpush1.bf16.xpose.msra.mxu0 0
        %1397 = vmatprep.subr.bf16.mxu0 0
        %1398 = vmatpush1.bf16.xpose.msra.mxu0 0
        %1399 = vmatprep.subr.bf16.mxu0 0
        %1400 = vmatpush1.bf16.xpose.msra.mxu0 0
        %1401 = vmatprep.subr.bf16.mxu0 0
        %1402 = vmatpush1.bf16.xpose.msra.mxu0 0
        %1403 = vmatprep.subr.bf16.mxu0 0
        %1404 = vmatpush1.bf16.xpose.msra.mxu0 0
        %1405 = vmatprep.mubr.bf16.mxu0 0
        %1406 = vmatmul.mubr.bf16.gmra.mrb[0].mxu0 %v1368
        %v1407 = vpop.f32.mrb[0].mxu0
        %v1408 = vadd.f32 0.0, %v1407
        %v1409 = vpop.f32.mrb[0].mxu0
        %v1410 = vpop.f32.mrb[0].mxu0
        %v1411 = vpop.f32.mrb[0].mxu0
        %1412 = vdwg.mxu0
        %v1413 = vmul.f32 %v1408, 0.35355338
        %v1414 = vadd.f32 %v1413, %v358
        %v1415 = vsel %vm466, %v1414, -inf
        %1416 = vmax.xlane.f32.xlu0 %v1415
        %v1417 = vpop.xlane.xlu0 %1416
        %v1418 = vsub.f32 %v1414, %v1417
        %v1419 = vmul.f32 %v1418, 1.442695
        %v1420 = vpow.pop %v1419
        %v1421 = vsel %vm466, %v1420, 0.0
        %1422 = vadd.xlane.f32.xlu0 %v1421
        %v1423 = vpop.xlane.xlu0 %1422
        %v1424 = vrcp.pop %v1423
        %v1425 = vmul.f32 %v1420, %v1424
        %v1426 = vpack.c.bf16 %v1425, %v1425
        %1427 = vrot.lane.b32.xlu0 %v1363, 64
        %v1428 = vpop.permute.xlu0 %1427
        %v1430 = vsel %vm466, %v1426, 0
        %v1433 = vsel %vm532, %v1428, 0
        %1435 = vmatprep.subr.bf16.mxu0 0
        %1436 = vmatpush1.bf16.msra.mxu0 %v1433
        %1437 = vmatprep.subr.bf16.mxu0 0
        %1438 = vmatpush1.bf16.msra.mxu0 0
        %1439 = vmatprep.subr.bf16.mxu0 0
        %1440 = vmatpush1.bf16.msra.mxu0 0
        %1441 = vmatprep.subr.bf16.mxu0 0
        %1442 = vmatpush1.bf16.msra.mxu0 0
        %1443 = vmatprep.subr.bf16.mxu0 0
        %1444 = vmatpush1.bf16.msra.mxu0 0
        %1445 = vmatprep.subr.bf16.mxu0 0
        %1446 = vmatpush1.bf16.msra.mxu0 0
        %1447 = vmatprep.subr.bf16.mxu0 0
        %1448 = vmatpush1.bf16.msra.mxu0 0
        %1449 = vmatprep.subr.bf16.mxu0 0
        %1450 = vmatpush1.bf16.msra.mxu0 0
        %1451 = vmatprep.subr.bf16.mxu0 0
        %1452 = vmatpush1.bf16.msra.mxu0 0
        %1453 = vmatprep.subr.bf16.mxu0 0
        %1454 = vmatpush1.bf16.msra.mxu0 0
        %1455 = vmatprep.subr.bf16.mxu0 0
        %1456 = vmatpush1.bf16.msra.mxu0 0
        %1457 = vmatprep.subr.bf16.mxu0 0
        %1458 = vmatpush1.bf16.msra.mxu0 0
        %1459 = vmatprep.subr.bf16.mxu0 0
        %1460 = vmatpush1.bf16.msra.mxu0 0
        %1461 = vmatprep.subr.bf16.mxu0 0
        %1462 = vmatpush1.bf16.msra.mxu0 0
        %1463 = vmatprep.subr.bf16.mxu0 0
        %1464 = vmatpush1.bf16.msra.mxu0 0
        %1465 = vmatprep.subr.bf16.mxu0 0
        %1466 = vmatpush1.bf16.msra.mxu0 0
        %1467 = vmatprep.mubr.bf16.mxu0 0
        %1468 = vmatmul.mubr.bf16.gmra.mrb[0].mxu0 %v1430
        %v1469 = vpop.f32.mrb[0].mxu0
        %v1470 = vadd.f32 0.0, %v1469
        %v1471 = vpop.f32.mrb[0].mxu0
        %v1472 = vpop.f32.mrb[0].mxu0
        %v1473 = vpop.f32.mrb[0].mxu0
        %1474 = vdwg.mxu0
        %v1475 = vpack.c.bf16 %v1470, %v1470
        %1476 = vrot.lane.b32.xlu0 %v1363, 120
        %v1477 = vpop.permute.xlu0 %1476
        %1478 = vrot.lane.b32.xlu0 %v1363, 88
        %v1479 = vpop.permute.xlu0 %1478
        %v1481 = vsel %vm466, %v1477, 0
        %v1484 = vsel %vm466, %v1479, 0
        %1486 = vmatprep.subr.bf16.mxu0 0
        %1487 = vmatpush1.bf16.xpose.msra.mxu0 %v1484
        %1488 = vmatprep.subr.bf16.mxu0 0
        %1489 = vmatpush1.bf16.xpose.msra.mxu0 0
        %1490 = vmatprep.subr.bf16.mxu0 0
        %1491 = vmatpush1.bf16.xpose.msra.mxu0 0
        %1492 = vmatprep.subr.bf16.mxu0 0
        %1493 = vmatpush1.bf16.xpose.msra.mxu0 0
        %1494 = vmatprep.subr.bf16.mxu0 0
        %1495 = vmatpush1.bf16.xpose.msra.mxu0 0
        %1496 = vmatprep.subr.bf16.mxu0 0
        %1497 = vmatpush1.bf16.xpose.msra.mxu0 0
        %1498 = vmatprep.subr.bf16.mxu0 0
        %1499 = vmatpush1.bf16.xpose.msra.mxu0 0
        %1500 = vmatprep.subr.bf16.mxu0 0
        %1501 = vmatpush1.bf16.xpose.msra.mxu0 0
        %1502 = vmatprep.subr.bf16.mxu0 0
        %1503 = vmatpush1.bf16.xpose.msra.mxu0 0
        %1504 = vmatprep.subr.bf16.mxu0 0
        %1505 = vmatpush1.bf16.xpose.msra.mxu0 0
        %1506 = vmatprep.subr.bf16.mxu0 0
        %1507 = vmatpush1.bf16.xpose.msra.mxu0 0
        %1508 = vmatprep.subr.bf16.mxu0 0
        %1509 = vmatpush1.bf16.xpose.msra.mxu0 0
        %1510 = vmatprep.subr.bf16.mxu0 0
        %1511 = vmatpush1.bf16.xpose.msra.mxu0 0
        %1512 = vmatprep.subr.bf16.mxu0 0
        %1513 = vmatpush1.bf16.xpose.msra.mxu0 0
        %1514 = vmatprep.subr.bf16.mxu0 0
        %1515 = vmatpush1.bf16.xpose.msra.mxu0 0
        %1516 = vmatprep.subr.bf16.mxu0 0
        %1517 = vmatpush1.bf16.xpose.msra.mxu0 0
        %1518 = vmatprep.mubr.bf16.mxu0 0
        %1519 = vmatmul.mubr.bf16.gmra.mrb[0].mxu0 %v1481
        %v1520 = vpop.f32.mrb[0].mxu0
        %v1521 = vadd.f32 0.0, %v1520
        %v1522 = vpop.f32.mrb[0].mxu0
        %v1523 = vpop.f32.mrb[0].mxu0
        %v1524 = vpop.f32.mrb[0].mxu0
        %1525 = vdwg.mxu0
        %v1526 = vmul.f32 %v1521, 0.35355338
        %v1527 = vadd.f32 %v1526, %v358
        %v1528 = vsel %vm466, %v1527, -inf
        %1529 = vmax.xlane.f32.xlu0 %v1528
        %v1530 = vpop.xlane.xlu0 %1529
        %v1531 = vsub.f32 %v1527, %v1530
        %v1532 = vmul.f32 %v1531, 1.442695
        %v1533 = vpow.pop %v1532
        %v1534 = vsel %vm466, %v1533, 0.0
        %1535 = vadd.xlane.f32.xlu0 %v1534
        %v1536 = vpop.xlane.xlu0 %1535
        %v1537 = vrcp.pop %v1536
        %v1538 = vmul.f32 %v1533, %v1537
        %v1539 = vpack.c.bf16 %v1538, %v1538
        %1540 = vrot.lane.b32.xlu0 %v1363, 56
        %v1541 = vpop.permute.xlu0 %1540
        %v1543 = vsel %vm466, %v1539, 0
        %v1546 = vsel %vm532, %v1541, 0
        %1548 = vmatprep.subr.bf16.mxu0 0
        %1549 = vmatpush1.bf16.msra.mxu0 %v1546
        %1550 = vmatprep.subr.bf16.mxu0 0
        %1551 = vmatpush1.bf16.msra.mxu0 0
        %1552 = vmatprep.subr.bf16.mxu0 0
        %1553 = vmatpush1.bf16.msra.mxu0 0
        %1554 = vmatprep.subr.bf16.mxu0 0
        %1555 = vmatpush1.bf16.msra.mxu0 0
        %1556 = vmatprep.subr.bf16.mxu0 0
        %1557 = vmatpush1.bf16.msra.mxu0 0
        %1558 = vmatprep.subr.bf16.mxu0 0
        %1559 = vmatpush1.bf16.msra.mxu0 0
        %1560 = vmatprep.subr.bf16.mxu0 0
        %1561 = vmatpush1.bf16.msra.mxu0 0
        %1562 = vmatprep.subr.bf16.mxu0 0
        %1563 = vmatpush1.bf16.msra.mxu0 0
        %1564 = vmatprep.subr.bf16.mxu0 0
        %1565 = vmatpush1.bf16.msra.mxu0 0
        %1566 = vmatprep.subr.bf16.mxu0 0
        %1567 = vmatpush1.bf16.msra.mxu0 0
        %1568 = vmatprep.subr.bf16.mxu0 0
        %1569 = vmatpush1.bf16.msra.mxu0 0
        %1570 = vmatprep.subr.bf16.mxu0 0
        %1571 = vmatpush1.bf16.msra.mxu0 0
        %1572 = vmatprep.subr.bf16.mxu0 0
        %1573 = vmatpush1.bf16.msra.mxu0 0
        %1574 = vmatprep.subr.bf16.mxu0 0
        %1575 = vmatpush1.bf16.msra.mxu0 0
        %1576 = vmatprep.subr.bf16.mxu0 0
        %1577 = vmatpush1.bf16.msra.mxu0 0
        %1578 = vmatprep.subr.bf16.mxu0 0
        %1579 = vmatpush1.bf16.msra.mxu0 0
        %1580 = vmatprep.mubr.bf16.mxu0 0
        %1581 = vmatmul.mubr.bf16.gmra.mrb[0].mxu0 %v1543
        %v1582 = vpop.f32.mrb[0].mxu0
        %v1583 = vadd.f32 0.0, %v1582
        %v1584 = vpop.f32.mrb[0].mxu0
        %v1585 = vpop.f32.mrb[0].mxu0
        %v1586 = vpop.f32.mrb[0].mxu0
        %1587 = vdwg.mxu0
        %v1588 = vpack.c.bf16 %v1583, %v1583
        %v1590 = vsel %vm466, %v1588, 0
        %v1593 = vsel %vm532, %v1265, 0
        %1595 = vmatprep.subr.bf16.mxu0 0
        %1596 = vmatpush1.bf16.msra.mxu0 %v1593
        %1597 = vmatprep.subr.bf16.mxu0 0
        %1598 = vmatpush1.bf16.msra.mxu0 0
        %1599 = vmatprep.subr.bf16.mxu0 0
        %1600 = vmatpush1.bf16.msra.mxu0 0
        %1601 = vmatprep.subr.bf16.mxu0 0
        %1602 = vmatpush1.bf16.msra.mxu0 0
        %1603 = vmatprep.subr.bf16.mxu0 0
        %1604 = vmatpush1.bf16.msra.mxu0 0
        %1605 = vmatprep.subr.bf16.mxu0 0
        %1606 = vmatpush1.bf16.msra.mxu0 0
        %1607 = vmatprep.subr.bf16.mxu0 0
        %1608 = vmatpush1.bf16.msra.mxu0 0
        %1609 = vmatprep.subr.bf16.mxu0 0
        %1610 = vmatpush1.bf16.msra.mxu0 0
        %1611 = vmatprep.subr.bf16.mxu0 0
        %1612 = vmatpush1.bf16.msra.mxu0 0
        %1613 = vmatprep.subr.bf16.mxu0 0
        %1614 = vmatpush1.bf16.msra.mxu0 0
        %1615 = vmatprep.subr.bf16.mxu0 0
        %1616 = vmatpush1.bf16.msra.mxu0 0
        %1617 = vmatprep.subr.bf16.mxu0 0
        %1618 = vmatpush1.bf16.msra.mxu0 0
        %1619 = vmatprep.subr.bf16.mxu0 0
        %1620 = vmatpush1.bf16.msra.mxu0 0
        %1621 = vmatprep.subr.bf16.mxu0 0
        %1622 = vmatpush1.bf16.msra.mxu0 0
        %1623 = vmatprep.subr.bf16.mxu0 0
        %1624 = vmatpush1.bf16.msra.mxu0 0
        %1625 = vmatprep.subr.bf16.mxu0 0
        %1626 = vmatpush1.bf16.msra.mxu0 0
        %1627 = vmatprep.mubr.bf16.mxu0 0
        %1628 = vmatmul.mubr.bf16.gmra.mrb[0].mxu0 %v1590
        %v1629 = vpop.f32.mrb[0].mxu0
        %v1630 = vadd.f32 0.0, %v1629
        %v1631 = vpop.f32.mrb[0].mxu0
        %v1632 = vpop.f32.mrb[0].mxu0
        %v1633 = vpop.f32.mrb[0].mxu0
        %1634 = vdwg.mxu0
        %v1636 = vsel %vm466, %v1475, 0
        %v1639 = vsel %vm532, %v1264, 0
        %1641 = vmatprep.subr.bf16.mxu0 0
        %1642 = vmatpush1.bf16.msra.mxu0 %v1639
        %1643 = vmatprep.subr.bf16.mxu0 0
        %1644 = vmatpush1.bf16.msra.mxu0 0
        %1645 = vmatprep.subr.bf16.mxu0 0
        %1646 = vmatpush1.bf16.msra.mxu0 0
        %1647 = vmatprep.subr.bf16.mxu0 0
        %1648 = vmatpush1.bf16.msra.mxu0 0
        %1649 = vmatprep.subr.bf16.mxu0 0
        %1650 = vmatpush1.bf16.msra.mxu0 0
        %1651 = vmatprep.subr.bf16.mxu0 0
        %1652 = vmatpush1.bf16.msra.mxu0 0
        %1653 = vmatprep.subr.bf16.mxu0 0
        %1654 = vmatpush1.bf16.msra.mxu0 0
        %1655 = vmatprep.subr.bf16.mxu0 0
        %1656 = vmatpush1.bf16.msra.mxu0 0
        %1657 = vmatprep.subr.bf16.mxu0 0
        %1658 = vmatpush1.bf16.msra.mxu0 0
        %1659 = vmatprep.subr.bf16.mxu0 0
        %1660 = vmatpush1.bf16.msra.mxu0 0
        %1661 = vmatprep.subr.bf16.mxu0 0
        %1662 = vmatpush1.bf16.msra.mxu0 0
        %1663 = vmatprep.subr.bf16.mxu0 0
        %1664 = vmatpush1.bf16.msra.mxu0 0
        %1665 = vmatprep.subr.bf16.mxu0 0
        %1666 = vmatpush1.bf16.msra.mxu0 0
        %1667 = vmatprep.subr.bf16.mxu0 0
        %1668 = vmatpush1.bf16.msra.mxu0 0
        %1669 = vmatprep.subr.bf16.mxu0 0
        %1670 = vmatpush1.bf16.msra.mxu0 0
        %1671 = vmatprep.subr.bf16.mxu0 0
        %1672 = vmatpush1.bf16.msra.mxu0 0
        %1673 = vmatprep.mubr.bf16.mxu0 0
        %1674 = vmatmul.mubr.bf16.gmra.mrb[0].mxu0 %v1636
        %v1675 = vpop.f32.mrb[0].mxu0
        %v1676 = vadd.f32 %v1630, %v1675
        %v1677 = vpop.f32.mrb[0].mxu0
        %v1678 = vpop.f32.mrb[0].mxu0
        %v1679 = vpop.f32.mrb[0].mxu0
        %1680 = vdwg.mxu0
        %1681 = vrot.lane.b32.xlu0 %v1363, 112
        %v1682 = vpop.permute.xlu0 %1681
        %1683 = vrot.lane.b32.xlu0 %v1363, 80
        %v1684 = vpop.permute.xlu0 %1683
        %v1686 = vsel %vm466, %v1682, 0
        %v1689 = vsel %vm466, %v1684, 0
        %1691 = vmatprep.subr.bf16.mxu0 0
        %1692 = vmatpush1.bf16.xpose.msra.mxu0 %v1689
        %1693 = vmatprep.subr.bf16.mxu0 0
        %1694 = vmatpush1.bf16.xpose.msra.mxu0 0
        %1695 = vmatprep.subr.bf16.mxu0 0
        %1696 = vmatpush1.bf16.xpose.msra.mxu0 0
        %1697 = vmatprep.subr.bf16.mxu0 0
        %1698 = vmatpush1.bf16.xpose.msra.mxu0 0
        %1699 = vmatprep.subr.bf16.mxu0 0
        %1700 = vmatpush1.bf16.xpose.msra.mxu0 0
        %1701 = vmatprep.subr.bf16.mxu0 0
        %1702 = vmatpush1.bf16.xpose.msra.mxu0 0
        %1703 = vmatprep.subr.bf16.mxu0 0
        %1704 = vmatpush1.bf16.xpose.msra.mxu0 0
        %1705 = vmatprep.subr.bf16.mxu0 0
        %1706 = vmatpush1.bf16.xpose.msra.mxu0 0
        %1707 = vmatprep.subr.bf16.mxu0 0
        %1708 = vmatpush1.bf16.xpose.msra.mxu0 0
        %1709 = vmatprep.subr.bf16.mxu0 0
        %1710 = vmatpush1.bf16.xpose.msra.mxu0 0
        %1711 = vmatprep.subr.bf16.mxu0 0
        %1712 = vmatpush1.bf16.xpose.msra.mxu0 0
        %1713 = vmatprep.subr.bf16.mxu0 0
        %1714 = vmatpush1.bf16.xpose.msra.mxu0 0
        %1715 = vmatprep.subr.bf16.mxu0 0
        %1716 = vmatpush1.bf16.xpose.msra.mxu0 0
        %1717 = vmatprep.subr.bf16.mxu0 0
        %1718 = vmatpush1.bf16.xpose.msra.mxu0 0
        %1719 = vmatprep.subr.bf16.mxu0 0
        %1720 = vmatpush1.bf16.xpose.msra.mxu0 0
        %1721 = vmatprep.subr.bf16.mxu0 0
        %1722 = vmatpush1.bf16.xpose.msra.mxu0 0
        %1723 = vmatprep.mubr.bf16.mxu0 0
        %1724 = vmatmul.mubr.bf16.gmra.mrb[0].mxu0 %v1686
        %v1725 = vpop.f32.mrb[0].mxu0
        %v1726 = vadd.f32 0.0, %v1725
        %v1727 = vpop.f32.mrb[0].mxu0
        %v1728 = vpop.f32.mrb[0].mxu0
        %v1729 = vpop.f32.mrb[0].mxu0
        %1730 = vdwg.mxu0
        %v1731 = vmul.f32 %v1726, 0.35355338
        %v1732 = vadd.f32 %v1731, %v358
        %v1733 = vsel %vm466, %v1732, -inf
        %1734 = vmax.xlane.f32.xlu0 %v1733
        %v1735 = vpop.xlane.xlu0 %1734
        %v1736 = vsub.f32 %v1732, %v1735
        %v1737 = vmul.f32 %v1736, 1.442695
        %v1738 = vpow.pop %v1737
        %v1739 = vsel %vm466, %v1738, 0.0
        %1740 = vadd.xlane.f32.xlu0 %v1739
        %v1741 = vpop.xlane.xlu0 %1740
        %v1742 = vrcp.pop %v1741
        %v1743 = vmul.f32 %v1738, %v1742
        %v1744 = vpack.c.bf16 %v1743, %v1743
        %1745 = vrot.lane.b32.xlu0 %v1363, 48
        %v1746 = vpop.permute.xlu0 %1745
        %v1748 = vsel %vm466, %v1744, 0
        %v1751 = vsel %vm532, %v1746, 0
        %1753 = vmatprep.subr.bf16.mxu0 0
        %1754 = vmatpush1.bf16.msra.mxu0 %v1751
        %1755 = vmatprep.subr.bf16.mxu0 0
        %1756 = vmatpush1.bf16.msra.mxu0 0
        %1757 = vmatprep.subr.bf16.mxu0 0
        %1758 = vmatpush1.bf16.msra.mxu0 0
        %1759 = vmatprep.subr.bf16.mxu0 0
        %1760 = vmatpush1.bf16.msra.mxu0 0
        %1761 = vmatprep.subr.bf16.mxu0 0
        %1762 = vmatpush1.bf16.msra.mxu0 0
        %1763 = vmatprep.subr.bf16.mxu0 0
        %1764 = vmatpush1.bf16.msra.mxu0 0
        %1765 = vmatprep.subr.bf16.mxu0 0
        %1766 = vmatpush1.bf16.msra.mxu0 0
        %1767 = vmatprep.subr.bf16.mxu0 0
        %1768 = vmatpush1.bf16.msra.mxu0 0
        %1769 = vmatprep.subr.bf16.mxu0 0
        %1770 = vmatpush1.bf16.msra.mxu0 0
        %1771 = vmatprep.subr.bf16.mxu0 0
        %1772 = vmatpush1.bf16.msra.mxu0 0
        %1773 = vmatprep.subr.bf16.mxu0 0
        %1774 = vmatpush1.bf16.msra.mxu0 0
        %1775 = vmatprep.subr.bf16.mxu0 0
        %1776 = vmatpush1.bf16.msra.mxu0 0
        %1777 = vmatprep.subr.bf16.mxu0 0
        %1778 = vmatpush1.bf16.msra.mxu0 0
        %1779 = vmatprep.subr.bf16.mxu0 0
        %1780 = vmatpush1.bf16.msra.mxu0 0
        %1781 = vmatprep.subr.bf16.mxu0 0
        %1782 = vmatpush1.bf16.msra.mxu0 0
        %1783 = vmatprep.subr.bf16.mxu0 0
        %1784 = vmatpush1.bf16.msra.mxu0 0
        %1785 = vmatprep.mubr.bf16.mxu0 0
        %1786 = vmatmul.mubr.bf16.gmra.mrb[0].mxu0 %v1748
        %v1787 = vpop.f32.mrb[0].mxu0
        %v1788 = vadd.f32 0.0, %v1787
        %v1789 = vpop.f32.mrb[0].mxu0
        %v1790 = vpop.f32.mrb[0].mxu0
        %v1791 = vpop.f32.mrb[0].mxu0
        %1792 = vdwg.mxu0
        %v1793 = vpack.c.bf16 %v1788, %v1788
        %v1795 = vsel %vm466, %v1793, 0
        %v1798 = vsel %vm532, %v1266, 0
        %1800 = vmatprep.subr.bf16.mxu0 0
        %1801 = vmatpush1.bf16.msra.mxu0 %v1798
        %1802 = vmatprep.subr.bf16.mxu0 0
        %1803 = vmatpush1.bf16.msra.mxu0 0
        %1804 = vmatprep.subr.bf16.mxu0 0
        %1805 = vmatpush1.bf16.msra.mxu0 0
        %1806 = vmatprep.subr.bf16.mxu0 0
        %1807 = vmatpush1.bf16.msra.mxu0 0
        %1808 = vmatprep.subr.bf16.mxu0 0
        %1809 = vmatpush1.bf16.msra.mxu0 0
        %1810 = vmatprep.subr.bf16.mxu0 0
        %1811 = vmatpush1.bf16.msra.mxu0 0
        %1812 = vmatprep.subr.bf16.mxu0 0
        %1813 = vmatpush1.bf16.msra.mxu0 0
        %1814 = vmatprep.subr.bf16.mxu0 0
        %1815 = vmatpush1.bf16.msra.mxu0 0
        %1816 = vmatprep.subr.bf16.mxu0 0
        %1817 = vmatpush1.bf16.msra.mxu0 0
        %1818 = vmatprep.subr.bf16.mxu0 0
        %1819 = vmatpush1.bf16.msra.mxu0 0
        %1820 = vmatprep.subr.bf16.mxu0 0
        %1821 = vmatpush1.bf16.msra.mxu0 0
        %1822 = vmatprep.subr.bf16.mxu0 0
        %1823 = vmatpush1.bf16.msra.mxu0 0
        %1824 = vmatprep.subr.bf16.mxu0 0
        %1825 = vmatpush1.bf16.msra.mxu0 0
        %1826 = vmatprep.subr.bf16.mxu0 0
        %1827 = vmatpush1.bf16.msra.mxu0 0
        %1828 = vmatprep.subr.bf16.mxu0 0
        %1829 = vmatpush1.bf16.msra.mxu0 0
        %1830 = vmatprep.subr.bf16.mxu0 0
        %1831 = vmatpush1.bf16.msra.mxu0 0
        %1832 = vmatprep.mubr.bf16.mxu0 0
        %1833 = vmatmul.mubr.bf16.gmra.mrb[0].mxu0 %v1795
        %v1834 = vpop.f32.mrb[0].mxu0
        %v1835 = vadd.f32 0.0, %v1834
        %v1836 = vpop.f32.mrb[0].mxu0
        %v1837 = vpop.f32.mrb[0].mxu0
        %v1838 = vpop.f32.mrb[0].mxu0
        %1839 = vdwg.mxu0
        %v1840 = vadd.f32 %v1676, %v1835
        %1841 = vrot.lane.b32.xlu0 %v1363, 104
        %v1842 = vpop.permute.xlu0 %1841
        %1843 = vrot.lane.b32.xlu0 %v1363, 72
        %v1844 = vpop.permute.xlu0 %1843
        %v1846 = vsel %vm466, %v1842, 0
        %v1849 = vsel %vm466, %v1844, 0
        %1851 = vmatprep.subr.bf16.mxu0 0
        %1852 = vmatpush1.bf16.xpose.msra.mxu0 %v1849
        %1853 = vmatprep.subr.bf16.mxu0 0
        %1854 = vmatpush1.bf16.xpose.msra.mxu0 0
        %1855 = vmatprep.subr.bf16.mxu0 0
        %1856 = vmatpush1.bf16.xpose.msra.mxu0 0
        %1857 = vmatprep.subr.bf16.mxu0 0
        %1858 = vmatpush1.bf16.xpose.msra.mxu0 0
        %1859 = vmatprep.subr.bf16.mxu0 0
        %1860 = vmatpush1.bf16.xpose.msra.mxu0 0
        %1861 = vmatprep.subr.bf16.mxu0 0
        %1862 = vmatpush1.bf16.xpose.msra.mxu0 0
        %1863 = vmatprep.subr.bf16.mxu0 0
        %1864 = vmatpush1.bf16.xpose.msra.mxu0 0
        %1865 = vmatprep.subr.bf16.mxu0 0
        %1866 = vmatpush1.bf16.xpose.msra.mxu0 0
        %1867 = vmatprep.subr.bf16.mxu0 0
        %1868 = vmatpush1.bf16.xpose.msra.mxu0 0
        %1869 = vmatprep.subr.bf16.mxu0 0
        %1870 = vmatpush1.bf16.xpose.msra.mxu0 0
        %1871 = vmatprep.subr.bf16.mxu0 0
        %1872 = vmatpush1.bf16.xpose.msra.mxu0 0
        %1873 = vmatprep.subr.bf16.mxu0 0
        %1874 = vmatpush1.bf16.xpose.msra.mxu0 0
        %1875 = vmatprep.subr.bf16.mxu0 0
        %1876 = vmatpush1.bf16.xpose.msra.mxu0 0
        %1877 = vmatprep.subr.bf16.mxu0 0
        %1878 = vmatpush1.bf16.xpose.msra.mxu0 0
        %1879 = vmatprep.subr.bf16.mxu0 0
        %1880 = vmatpush1.bf16.xpose.msra.mxu0 0
        %1881 = vmatprep.subr.bf16.mxu0 0
        %1882 = vmatpush1.bf16.xpose.msra.mxu0 0
        %1883 = vmatprep.mubr.bf16.mxu0 0
        %1884 = vmatmul.mubr.bf16.gmra.mrb[0].mxu0 %v1846
        %v1885 = vpop.f32.mrb[0].mxu0
        %v1886 = vadd.f32 0.0, %v1885
        %v1887 = vpop.f32.mrb[0].mxu0
        %v1888 = vpop.f32.mrb[0].mxu0
        %v1889 = vpop.f32.mrb[0].mxu0
        %1890 = vdwg.mxu0
        %v1891 = vmul.f32 %v1886, 0.35355338
        %v1892 = vadd.f32 %v1891, %v358
        %v1893 = vsel %vm466, %v1892, -inf
        %1894 = vmax.xlane.f32.xlu0 %v1893
        %v1895 = vpop.xlane.xlu0 %1894
        %v1896 = vsub.f32 %v1892, %v1895
        %v1897 = vmul.f32 %v1896, 1.442695
        %v1898 = vpow.pop %v1897
        %v1899 = vsel %vm466, %v1898, 0.0
        %1900 = vadd.xlane.f32.xlu0 %v1899
        %v1901 = vpop.xlane.xlu0 %1900
        %v1902 = vrcp.pop %v1901
        %v1903 = vmul.f32 %v1898, %v1902
        %v1904 = vpack.c.bf16 %v1903, %v1903
        %1905 = vrot.lane.b32.xlu0 %v1363, 40
        %v1906 = vpop.permute.xlu0 %1905
        %v1908 = vsel %vm466, %v1904, 0
        %v1911 = vsel %vm532, %v1906, 0
        %1913 = vmatprep.subr.bf16.mxu0 0
        %1914 = vmatpush1.bf16.msra.mxu0 %v1911
        %1915 = vmatprep.subr.bf16.mxu0 0
        %1916 = vmatpush1.bf16.msra.mxu0 0
        %1917 = vmatprep.subr.bf16.mxu0 0
        %1918 = vmatpush1.bf16.msra.mxu0 0
        %1919 = vmatprep.subr.bf16.mxu0 0
        %1920 = vmatpush1.bf16.msra.mxu0 0
        %1921 = vmatprep.subr.bf16.mxu0 0
        %1922 = vmatpush1.bf16.msra.mxu0 0
        %1923 = vmatprep.subr.bf16.mxu0 0
        %1924 = vmatpush1.bf16.msra.mxu0 0
        %1925 = vmatprep.subr.bf16.mxu0 0
        %1926 = vmatpush1.bf16.msra.mxu0 0
        %1927 = vmatprep.subr.bf16.mxu0 0
        %1928 = vmatpush1.bf16.msra.mxu0 0
        %1929 = vmatprep.subr.bf16.mxu0 0
        %1930 = vmatpush1.bf16.msra.mxu0 0
        %1931 = vmatprep.subr.bf16.mxu0 0
        %1932 = vmatpush1.bf16.msra.mxu0 0
        %1933 = vmatprep.subr.bf16.mxu0 0
        %1934 = vmatpush1.bf16.msra.mxu0 0
        %1935 = vmatprep.subr.bf16.mxu0 0
        %1936 = vmatpush1.bf16.msra.mxu0 0
        %1937 = vmatprep.subr.bf16.mxu0 0
        %1938 = vmatpush1.bf16.msra.mxu0 0
        %1939 = vmatprep.subr.bf16.mxu0 0
        %1940 = vmatpush1.bf16.msra.mxu0 0
        %1941 = vmatprep.subr.bf16.mxu0 0
        %1942 = vmatpush1.bf16.msra.mxu0 0
        %1943 = vmatprep.subr.bf16.mxu0 0
        %1944 = vmatpush1.bf16.msra.mxu0 0
        %1945 = vmatprep.mubr.bf16.mxu0 0
        %1946 = vmatmul.mubr.bf16.gmra.mrb[0].mxu0 %v1908
        %v1947 = vpop.f32.mrb[0].mxu0
        %v1948 = vadd.f32 0.0, %v1947
        %v1949 = vpop.f32.mrb[0].mxu0
        %v1950 = vpop.f32.mrb[0].mxu0
        %v1951 = vpop.f32.mrb[0].mxu0
        %1952 = vdwg.mxu0
        %v1953 = vpack.c.bf16 %v1948, %v1948
        %v1955 = vsel %vm466, %v1953, 0
        %v1958 = vsel %vm532, %v1267, 0
        %1960 = vmatprep.subr.bf16.mxu0 0
        %1961 = vmatpush1.bf16.msra.mxu0 %v1958
        %1962 = vmatprep.subr.bf16.mxu0 0
        %1963 = vmatpush1.bf16.msra.mxu0 0
        %1964 = vmatprep.subr.bf16.mxu0 0
        %1965 = vmatpush1.bf16.msra.mxu0 0
        %1966 = vmatprep.subr.bf16.mxu0 0
        %1967 = vmatpush1.bf16.msra.mxu0 0
        %1968 = vmatprep.subr.bf16.mxu0 0
        %1969 = vmatpush1.bf16.msra.mxu0 0
        %1970 = vmatprep.subr.bf16.mxu0 0
        %1971 = vmatpush1.bf16.msra.mxu0 0
        %1972 = vmatprep.subr.bf16.mxu0 0
        %1973 = vmatpush1.bf16.msra.mxu0 0
        %1974 = vmatprep.subr.bf16.mxu0 0
        %1975 = vmatpush1.bf16.msra.mxu0 0
        %1976 = vmatprep.subr.bf16.mxu0 0
        %1977 = vmatpush1.bf16.msra.mxu0 0
        %1978 = vmatprep.subr.bf16.mxu0 0
        %1979 = vmatpush1.bf16.msra.mxu0 0
        %1980 = vmatprep.subr.bf16.mxu0 0
        %1981 = vmatpush1.bf16.msra.mxu0 0
        %1982 = vmatprep.subr.bf16.mxu0 0
        %1983 = vmatpush1.bf16.msra.mxu0 0
        %1984 = vmatprep.subr.bf16.mxu0 0
        %1985 = vmatpush1.bf16.msra.mxu0 0
        %1986 = vmatprep.subr.bf16.mxu0 0
        %1987 = vmatpush1.bf16.msra.mxu0 0
        %1988 = vmatprep.subr.bf16.mxu0 0
        %1989 = vmatpush1.bf16.msra.mxu0 0
        %1990 = vmatprep.subr.bf16.mxu0 0
        %1991 = vmatpush1.bf16.msra.mxu0 0
        %1992 = vmatprep.mubr.bf16.mxu0 0
        %1993 = vmatmul.mubr.bf16.gmra.mrb[0].mxu0 %v1955
        %v1994 = vpop.f32.mrb[0].mxu0
        %v1995 = vadd.f32 0.0, %v1994
        %v1996 = vpop.f32.mrb[0].mxu0
        %v1997 = vpop.f32.mrb[0].mxu0
        %v1998 = vpop.f32.mrb[0].mxu0
        %1999 = vdwg.mxu0
        %v2000 = vadd.f32 %v1840, %v1995
        %v2001 = vadd.f32 %v1257, %v2000
        %v2002 = vlaneseq
        %v2003 = vshrl.u32 %v2002, 7
        %v2004 = vsub.s32 3, %v2003
        %v2005 = vrot.slane %v1279, %v2004
        %v2006 = vadd.f32 %v2001, %v2005
        %v2007 = vsel %vm377, %v2006, 0.0
        %2008 = vadd.xlane.f32.xlu0 %v2007
        %v2009 = vpop.xlane.xlu0 %2008
        %v2010 = vmul.f32 %v2009, %v381
        %v2011 = vsub.f32 %v2006, %v2010
        %v2012 = vmul.f32 %v2011, %v2011
        %v2013 = vsel %vm377, %v2012, 0.0
        %2014 = vadd.xlane.f32.xlu0 %v2013
        %v2015 = vpop.xlane.xlu0 %2014
        %v2016 = vmul.f32 %v2015, %v381
        %v2017 = vadd.f32 %v2016, 1e-05
        %v2018 = vrsqrt.pop %v2017
        %v2019 = vmul.f32 %v2011, %v2018
        %v2020 = vlaneseq
        %v2021 = vshrl.u32 %v2020, 7
        %v2022 = vsub.s32 4, %v2021
        %v2023 = vrot.slane %v1279, %v2022
        %v2024 = vmul.f32 %v2019, %v2023
        %v2025 = vlaneseq
        %v2026 = vshrl.u32 %v2025, 7
        %v2027 = vsub.s32 5, %v2026
        %v2028 = vrot.slane %v1279, %v2027
        %v2029 = vadd.f32 %v2024, %v2028
        %v2030 = vpack.c.bf16 %v2029, %v2029
        %v2031 = vlaneseq
        %v2032 = vshrl.u32 %v2031, 7
        %v2033 = vsub.s32 6, %v2032
        %v2034 = vrot.slane %v1279, %v2033
        %v2039 = vunpack.c.l.b16 %v1269
        %v2040 = vunpack.c.l.b16 %v1270
        %v2041 = vunpack.c.l.b16 %v1271
        %v2042 = vunpack.c.l.b16 %v1272
        %v2043 = vpack.c.b16 %v2040, %v2039
        %v2044 = vpack.c.b16 %v2042, %v2041
        %v2048 = vsel %vm377, %v2030, 0
        %2050 = vmatprep.subr.bf16.mxu0 0
        %2051 = vmatpush1.bf16.msra.mxu0 %v2043
        %2052 = vmatprep.subr.bf16.mxu0 0
        %2053 = vmatpush1.bf16.msra.mxu0 %v2044
        %2054 = vmatprep.subr.bf16.mxu0 0
        %2055 = vmatpush1.bf16.msra.mxu0 0
        %2056 = vmatprep.subr.bf16.mxu0 0
        %2057 = vmatpush1.bf16.msra.mxu0 0
        %2058 = vmatprep.subr.bf16.mxu0 0
        %2059 = vmatpush1.bf16.msra.mxu0 0
        %2060 = vmatprep.subr.bf16.mxu0 0
        %2061 = vmatpush1.bf16.msra.mxu0 0
        %2062 = vmatprep.subr.bf16.mxu0 0
        %2063 = vmatpush1.bf16.msra.mxu0 0
        %2064 = vmatprep.subr.bf16.mxu0 0
        %2065 = vmatpush1.bf16.msra.mxu0 0
        %2066 = vmatprep.subr.bf16.mxu0 0
        %2067 = vmatpush1.bf16.msra.mxu0 0
        %2068 = vmatprep.subr.bf16.mxu0 0
        %2069 = vmatpush1.bf16.msra.mxu0 0
        %2070 = vmatprep.subr.bf16.mxu0 0
        %2071 = vmatpush1.bf16.msra.mxu0 0
        %2072 = vmatprep.subr.bf16.mxu0 0
        %2073 = vmatpush1.bf16.msra.mxu0 0
        %2074 = vmatprep.subr.bf16.mxu0 0
        %2075 = vmatpush1.bf16.msra.mxu0 0
        %2076 = vmatprep.subr.bf16.mxu0 0
        %2077 = vmatpush1.bf16.msra.mxu0 0
        %2078 = vmatprep.subr.bf16.mxu0 0
        %2079 = vmatpush1.bf16.msra.mxu0 0
        %2080 = vmatprep.subr.bf16.mxu0 0
        %2081 = vmatpush1.bf16.msra.mxu0 0
        %2082 = vmatprep.mubr.bf16.mxu0 0
        %2083 = vmatmul.mubr.bf16.gmra.mrb[0].mxu0 %v2048
        %v2084 = vpop.f32.mrb[0].mxu0
        %v2085 = vadd.f32 %v2034, %v2084
        %v2086 = vpop.f32.mrb[0].mxu0
        %v2087 = vpop.f32.mrb[0].mxu0
        %v2088 = vpop.f32.mrb[0].mxu0
        %2089 = vdwg.mxu0
        %v2090 = vmul.f32 %v2085, %v2085
        %v2091 = vmul.f32 %v2085, %v2090
        %v2092 = vmul.f32 %v2091, 0.044715
        %v2093 = vadd.f32 %v2085, %v2092
        %v2094 = vmul.f32 %v2093, 0.7978846
        %v2095 = vtanh.pop %v2094
        %v2096 = vadd.f32 %v2095, 1.0
        %v2097 = vmul.f32 %v2096, 0.5
        %v2098 = vmul.f32 %v2085, %v2097
        %v2099 = vpack.c.bf16 %v2098, %v2098
        %v2100 = vlaneseq
        %v2101 = vshrl.u32 %v2100, 7
        %v2102 = vsub.s32 7, %v2101
        %v2103 = vrot.slane %v1279, %v2102
        %v2108 = vunpack.c.l.b16 %v1274
        %v2109 = vunpack.c.l.b16 %v1275
        %v2110 = vunpack.c.l.b16 %v1276
        %v2111 = vunpack.c.l.b16 %v1277
        %v2112 = vpack.c.b16 %v2109, %v2108
        %v2113 = vpack.c.b16 %v2111, %v2110
        %2116 = vmatprep.subr.bf16.mxu0 0
        %2117 = vmatpush1.bf16.xpose.msra.mxu0 %v2112
        %2118 = vmatprep.subr.bf16.mxu0 0
        %2119 = vmatpush1.bf16.xpose.msra.mxu0 %v2113
        %2120 = vmatprep.subr.bf16.mxu0 0
        %2121 = vmatpush1.bf16.xpose.msra.mxu0 0
        %2122 = vmatprep.subr.bf16.mxu0 0
        %2123 = vmatpush1.bf16.xpose.msra.mxu0 0
        %2124 = vmatprep.subr.bf16.mxu0 0
        %2125 = vmatpush1.bf16.xpose.msra.mxu0 0
        %2126 = vmatprep.subr.bf16.mxu0 0
        %2127 = vmatpush1.bf16.xpose.msra.mxu0 0
        %2128 = vmatprep.subr.bf16.mxu0 0
        %2129 = vmatpush1.bf16.xpose.msra.mxu0 0
        %2130 = vmatprep.subr.bf16.mxu0 0
        %2131 = vmatpush1.bf16.xpose.msra.mxu0 0
        %2132 = vmatprep.subr.bf16.mxu0 0
        %2133 = vmatpush1.bf16.xpose.msra.mxu0 0
        %2134 = vmatprep.subr.bf16.mxu0 0
        %2135 = vmatpush1.bf16.xpose.msra.mxu0 0
        %2136 = vmatprep.subr.bf16.mxu0 0
        %2137 = vmatpush1.bf16.xpose.msra.mxu0 0
        %2138 = vmatprep.subr.bf16.mxu0 0
        %2139 = vmatpush1.bf16.xpose.msra.mxu0 0
        %2140 = vmatprep.subr.bf16.mxu0 0
        %2141 = vmatpush1.bf16.xpose.msra.mxu0 0
        %2142 = vmatprep.subr.bf16.mxu0 0
        %2143 = vmatpush1.bf16.xpose.msra.mxu0 0
        %2144 = vmatprep.subr.bf16.mxu0 0
        %2145 = vmatpush1.bf16.xpose.msra.mxu0 0
        %2146 = vmatprep.subr.bf16.mxu0 0
        %2147 = vmatpush1.bf16.xpose.msra.mxu0 0
        %2148 = vmatprep.mubr.bf16.mxu0 0
        %2149 = vmatmul.mubr.bf16.gmra.mrb[0].mxu0 %v2099
        %v2150 = vpop.f32.mrb[0].mxu0
        %v2151 = vadd.f32 %v2103, %v2150
        %v2152 = vpop.f32.mrb[0].mxu0
        %v2153 = vpop.f32.mrb[0].mxu0
        %v2154 = vpop.f32.mrb[0].mxu0
        %2155 = vdwg.mxu0
        %v2156 = vadd.f32 %v2006, %v2151
        %v2157 = vld [vmem:[%s6] sm:$0x1]
        %v2158 = vld [vmem:[%s6 + $0x1] sm:$0x1]
        %v2159 = vsel %vm377, %v2156, 0.0
        %2160 = vadd.xlane.f32.xlu0 %v2159
        %v2161 = vpop.xlane.xlu0 %2160
        %v2162 = vmul.f32 %v2161, %v381
        %v2163 = vsub.f32 %v2156, %v2162
        %v2164 = vmul.f32 %v2163, %v2163
        %v2165 = vsel %vm377, %v2164, 0.0
        %2166 = vadd.xlane.f32.xlu0 %v2165
        %v2167 = vpop.xlane.xlu0 %2166
        %v2168 = vmul.f32 %v2167, %v381
        %v2169 = vadd.f32 %v2168, 1e-05
        %v2170 = vrsqrt.pop %v2169
        %v2171 = vmul.f32 %v2163, %v2170
        %v2172 = vlaneseq
        %v2173 = vshrl.u32 %v2172, 7
        %v2174 = vsub.s32 0, %v2173
        %v2175 = vrot.slane %v2157, %v2174
        %v2176 = vmul.f32 %v2171, %v2175
        %v2177 = vlaneseq
        %v2178 = vshrl.u32 %v2177, 7
        %v2179 = vsub.s32 0, %v2178
        %v2180 = vrot.slane %v2158, %v2179
        %v2181 = vadd.f32 %v2176, %v2180
        %2182 = vst.msk [vmem:[%s351] sm:$0xff] %vm377, %v2181
        %s2183 = sand.u32 %s186, 1
        %s2184 = scalar_lea.sflag [#allocation4], %s2183
        %s2185 = sand.u32 %s186, 1
        %s2186 = smul.addr %s2185, 8
        %s2187 = scalar_lea.vmem [#allocation11], %s2186
        // Predicated region
        $region69: #{tpu_custom_call.1} parent=47 // pred_check
          %p2188 = pneg %p196
        $region70: #{tpu_custom_call.1} parent=47 // pred_check_branch
          %2190 = sbr.rel (%p2188) target = $region72
        $region71: #{tpu_custom_call.1} parent=47 // pred_region
          %s2192 = ssub.s32 128, 128
          %2193 = vsyncadd %s2184, %s2192
          %s2194 = smul.addr %s26, 128
          %s2195 = scalar_lea.hbm %s7, %s2194
          %s2197 = sshll.u32 %s2187, 4
          %s2198 = int_to_ptr.vmem [resolvable:$true] %s2197
          %2200 = dma.vmem_to_hbm [thread:$0]  %s2198, 128, %s2195, %s2184
        $region72: #{tpu_custom_call.1} parent=47 // pred_fallthru
          _
      $region48: #{tpu_custom_call.1} parent=5 // pred_fallthru
        _
      %p2201 = scmp.le.s32.totalorder 2, %s21
      // Predicated region
      $region73: #{tpu_custom_call.1} parent=5 // pred_check
        %p2202 = pneg %p2201
      $region74: #{tpu_custom_call.1} parent=5 // pred_check_branch
        %2204 = sbr.rel (%p2202) target = $region76
      $region75: #{tpu_custom_call.1} parent=5 // pred_region
        %s2205 = ssub.s32 %s21, 2
        // Predicated region
        $region77: #{tpu_custom_call.1} parent=75 // pred_check
          %p2206 = pneg %p202
        $region78: #{tpu_custom_call.1} parent=75 // pred_check_branch
          %2208 = sbr.rel (%p2206) target = $region80
        $region79: #{tpu_custom_call.1} parent=75 // pred_region
          %s2209 = sand.u32 %s187, 1
          %s2210 = scalar_lea.sflag [#allocation4], %s2209
          %s2211 = sand.u32 %s187, 1
          %s2212 = smul.addr %s2211, 8
          %s2213 = scalar_lea.vmem [#allocation11], %s2212
          %2214 = dma.done %s2210, 128
        $region80: #{tpu_custom_call.1} parent=75 // pred_fallthru
          _
      $region76: #{tpu_custom_call.1} parent=5 // pred_fallthru
        _
    $region6: #{tpu_custom_call.1} parent=1 // loop_footer
      %s25 = sadd.s32 1, %s21
    $region7: #{tpu_custom_call.1} parent=1 // loop_footer_branch
      %20 = sbr.rel target = $region3
    $region8: #{tpu_custom_call.1} parent=1 // loop_exit
      _
    %2215 = vsyncpa [#allocation3], 1
    %s2216 = scalar_lea.sflag [#allocation3], 1
    %2217 = vsyncpa %s2216, 1
    %2218 = vsyncpa [#allocation6], 1
    %2219 = vsyncpa [#allocation9], 1
    %2220 = vsyncpa [#allocation4], 1
    %s2221 = scalar_lea.sflag [#allocation4], 1
    %2222 = vsyncpa %s2221, 1

</llo_original>
